<compile_context>
chip_gen: v7x
topology: tpu7x:2x2x1
jax: 0.10.0
libtpu: 0.0.40
codegen_flags: <defaults>
</compile_context>

<pallas_src>
import jax
import jax.numpy as jnp
from jax.experimental import pallas as pl
from jax.experimental.pallas import tpu as pltpu


def basic_block_kernel(x_ref, w1_ref, w2_ref, b1_ref, b2_ref, o_ref,
                       xpad_scr, mid_scr):
    # x_ref   : (1, H, W, Cin)        f32  unpadded input block
    # w1_ref  : (3, 3*Cin,  Cout)     bf16 conv1 weights, BN1 scale folded, dx in K
    # w2_ref  : (3, 3*Cout, Cout)     bf16 conv2 weights, BN2 scale folded, dx in K
    # b1_ref  : (1, Cout)             f32  folded BN1 bias
    # b2_ref  : (1, Cout)             f32  folded BN2 bias
    # o_ref   : (1, H, W, Cout)       f32  output block
    # xpad_scr: VMEM (H+2, Wp, Cin)   bf16 padded-input scratch (Wp = roundup(W+2, 8))
    # mid_scr : VMEM (H+2, Wp, Cout)  bf16 padded-intermediate scratch
    H = o_ref.shape[1]
    W = o_ref.shape[2]
    Cin = x_ref.shape[3]
    Cout = o_ref.shape[3]
    Wp = xpad_scr.shape[1]            # sublane-aligned padded row width (>= W + 2)

    x = x_ref[0]                      # (H, W, Cin) f32

    # ---- zero-pad the input in VMEM: 3 aligned full-row stores ---------------
    # Every row of the scratch is rewritten each grid step, so each step is
    # fully self-contained (safe under "parallel" / megacore sharding).
    zrow1 = jnp.zeros((1, Wp, Cin), xpad_scr.dtype)
    xpad_scr[0:1, :, :] = zrow1
    xpad_scr[H + 1:H + 2, :, :] = zrow1
    zl1 = jnp.zeros((H, 1, Cin), xpad_scr.dtype)
    zr1 = jnp.zeros((H, Wp - W - 1, Cin), xpad_scr.dtype)
    xpad_scr[1:H + 1, :, :] = jnp.concatenate(
        [zl1, x.astype(xpad_scr.dtype), zr1], axis=1)
    xpad = xpad_scr[...]              # (H+2, Wp, Cin) bf16

    # ---- conv1 (3x3, pad=1, stride=1): dx folded into K ----------------------
    # slab1[r, dx*Cin + c] == xpad[r // W, (r % W) + dx, c]; the dy shift is an
    # aligned slice on the leading axis (layout-cheap when W % 8 == 0).
    slab1 = jnp.concatenate(
        [xpad[:, dx:dx + W, :].reshape((H + 2) * W, Cin) for dx in range(3)],
        axis=1)                       # ((H+2)*W, 3*Cin) bf16

    acc1 = jnp.dot(slab1[0:H * W, :], w1_ref[0],
                   preferred_element_type=jnp.float32)
    acc1 = acc1 + jnp.dot(slab1[W:W + H * W, :], w1_ref[1],
                          preferred_element_type=jnp.float32)
    acc1 = acc1 + jnp.dot(slab1[2 * W:2 * W + H * W, :], w1_ref[2],
                          preferred_element_type=jnp.float32)

    # ---- BN1 (scale already folded into w1) bias + ReLU, in f32 --------------
    y = jnp.maximum(acc1 + b1_ref[...], 0.0)          # (H*W, Cout) f32

    # ---- re-pad the intermediate for conv2: 3 aligned full-row stores --------
    zrow2 = jnp.zeros((1, Wp, Cout), mid_scr.dtype)
    mid_scr[0:1, :, :] = zrow2
    mid_scr[H + 1:H + 2, :, :] = zrow2
    zl2 = jnp.zeros((H, 1, Cout), mid_scr.dtype)
    zr2 = jnp.zeros((H, Wp - W - 1, Cout), mid_scr.dtype)
    mid_scr[1:H + 1, :, :] = jnp.concatenate(
        [zl2, y.reshape(H, W, Cout).astype(mid_scr.dtype), zr2], axis=1)
    mid = mid_scr[...]                # (H+2, Wp, Cout) bf16

    # ---- conv2 (3x3, pad=1, stride=1), same K-folded scheme ------------------
    slab2 = jnp.concatenate(
        [mid[:, dx:dx + W, :].reshape((H + 2) * W, Cout) for dx in range(3)],
        axis=1)                       # ((H+2)*W, 3*Cout) bf16

    acc2 = jnp.dot(slab2[0:H * W, :], w2_ref[0],
                   preferred_element_type=jnp.float32)
    acc2 = acc2 + jnp.dot(slab2[W:W + H * W, :], w2_ref[1],
                          preferred_element_type=jnp.float32)
    acc2 = acc2 + jnp.dot(slab2[2 * W:2 * W + H * W, :], w2_ref[2],
                          preferred_element_type=jnp.float32)

    # ---- BN2 bias + identity shortcut (exact f32) + final ReLU ----------------
    shortcut = x.reshape(H * W, Cin)                   # f32
    out = jnp.maximum(acc2 + b2_ref[...] + shortcut, 0.0)
    o_ref[...] = out.reshape(1, H, W, Cout)


def _vmem_limit_bytes():
    # Generation-aware scoped-VMEM cap: ~3/4 of physical VMEM (48 MiB on v7x's
    # 64 MiB; 96 MiB on v5e/v6e's 128 MiB), with a safe fallback.
    try:
        cap = int(pltpu.get_tpu_info().vmem_capacity_bytes)
    except Exception:
        cap = 64 * 1024 * 1024
    return int(min((cap * 3) // 4, 100 * 1024 * 1024))


def basic_block_forward(x_nchw, w1, w2, bn1, bn2, eps=1e-5):
    """x_nchw: (N, Cin, H, W) float32.  w1/w2: (Cout, Cin, 3, 3) PyTorch OIHW.
    bn1/bn2: dicts with gamma, beta, mean, var of shape (Cout,) (eval mode)."""
    N, Cin, H, W = x_nchw.shape
    Cout = w1.shape[0]
    assert Cin == Cout, "identity shortcut requires in_channels == out_channels"
    Wp = ((W + 2 + 7) // 8) * 8       # sublane-aligned padded row width

    # NCHW -> NHWC, OIHW -> HWIO.
    x = jnp.transpose(x_nchw, (0, 2, 3, 1)).astype(jnp.float32)
    w1_hwio = jnp.transpose(w1, (2, 3, 1, 0)).astype(jnp.float32)
    w2_hwio = jnp.transpose(w2, (2, 3, 1, 0)).astype(jnp.float32)

    # Fold eval-mode BatchNorm: scale into the conv weights (per out channel);
    # bias stays as a per-channel add in the kernel.  Weights are delivered in
    # the exact in-kernel layout: bf16, (3, 3*Cin, Cout), dx folded into K.
    def fold(bn, w_hwio):
        scale = bn["gamma"] / jnp.sqrt(bn["var"] + eps)               # (Cout,)
        bias = bn["beta"] - bn["mean"] * scale                        # (Cout,)
        cin = w_hwio.shape[2]
        w_k = (w_hwio * scale[None, None, None, :]).reshape(3, 3 * cin, -1)
        return w_k.astype(jnp.bfloat16), bias.reshape(1, -1).astype(jnp.float32)

    w1_k, b1 = fold(bn1, w1_hwio)     # (3, 3*Cin,  Cout), (1, Cout)
    w2_k, b2 = fold(bn2, w2_hwio)     # (3, 3*Cout, Cout), (1, Cout)

    out_nhwc = pl.pallas_call(
        basic_block_kernel,
        out_shape=jax.ShapeDtypeStruct((N, H, W, Cout), jnp.float32),
        grid_spec=pltpu.PrefetchScalarGridSpec(
            num_scalar_prefetch=0,
            grid=(N,),
            in_specs=[
                pl.BlockSpec((1, H, W, Cin), lambda n: (n, 0, 0, 0)),
                pl.BlockSpec((3, 3 * Cin, Cout), lambda n: (0, 0, 0)),
                pl.BlockSpec((3, 3 * Cout, Cout), lambda n: (0, 0, 0)),
                pl.BlockSpec((1, Cout), lambda n: (0, 0)),
                pl.BlockSpec((1, Cout), lambda n: (0, 0)),
            ],
            out_specs=pl.BlockSpec((1, H, W, Cout), lambda n: (n, 0, 0, 0)),
            scratch_shapes=[
                pltpu.VMEM((H + 2, Wp, Cin), jnp.bfloat16),
                pltpu.VMEM((H + 2, Wp, Cout), jnp.bfloat16),
            ],
        ),
        compiler_params=pltpu.CompilerParams(
            # Each image is independent: "parallel" lets v7x shard N over both
            # TensorCores; neutral on v5e/v6e.
            dimension_semantics=("parallel",),
            vmem_limit_bytes=_vmem_limit_bytes()),
    )(x, w1_k, w2_k, b1, b2)

    # NHWC -> NCHW to match PyTorch output layout.
    # TODO(synk): emit bf16 / keep NHWC if the consuming layer allows it
    # (halves output HBM writeback and drops a full-tensor transpose pass).
    return jnp.transpose(out_nhwc, (0, 3, 1, 2))


def _reference_forward(x_nchw, w1, w2, bn1, bn2, eps=1e-5):
    """Pure-JAX f32 reference (lax.conv) for correctness checking."""
    x = jnp.transpose(x_nchw, (0, 2, 3, 1))
    w1_hwio = jnp.transpose(w1, (2, 3, 1, 0))
    w2_hwio = jnp.transpose(w2, (2, 3, 1, 0))
    dn = ("NHWC", "HWIO", "NHWC")

    def bn_apply(y, bn):
        scale = bn["gamma"] / jnp.sqrt(bn["var"] + eps)
        bias = bn["beta"] - bn["mean"] * scale
        return y * scale + bias

    y = jax.lax.conv_general_dilated(x, w1_hwio, (1, 1), "SAME",
                                     dimension_numbers=dn)
    y = jnp.maximum(bn_apply(y, bn1), 0.0)
    y = jax.lax.conv_general_dilated(y, w2_hwio, (1, 1), "SAME",
                                     dimension_numbers=dn)
    y = bn_apply(y, bn2)
    out = jnp.maximum(y + x, 0.0)
    return jnp.transpose(out, (0, 3, 1, 2))


if __name__ == "__main__":
    # Small deterministic shapes consistent with the module (projection=None,
    # stride=1 => in_channels == out_channels).
    N, C, H, W = 2, 4, 16, 16
    key = jax.random.PRNGKey(0)
    kx, kw1, kw2, kg1, kb1, km1, kv1, kg2, kb2, km2, kv2 = jax.random.split(key, 11)

    x = jax.random.normal(kx, (N, C, H, W), jnp.float32)

    # Conv weights in PyTorch OIHW layout (Cout, Cin, 3, 3), bias=False.
    w1 = jax.random.normal(kw1, (C, C, 3, 3), jnp.float32) * 0.1
    w2 = jax.random.normal(kw2, (C, C, 3, 3), jnp.float32) * 0.1

    bn1 = {
        "gamma": jax.random.normal(kg1, (C,), jnp.float32) * 0.1 + 1.0,
        "beta": jax.random.normal(kb1, (C,), jnp.float32) * 0.1,
        "mean": jax.random.normal(km1, (C,), jnp.float32) * 0.1,
        "var": jnp.abs(jax.random.normal(kv1, (C,), jnp.float32)) * 0.1 + 0.5,
    }
    bn2 = {
        "gamma": jax.random.normal(kg2, (C,), jnp.float32) * 0.1 + 1.0,
        "beta": jax.random.normal(kb2, (C,), jnp.float32) * 0.1,
        "mean": jax.random.normal(km2, (C,), jnp.float32) * 0.1,
        "var": jnp.abs(jax.random.normal(kv2, (C,), jnp.float32)) * 0.1 + 0.5,
    }

    out = basic_block_forward(x, w1, w2, bn1, bn2)
    out = jax.block_until_ready(out)

    ref = _reference_forward(x, w1, w2, bn1, bn2)
    assert out.shape == (N, C, H, W), out.shape
    # Tolerance is relaxed vs the pure-f32 reference because the MXU matmuls
    # consume bf16 inputs (f32 accumulation); structural bugs would give O(1)
    # errors, far above this threshold.
    assert jnp.allclose(out, ref, atol=5e-2, rtol=5e-2), "mismatch vs reference"

    print("KERNEL_OK")
</pallas_src>

<mosaic_0001>
module attributes {stable_mosaic.version = 11 : i64} {
  func.func @basic_block_kernel(%arg0: i32, %arg1: memref<1x16x16x4xf32, #tpu.memory_space<vmem>>, %arg2: memref<3x12x4xbf16, #tpu.memory_space<vmem>>, %arg3: memref<3x12x4xbf16, #tpu.memory_space<vmem>>, %arg4: memref<1x4xf32, #tpu.memory_space<vmem>>, %arg5: memref<1x4xf32, #tpu.memory_space<vmem>>, %arg6: memref<1x16x16x4xf32, #tpu.memory_space<vmem>>, %arg7: memref<18x24x4xbf16, #tpu.memory_space<vmem>>, %arg8: memref<18x24x4xbf16, #tpu.memory_space<vmem>>) attributes {dimension_semantics = [#tpu.dimension_semantics<parallel>], iteration_bounds = array<i64: 2>, scalar_prefetch = 0 : i64, scratch_operands = 2 : i64, tpu.core_type = #tpu.core_type<tc>, window_params = [{transform_indices = @transform_0, window_bounds = array<i64: 1, 16, 16, 4>}, {pipeline_mode = #tpu.pipeline_mode<synchronous>, transform_indices = @transform_1, window_bounds = array<i64: 3, 12, 4>}, {pipeline_mode = #tpu.pipeline_mode<synchronous>, transform_indices = @transform_2, window_bounds = array<i64: 3, 12, 4>}, {pipeline_mode = #tpu.pipeline_mode<synchronous>, transform_indices = @transform_3, window_bounds = array<i64: 1, 4>}, {pipeline_mode = #tpu.pipeline_mode<synchronous>, transform_indices = @transform_4, window_bounds = array<i64: 1, 4>}, {transform_indices = @transform_5, window_bounds = array<i64: 1, 16, 16, 4>}]} {
    %c0 = arith.constant 0 : index
    %c0_0 = arith.constant 0 : index
    %c0_1 = arith.constant 0 : index
    %c0_2 = arith.constant 0 : index
    %0 = vector.load %arg1[%c0, %c0_0, %c0_1, %c0_2] : memref<1x16x16x4xf32, #tpu.memory_space<vmem>>, vector<1x16x16x4xf32>
    %1 = vector.shape_cast %0 : vector<1x16x16x4xf32> to vector<16x16x4xf32>
    %cst = arith.constant 0.000000e+00 : bf16
    %2 = vector.broadcast %cst : bf16 to vector<1x24x4xbf16>
    %c0_3 = arith.constant 0 : index
    %c0_4 = arith.constant 0 : index
    %c0_5 = arith.constant 0 : index
    %3 = vector.load %arg7[%c0_3, %c0_4, %c0_5] : memref<18x24x4xbf16, #tpu.memory_space<vmem>>, vector<1x24x4xbf16>
    tpu.vector_store %arg7[%c0_3, %c0_4, %c0_5], %2 {strides = array<i32>} : memref<18x24x4xbf16, #tpu.memory_space<vmem>>, vector<1x24x4xbf16>,
    %c17 = arith.constant 17 : index
    %c0_6 = arith.constant 0 : index
    %c0_7 = arith.constant 0 : index
    %4 = vector.load %arg7[%c17, %c0_6, %c0_7] : memref<18x24x4xbf16, #tpu.memory_space<vmem>>, vector<1x24x4xbf16>
    tpu.vector_store %arg7[%c17, %c0_6, %c0_7], %2 {strides = array<i32>} : memref<18x24x4xbf16, #tpu.memory_space<vmem>>, vector<1x24x4xbf16>,
    %cst_8 = arith.constant 0.000000e+00 : bf16
    %5 = vector.broadcast %cst_8 : bf16 to vector<16x1x4xbf16>
    %cst_9 = arith.constant 0.000000e+00 : bf16
    %6 = vector.broadcast %cst_9 : bf16 to vector<16x7x4xbf16>
    %7 = arith.truncf %1 : vector<16x16x4xf32> to vector<16x16x4xbf16>
    %8 = tpu.concatenate %5, %7, %6 in 1 : vector<16x1x4xbf16>, vector<16x16x4xbf16>, vector<16x7x4xbf16> -> vector<16x24x4xbf16>
    %c1 = arith.constant 1 : index
    %c0_10 = arith.constant 0 : index
    %c0_11 = arith.constant 0 : index
    %9 = vector.load %arg7[%c1, %c0_10, %c0_11] : memref<18x24x4xbf16, #tpu.memory_space<vmem>>, vector<16x24x4xbf16>
    tpu.vector_store %arg7[%c1, %c0_10, %c0_11], %8 {strides = array<i32>} : memref<18x24x4xbf16, #tpu.memory_space<vmem>>, vector<16x24x4xbf16>,
    %c0_12 = arith.constant 0 : index
    %c0_13 = arith.constant 0 : index
    %c0_14 = arith.constant 0 : index
    %10 = vector.load %arg7[%c0_12, %c0_13, %c0_14] : memref<18x24x4xbf16, #tpu.memory_space<vmem>>, vector<18x24x4xbf16>
    %11 = vector.extract_strided_slice %10 {offsets = [0, 0, 0], sizes = [18, 16, 4], strides = [1, 1, 1]} : vector<18x24x4xbf16> to vector<18x16x4xbf16>
    %12 = vector.shape_cast %11 : vector<18x16x4xbf16> to vector<288x4xbf16>
    %13 = vector.extract_strided_slice %10 {offsets = [0, 1, 0], sizes = [18, 16, 4], strides = [1, 1, 1]} : vector<18x24x4xbf16> to vector<18x16x4xbf16>
    %14 = vector.shape_cast %13 : vector<18x16x4xbf16> to vector<288x4xbf16>
    %15 = vector.extract_strided_slice %10 {offsets = [0, 2, 0], sizes = [18, 16, 4], strides = [1, 1, 1]} : vector<18x24x4xbf16> to vector<18x16x4xbf16>
    %16 = vector.shape_cast %15 : vector<18x16x4xbf16> to vector<288x4xbf16>
    %17 = tpu.concatenate %12, %14, %16 in 1 : vector<288x4xbf16>, vector<288x4xbf16>, vector<288x4xbf16> -> vector<288x12xbf16>
    %18 = vector.extract_strided_slice %17 {offsets = [0, 0], sizes = [256, 12], strides = [1, 1]} : vector<288x12xbf16> to vector<256x12xbf16>
    %c0_15 = arith.constant 0 : index
    %c0_16 = arith.constant 0 : index
    %c0_17 = arith.constant 0 : index
    %19 = vector.load %arg2[%c0_15, %c0_16, %c0_17] : memref<3x12x4xbf16, #tpu.memory_space<vmem>>, vector<1x12x4xbf16>
    %20 = vector.shape_cast %19 : vector<1x12x4xbf16> to vector<12x4xbf16>
    %cst_18 = arith.constant dense<0.000000e+00> : vector<256x4xf32>
    %21 = tpu.matmul %18, %20, %cst_18 {dimension_numbers = #tpu.dot_dimension_numbers<[1], [0], [0], [1], [0, 0, 1, 1], [], []>} : vector<256x12xbf16>, vector<12x4xbf16>, vector<256x4xf32> -> vector<256x4xf32>
    %22 = vector.extract_strided_slice %17 {offsets = [16, 0], sizes = [256, 12], strides = [1, 1]} : vector<288x12xbf16> to vector<256x12xbf16>
    %c1_19 = arith.constant 1 : index
    %c0_20 = arith.constant 0 : index
    %c0_21 = arith.constant 0 : index
    %23 = vector.load %arg2[%c1_19, %c0_20, %c0_21] : memref<3x12x4xbf16, #tpu.memory_space<vmem>>, vector<1x12x4xbf16>
    %24 = vector.shape_cast %23 : vector<1x12x4xbf16> to vector<12x4xbf16>
    %cst_22 = arith.constant dense<0.000000e+00> : vector<256x4xf32>
    %25 = tpu.matmul %22, %24, %cst_22 {dimension_numbers = #tpu.dot_dimension_numbers<[1], [0], [0], [1], [0, 0, 1, 1], [], []>} : vector<256x12xbf16>, vector<12x4xbf16>, vector<256x4xf32> -> vector<256x4xf32>
    %26 = arith.addf %21, %25 : vector<256x4xf32>
    %27 = vector.extract_strided_slice %17 {offsets = [32, 0], sizes = [256, 12], strides = [1, 1]} : vector<288x12xbf16> to vector<256x12xbf16>
    %c2 = arith.constant 2 : index
    %c0_23 = arith.constant 0 : index
    %c0_24 = arith.constant 0 : index
    %28 = vector.load %arg2[%c2, %c0_23, %c0_24] : memref<3x12x4xbf16, #tpu.memory_space<vmem>>, vector<1x12x4xbf16>
    %29 = vector.shape_cast %28 : vector<1x12x4xbf16> to vector<12x4xbf16>
    %cst_25 = arith.constant dense<0.000000e+00> : vector<256x4xf32>
    %30 = tpu.matmul %27, %29, %cst_25 {dimension_numbers = #tpu.dot_dimension_numbers<[1], [0], [0], [1], [0, 0, 1, 1], [], []>} : vector<256x12xbf16>, vector<12x4xbf16>, vector<256x4xf32> -> vector<256x4xf32>
    %31 = arith.addf %26, %30 : vector<256x4xf32>
    %c0_26 = arith.constant 0 : index
    %c0_27 = arith.constant 0 : index
    %32 = vector.load %arg4[%c0_26, %c0_27] : memref<1x4xf32, #tpu.memory_space<vmem>>, vector<1x4xf32>
    %33 = vector.broadcast %32 : vector<1x4xf32> to vector<256x4xf32>
    %34 = arith.addf %31, %33 : vector<256x4xf32>
    %cst_28 = arith.constant 0.000000e+00 : f32
    %35 = vector.broadcast %cst_28 : f32 to vector<256x4xf32>
    %36 = arith.maximumf %34, %35 : vector<256x4xf32>
    %cst_29 = arith.constant 0.000000e+00 : bf16
    %37 = vector.broadcast %cst_29 : bf16 to vector<1x24x4xbf16>
    %c0_30 = arith.constant 0 : index
    %c0_31 = arith.constant 0 : index
    %c0_32 = arith.constant 0 : index
    %38 = vector.load %arg8[%c0_30, %c0_31, %c0_32] : memref<18x24x4xbf16, #tpu.memory_space<vmem>>, vector<1x24x4xbf16>
    tpu.vector_store %arg8[%c0_30, %c0_31, %c0_32], %37 {strides = array<i32>} : memref<18x24x4xbf16, #tpu.memory_space<vmem>>, vector<1x24x4xbf16>,
    %c17_33 = arith.constant 17 : index
    %c0_34 = arith.constant 0 : index
    %c0_35 = arith.constant 0 : index
    %39 = vector.load %arg8[%c17_33, %c0_34, %c0_35] : memref<18x24x4xbf16, #tpu.memory_space<vmem>>, vector<1x24x4xbf16>
    tpu.vector_store %arg8[%c17_33, %c0_34, %c0_35], %37 {strides = array<i32>} : memref<18x24x4xbf16, #tpu.memory_space<vmem>>, vector<1x24x4xbf16>,
    %cst_36 = arith.constant 0.000000e+00 : bf16
    %40 = vector.broadcast %cst_36 : bf16 to vector<16x1x4xbf16>
    %cst_37 = arith.constant 0.000000e+00 : bf16
    %41 = vector.broadcast %cst_37 : bf16 to vector<16x7x4xbf16>
    %42 = vector.shape_cast %36 : vector<256x4xf32> to vector<16x16x4xf32>
    %43 = arith.truncf %42 : vector<16x16x4xf32> to vector<16x16x4xbf16>
    %44 = tpu.concatenate %40, %43, %41 in 1 : vector<16x1x4xbf16>, vector<16x16x4xbf16>, vector<16x7x4xbf16> -> vector<16x24x4xbf16>
    %c1_38 = arith.constant 1 : index
    %c0_39 = arith.constant 0 : index
    %c0_40 = arith.constant 0 : index
    %45 = vector.load %arg8[%c1_38, %c0_39, %c0_40] : memref<18x24x4xbf16, #tpu.memory_space<vmem>>, vector<16x24x4xbf16>
    tpu.vector_store %arg8[%c1_38, %c0_39, %c0_40], %44 {strides = array<i32>} : memref<18x24x4xbf16, #tpu.memory_space<vmem>>, vector<16x24x4xbf16>,
    %c0_41 = arith.constant 0 : index
    %c0_42 = arith.constant 0 : index
    %c0_43 = arith.constant 0 : index
    %46 = vector.load %arg8[%c0_41, %c0_42, %c0_43] : memref<18x24x4xbf16, #tpu.memory_space<vmem>>, vector<18x24x4xbf16>
    %47 = vector.extract_strided_slice %46 {offsets = [0, 0, 0], sizes = [18, 16, 4], strides = [1, 1, 1]} : vector<18x24x4xbf16> to vector<18x16x4xbf16>
    %48 = vector.shape_cast %47 : vector<18x16x4xbf16> to vector<288x4xbf16>
    %49 = vector.extract_strided_slice %46 {offsets = [0, 1, 0], sizes = [18, 16, 4], strides = [1, 1, 1]} : vector<18x24x4xbf16> to vector<18x16x4xbf16>
    %50 = vector.shape_cast %49 : vector<18x16x4xbf16> to vector<288x4xbf16>
    %51 = vector.extract_strided_slice %46 {offsets = [0, 2, 0], sizes = [18, 16, 4], strides = [1, 1, 1]} : vector<18x24x4xbf16> to vector<18x16x4xbf16>
    %52 = vector.shape_cast %51 : vector<18x16x4xbf16> to vector<288x4xbf16>
    %53 = tpu.concatenate %48, %50, %52 in 1 : vector<288x4xbf16>, vector<288x4xbf16>, vector<288x4xbf16> -> vector<288x12xbf16>
    %54 = vector.extract_strided_slice %53 {offsets = [0, 0], sizes = [256, 12], strides = [1, 1]} : vector<288x12xbf16> to vector<256x12xbf16>
    %c0_44 = arith.constant 0 : index
    %c0_45 = arith.constant 0 : index
    %c0_46 = arith.constant 0 : index
    %55 = vector.load %arg3[%c0_44, %c0_45, %c0_46] : memref<3x12x4xbf16, #tpu.memory_space<vmem>>, vector<1x12x4xbf16>
    %56 = vector.shape_cast %55 : vector<1x12x4xbf16> to vector<12x4xbf16>
    %cst_47 = arith.constant dense<0.000000e+00> : vector<256x4xf32>
    %57 = tpu.matmul %54, %56, %cst_47 {dimension_numbers = #tpu.dot_dimension_numbers<[1], [0], [0], [1], [0, 0, 1, 1], [], []>} : vector<256x12xbf16>, vector<12x4xbf16>, vector<256x4xf32> -> vector<256x4xf32>
    %58 = vector.extract_strided_slice %53 {offsets = [16, 0], sizes = [256, 12], strides = [1, 1]} : vector<288x12xbf16> to vector<256x12xbf16>
    %c1_48 = arith.constant 1 : index
    %c0_49 = arith.constant 0 : index
    %c0_50 = arith.constant 0 : index
    %59 = vector.load %arg3[%c1_48, %c0_49, %c0_50] : memref<3x12x4xbf16, #tpu.memory_space<vmem>>, vector<1x12x4xbf16>
    %60 = vector.shape_cast %59 : vector<1x12x4xbf16> to vector<12x4xbf16>
    %cst_51 = arith.constant dense<0.000000e+00> : vector<256x4xf32>
    %61 = tpu.matmul %58, %60, %cst_51 {dimension_numbers = #tpu.dot_dimension_numbers<[1], [0], [0], [1], [0, 0, 1, 1], [], []>} : vector<256x12xbf16>, vector<12x4xbf16>, vector<256x4xf32> -> vector<256x4xf32>
    %62 = arith.addf %57, %61 : vector<256x4xf32>
    %63 = vector.extract_strided_slice %53 {offsets = [32, 0], sizes = [256, 12], strides = [1, 1]} : vector<288x12xbf16> to vector<256x12xbf16>
    %c2_52 = arith.constant 2 : index
    %c0_53 = arith.constant 0 : index
    %c0_54 = arith.constant 0 : index
    %64 = vector.load %arg3[%c2_52, %c0_53, %c0_54] : memref<3x12x4xbf16, #tpu.memory_space<vmem>>, vector<1x12x4xbf16>
    %65 = vector.shape_cast %64 : vector<1x12x4xbf16> to vector<12x4xbf16>
    %cst_55 = arith.constant dense<0.000000e+00> : vector<256x4xf32>
    %66 = tpu.matmul %63, %65, %cst_55 {dimension_numbers = #tpu.dot_dimension_numbers<[1], [0], [0], [1], [0, 0, 1, 1], [], []>} : vector<256x12xbf16>, vector<12x4xbf16>, vector<256x4xf32> -> vector<256x4xf32>
    %67 = arith.addf %62, %66 : vector<256x4xf32>
    %68 = vector.shape_cast %1 : vector<16x16x4xf32> to vector<256x4xf32>
    %c0_56 = arith.constant 0 : index
    %c0_57 = arith.constant 0 : index
    %69 = vector.load %arg5[%c0_56, %c0_57] : memref<1x4xf32, #tpu.memory_space<vmem>>, vector<1x4xf32>
    %70 = vector.broadcast %69 : vector<1x4xf32> to vector<256x4xf32>
    %71 = arith.addf %67, %70 : vector<256x4xf32>
    %72 = arith.addf %71, %68 : vector<256x4xf32>
    %cst_58 = arith.constant 0.000000e+00 : f32
    %73 = vector.broadcast %cst_58 : f32 to vector<256x4xf32>
    %74 = arith.maximumf %72, %73 : vector<256x4xf32>
    %75 = vector.shape_cast %74 : vector<256x4xf32> to vector<1x16x16x4xf32>
    %c0_59 = arith.constant 0 : index
    %c0_60 = arith.constant 0 : index
    %c0_61 = arith.constant 0 : index
    %c0_62 = arith.constant 0 : index
    %76 = vector.load %arg6[%c0_59, %c0_60, %c0_61, %c0_62] : memref<1x16x16x4xf32, #tpu.memory_space<vmem>>, vector<1x16x16x4xf32>
    tpu.vector_store %arg6[%c0_59, %c0_60, %c0_61, %c0_62], %75 {strides = array<i32>} : memref<1x16x16x4xf32, #tpu.memory_space<vmem>>, vector<1x16x16x4xf32>,
    return
  }
  func.func @transform_0(%arg0: i32) -> (i32, i32, i32, i32) {
    %c0_i32 = arith.constant 0 : i32
    %c0_i32_0 = arith.constant 0 : i32
    %c0_i32_1 = arith.constant 0 : i32
    %c0_i32_2 = arith.constant 0 : i32
    return %arg0, %c0_i32, %c0_i32_0, %c0_i32_1 : i32, i32, i32, i32
  }
  func.func @transform_1(%arg0: i32) -> (i32, i32, i32) {
    %c0_i32 = arith.constant 0 : i32
    %c0_i32_0 = arith.constant 0 : i32
    %c0_i32_1 = arith.constant 0 : i32
    %c0_i32_2 = arith.constant 0 : i32
    return %c0_i32, %c0_i32_0, %c0_i32_1 : i32, i32, i32
  }
  func.func @transform_2(%arg0: i32) -> (i32, i32, i32) {
    %c0_i32 = arith.constant 0 : i32
    %c0_i32_0 = arith.constant 0 : i32
    %c0_i32_1 = arith.constant 0 : i32
    %c0_i32_2 = arith.constant 0 : i32
    return %c0_i32, %c0_i32_0, %c0_i32_1 : i32, i32, i32
  }
  func.func @transform_3(%arg0: i32) -> (i32, i32) {
    %c0_i32 = arith.constant 0 : i32
    %c0_i32_0 = arith.constant 0 : i32
    %c0_i32_1 = arith.constant 0 : i32
    return %c0_i32, %c0_i32_0 : i32, i32
  }
  func.func @transform_4(%arg0: i32) -> (i32, i32) {
    %c0_i32 = arith.constant 0 : i32
    %c0_i32_0 = arith.constant 0 : i32
    %c0_i32_1 = arith.constant 0 : i32
    return %c0_i32, %c0_i32_0 : i32, i32
  }
  func.func @transform_5(%arg0: i32) -> (i32, i32, i32, i32) {
    %c0_i32 = arith.constant 0 : i32
    %c0_i32_0 = arith.constant 0 : i32
    %c0_i32_1 = arith.constant 0 : i32
    %c0_i32_2 = arith.constant 0 : i32
    return %arg0, %c0_i32, %c0_i32_0, %c0_i32_1 : i32, i32, i32, i32
  }
}

</mosaic_0001>

<llo_original>
// kernel: tpu_custom_call.1
$region0: #{tpu_custom_call.1}
  #allocation0 [shape = 'u32[]', space=smem, size = 0x4, offset = 0x4, fixed_abs, tag = 'smem constant byte address 0x4 - core index']
  #allocation1 [shape = 'u32[144,128]{1,0:T(1,128)}', space=vmem, size = 0x12000, scoped, tag = 'internal scratch']
  #allocation2 [shape = 'bf16[18,24,4]{2,1,0:T(8,128)(2,1)}', space=vmem, size = 0x1b000, scoped, tag = 'scratch operand']
  #allocation3 [shape = 'bf16[18,24,4]{2,1,0:T(8,128)(2,1)}', space=vmem, size = 0x1b000, scoped, tag = 'scratch operand']
  %s0 = inlined_call_operand.vmem [shape: f32[2,16,16,4], index: 0, kind: input, shape index: {}]
  %s1 = inlined_call_operand.vmem [shape: bf16[3,12,4], index: 1, kind: input, shape index: {}]
  %s2 = inlined_call_operand.vmem [shape: bf16[3,12,4], index: 2, kind: input, shape index: {}]
  %s3 = inlined_call_operand.vmem [shape: f32[1,4], index: 3, kind: input, shape index: {}]
  %s4 = inlined_call_operand.vmem [shape: f32[1,4], index: 4, kind: input, shape index: {}]
  %s5 = inlined_call_operand.vmem [shape: f32[2,16,16,4], index: 5, kind: output, shape index: {}]
  %s6 = sld [smem:[#allocation0]]
  $region53: #{tpu_custom_call.1} parent=0
    _
  %s8 = ssub.s32 1, %s6
  %s9 = scalar_select 0, %s8, %s6
  loop: start=0, step=1, limit=4
  $region2: #{tpu_custom_call.1} parent=0 // loop_pre_header
    _
  $region3: #{tpu_custom_call.1} parent=0 // loop_header
    %s11 = sphi 0, %s15
    %p12 = scmp.ge.s32.totalorder %s11, 4
    %s21 = sphi 0, %s23
    %s24 = sphi 0, %s21
    %s25 = sphi 0, %s24
    %s41 = sphi 0, %s25
    %s45 = sphi 0, %s45
    %s47 = sphi 0, %s45
    %s48 = sphi 0, %s47
    %s62 = sphi 0, %s48
    %s66 = sphi 0, %s66
    %s68 = sphi 0, %s66
    %s69 = sphi 0, %s68
    %s83 = sphi 0, %s69
    %s87 = sphi 0, %s87
    %s89 = sphi 0, %s87
    %s90 = sphi 0, %s89
    %s104 = sphi 0, %s90
    %s108 = sphi 0, %s108
    %s110 = sphi 0, %s108
    %s111 = sphi 0, %s110
    %s125 = sphi 0, %s111
    %s131 = sphi 0, %s133
    %s134 = sphi 0, %s131
    %s135 = sphi 0, %s134
    %s151 = sphi 0, %s135
  $region4: #{tpu_custom_call.1} parent=0 // loop_header_branch
    %14 = sbr.rel (%p12) target = $region8
  $region5: #{tpu_custom_call.1} parent=0 // loop_body
    %s16 = ssub.s32 %s11, 1
    %s17 = ssub.s32 %s11, 2
    %s18 = sadd.s32 %s11, 1
    %s19 = ssub.s32 %s11, %s18
    %p20 = scmp.eq.s32.totalorder %s19, 0
    %s22 = sadd.s32 %s21, 1
    %s23 = scalar_select %p20, %s21, %s22
    %p26 = pneg %p20
    %p27 = scmp.eq.s32.totalorder %s11, 1
    %p28 = por %p26, %p27
    %p29 = scmp.ne.s32.totalorder %s21, %s24
    %p30 = scmp.eq.s32.totalorder %s11, 0
    %p31 = por %p29, %p30
    %p32 = scmp.ne.s32.totalorder %s21, %s24
    %p33 = scmp.eq.s32.totalorder %s16, 1
    %p34 = por %p32, %p33
    %p35 = scmp.ne.s32.totalorder %s24, %s25
    %p36 = scmp.eq.s32.totalorder %s16, 0
    %p37 = por %p35, %p36
    %p38 = scmp.ne.s32.totalorder %s24, %s25
    %p39 = scmp.eq.s32.totalorder %s17, 1
    %p40 = por %p38, %p39
    %p42 = scmp.ne.s32.totalorder %s25, %s41
    %p43 = scmp.eq.s32.totalorder %s17, 0
    %p44 = por %p42, %p43
    %s46 = sadd.s32 %s45, 1
    %p49 = scmp.eq.s32.totalorder %s11, 1
    %p50 = scmp.ne.s32.totalorder %s45, %s47
    %p51 = scmp.eq.s32.totalorder %s11, 0
    %p52 = por %p50, %p51
    %p53 = scmp.ne.s32.totalorder %s45, %s47
    %p54 = scmp.eq.s32.totalorder %s16, 1
    %p55 = por %p53, %p54
    %p56 = scmp.ne.s32.totalorder %s47, %s48
    %p57 = scmp.eq.s32.totalorder %s16, 0
    %p58 = por %p56, %p57
    %p59 = scmp.ne.s32.totalorder %s47, %s48
    %p60 = scmp.eq.s32.totalorder %s17, 1
    %p61 = por %p59, %p60
    %p63 = scmp.ne.s32.totalorder %s48, %s62
    %p64 = scmp.eq.s32.totalorder %s17, 0
    %p65 = por %p63, %p64
    %s67 = sadd.s32 %s66, 1
    %p70 = scmp.eq.s32.totalorder %s11, 1
    %p71 = scmp.ne.s32.totalorder %s66, %s68
    %p72 = scmp.eq.s32.totalorder %s11, 0
    %p73 = por %p71, %p72
    %p74 = scmp.ne.s32.totalorder %s66, %s68
    %p75 = scmp.eq.s32.totalorder %s16, 1
    %p76 = por %p74, %p75
    %p77 = scmp.ne.s32.totalorder %s68, %s69
    %p78 = scmp.eq.s32.totalorder %s16, 0
    %p79 = por %p77, %p78
    %p80 = scmp.ne.s32.totalorder %s68, %s69
    %p81 = scmp.eq.s32.totalorder %s17, 1
    %p82 = por %p80, %p81
    %p84 = scmp.ne.s32.totalorder %s69, %s83
    %p85 = scmp.eq.s32.totalorder %s17, 0
    %p86 = por %p84, %p85
    %s88 = sadd.s32 %s87, 1
    %p91 = scmp.eq.s32.totalorder %s11, 1
    %p92 = scmp.ne.s32.totalorder %s87, %s89
    %p93 = scmp.eq.s32.totalorder %s11, 0
    %p94 = por %p92, %p93
    %p95 = scmp.ne.s32.totalorder %s87, %s89
    %p96 = scmp.eq.s32.totalorder %s16, 1
    %p97 = por %p95, %p96
    %p98 = scmp.ne.s32.totalorder %s89, %s90
    %p99 = scmp.eq.s32.totalorder %s16, 0
    %p100 = por %p98, %p99
    %p101 = scmp.ne.s32.totalorder %s89, %s90
    %p102 = scmp.eq.s32.totalorder %s17, 1
    %p103 = por %p101, %p102
    %p105 = scmp.ne.s32.totalorder %s90, %s104
    %p106 = scmp.eq.s32.totalorder %s17, 0
    %p107 = por %p105, %p106
    %s109 = sadd.s32 %s108, 1
    %p112 = scmp.eq.s32.totalorder %s11, 1
    %p113 = scmp.ne.s32.totalorder %s108, %s110
    %p114 = scmp.eq.s32.totalorder %s11, 0
    %p115 = por %p113, %p114
    %p116 = scmp.ne.s32.totalorder %s108, %s110
    %p117 = scmp.eq.s32.totalorder %s16, 1
    %p118 = por %p116, %p117
    %p119 = scmp.ne.s32.totalorder %s110, %s111
    %p120 = scmp.eq.s32.totalorder %s16, 0
    %p121 = por %p119, %p120
    %p122 = scmp.ne.s32.totalorder %s110, %s111
    %p123 = scmp.eq.s32.totalorder %s17, 1
    %p124 = por %p122, %p123
    %p126 = scmp.ne.s32.totalorder %s111, %s125
    %p127 = scmp.eq.s32.totalorder %s17, 0
    %p128 = por %p126, %p127
    %s129 = ssub.s32 %s11, %s18
    %p130 = scmp.eq.s32.totalorder %s129, 0
    %s132 = sadd.s32 %s131, 1
    %s133 = scalar_select %p130, %s131, %s132
    %p136 = pneg %p130
    %p137 = scmp.eq.s32.totalorder %s11, 1
    %p138 = por %p136, %p137
    %p139 = scmp.ne.s32.totalorder %s131, %s134
    %p140 = scmp.eq.s32.totalorder %s11, 0
    %p141 = por %p139, %p140
    %p142 = scmp.ne.s32.totalorder %s131, %s134
    %p143 = scmp.eq.s32.totalorder %s16, 1
    %p144 = por %p142, %p143
    %p145 = scmp.ne.s32.totalorder %s134, %s135
    %p146 = scmp.eq.s32.totalorder %s16, 0
    %p147 = por %p145, %p146
    %p148 = scmp.ne.s32.totalorder %s134, %s135
    %p149 = scmp.eq.s32.totalorder %s17, 1
    %p150 = por %p148, %p149
    %p152 = scmp.ne.s32.totalorder %s135, %s151
    %p153 = scmp.eq.s32.totalorder %s17, 0
    %p154 = por %p152, %p153
    %p155 = scmp.le.s32.totalorder 1, %s11
    %p156 = scmp.lt.s32.totalorder %s11, 3
    %p157 = pnand %p155, %p156
    %p158 = pneg %p157
    // Predicated region
    $region9: #{tpu_custom_call.1} parent=5 // pred_check
      _
    $region10: #{tpu_custom_call.1} parent=5 // pred_check_branch
      %160 = sbr.rel (%p157) target = $region12
    $region11: #{tpu_custom_call.1} parent=5 // pred_region
      %s161 = ssub.s32 %s11, 1
      // Predicated region
      $region13: #{tpu_custom_call.1} parent=11 // pred_check
        %p162 = pneg %p58
      $region14: #{tpu_custom_call.1} parent=11 // pred_check_branch
        %164 = sbr.rel (%p162) target = $region16
      $region15: #{tpu_custom_call.1} parent=11 // pred_region
        _
      $region16: #{tpu_custom_call.1} parent=11 // pred_fallthru
        _
      // Predicated region
      $region17: #{tpu_custom_call.1} parent=11 // pred_check
        %p165 = pneg %p79
      $region18: #{tpu_custom_call.1} parent=11 // pred_check_branch
        %167 = sbr.rel (%p165) target = $region20
      $region19: #{tpu_custom_call.1} parent=11 // pred_region
        _
      $region20: #{tpu_custom_call.1} parent=11 // pred_fallthru
        _
      // Predicated region
      $region21: #{tpu_custom_call.1} parent=11 // pred_check
        %p168 = pneg %p100
      $region22: #{tpu_custom_call.1} parent=11 // pred_check_branch
        %170 = sbr.rel (%p168) target = $region24
      $region23: #{tpu_custom_call.1} parent=11 // pred_region
        _
      $region24: #{tpu_custom_call.1} parent=11 // pred_fallthru
        _
      // Predicated region
      $region25: #{tpu_custom_call.1} parent=11 // pred_check
        %p171 = pneg %p121
      $region26: #{tpu_custom_call.1} parent=11 // pred_check_branch
        %173 = sbr.rel (%p171) target = $region28
      $region27: #{tpu_custom_call.1} parent=11 // pred_region
        _
      $region28: #{tpu_custom_call.1} parent=11 // pred_fallthru
        _
    $region12: #{tpu_custom_call.1} parent=5 // pred_fallthru
      _
    %p174 = scmp.lt.s32.totalorder %s11, 2
    // Predicated region
    $region29: #{tpu_custom_call.1} parent=5 // pred_check
      %p175 = pneg %p174
    $region30: #{tpu_custom_call.1} parent=5 // pred_check_branch
      %177 = sbr.rel (%p175) target = $region32
    $region31: #{tpu_custom_call.1} parent=5 // pred_region
      // Predicated region
      $region33: #{tpu_custom_call.1} parent=31 // pred_check
        %p178 = pneg %p31
      $region34: #{tpu_custom_call.1} parent=31 // pred_check_branch
        %180 = sbr.rel (%p178) target = $region36
      $region35: #{tpu_custom_call.1} parent=31 // pred_region
        %p181 = scmp.lt.s32.totalorder %s11, 1
        %s182 = scalar_select %p181, %s11, 1
        %s183 = smul.addr %s182, 32
        %s184 = smul.addr %s183, 8
        %s185 = scalar_lea.vmem %s0, %s184
      $region36: #{tpu_custom_call.1} parent=31 // pred_fallthru
        _
    $region32: #{tpu_custom_call.1} parent=5 // pred_fallthru
      _
    %p186 = scmp.le.s32.totalorder 1, %s11
    %p187 = scmp.lt.s32.totalorder %s11, 3
    %p188 = pnand %p186, %p187
    %p189 = pneg %p188
    // Predicated region
    $region37: #{tpu_custom_call.1} parent=5 // pred_check
      _
    $region38: #{tpu_custom_call.1} parent=5 // pred_check_branch
      %191 = sbr.rel (%p188) target = $region40
    $region39: #{tpu_custom_call.1} parent=5 // pred_region
      %s192 = ssub.s32 %s11, 1
      %p193 = scmp.lt.s32.totalorder %s16, 1
      %s194 = scalar_select %p193, %s16, 1
      %s195 = smul.addr %s194, 32
      %s196 = smul.addr %s195, 8
      %s197 = scalar_lea.vmem %s0, %s196
      %p198 = pneg %p37
      %p199 = pneg %p34
      %p200 = pneg %p58
      %p201 = pneg %p55
      %p202 = pneg %p79
      %p203 = pneg %p76
      %p204 = pneg %p100
      %p205 = pneg %p97
      %p206 = pneg %p121
      %p207 = pneg %p118
      %p208 = pneg %p147
      %p209 = pneg %p144
      %p210 = scmp.lt.s32.totalorder %s16, 1
      %s211 = scalar_select %p210, %s16, 1
      %s212 = smul.addr %s211, 32
      %s213 = smul.addr %s212, 8
      %s214 = scalar_lea.vmem %s5, %s213
      %p215 = scmp.lt.s32.totalorder %s16, 1
      %s216 = scalar_select %p215, %s16, 1
      %s217 = smul.addr %s216, 32
      %s218 = smul.addr %s217, 8
      %s219 = scalar_lea.vmem %s0, %s218
      %p220 = scmp.lt.s32.totalorder %s16, 1
      %s221 = scalar_select %p220, %s16, 1
      %s222 = smul.addr %s221, 32
      %s223 = smul.addr %s222, 8
      %s224 = scalar_lea.vmem %s5, %s223
      %v226 = vld [vmem:[%s219] sm:$0xff]
      %v227 = vld [vmem:[%s219 + $0x8] sm:$0xff]
      %v228 = vld [vmem:[%s219 + $0x10] sm:$0xff]
      %v229 = vld [vmem:[%s219 + $0x18] sm:$0xff]
      %v230 = vld [vmem:[%s219 + $0x20] sm:$0xff]
      %v231 = vld [vmem:[%s219 + $0x28] sm:$0xff]
      %v232 = vld [vmem:[%s219 + $0x30] sm:$0xff]
      %v233 = vld [vmem:[%s219 + $0x38] sm:$0xff]
      %v234 = vld [vmem:[%s219 + $0x40] sm:$0xff]
      %v235 = vld [vmem:[%s219 + $0x48] sm:$0xff]
      %v236 = vld [vmem:[%s219 + $0x50] sm:$0xff]
      %v237 = vld [vmem:[%s219 + $0x58] sm:$0xff]
      %v238 = vld [vmem:[%s219 + $0x60] sm:$0xff]
      %v239 = vld [vmem:[%s219 + $0x68] sm:$0xff]
      %v240 = vld [vmem:[%s219 + $0x70] sm:$0xff]
      %v241 = vld [vmem:[%s219 + $0x78] sm:$0xff]
      %v242 = vld [vmem:[%s219 + $0x80] sm:$0xff]
      %v243 = vld [vmem:[%s219 + $0x88] sm:$0xff]
      %v244 = vld [vmem:[%s219 + $0x90] sm:$0xff]
      %v245 = vld [vmem:[%s219 + $0x98] sm:$0xff]
      %v246 = vld [vmem:[%s219 + $0xa0] sm:$0xff]
      %v247 = vld [vmem:[%s219 + $0xa8] sm:$0xff]
      %v248 = vld [vmem:[%s219 + $0xb0] sm:$0xff]
      %v249 = vld [vmem:[%s219 + $0xb8] sm:$0xff]
      %v250 = vld [vmem:[%s219 + $0xc0] sm:$0xff]
      %v251 = vld [vmem:[%s219 + $0xc8] sm:$0xff]
      %v252 = vld [vmem:[%s219 + $0xd0] sm:$0xff]
      %v253 = vld [vmem:[%s219 + $0xd8] sm:$0xff]
      %v254 = vld [vmem:[%s219 + $0xe0] sm:$0xff]
      %v255 = vld [vmem:[%s219 + $0xe8] sm:$0xff]
      %v256 = vld [vmem:[%s219 + $0xf0] sm:$0xff]
      %v257 = vld [vmem:[%s219 + $0xf8] sm:$0xff]
      %vm258 = vcmask 27648
      %259 = vst.msk [vmem:[#allocation2] sm:$0xf] %vm258, 0
      %260 = vst.msk [vmem:[#allocation2 + $0x4] sm:$0xf] %vm258, 0
      %261 = vst.msk [vmem:[#allocation2 + $0x8] sm:$0xf] %vm258, 0
      %s262 = scalar_lea.vmem [#allocation2], 204
      %263 = vst.msk [vmem:[%s262] sm:$0xf] %vm258, 0
      %264 = vst.msk [vmem:[%s262 + $0x4] sm:$0xf] %vm258, 0
      %265 = vst.msk [vmem:[%s262 + $0x8] sm:$0xf] %vm258, 0
      %v266 = vpack.c.bf16 %v227, %v226
      %v267 = vpack.c.bf16 %v229, %v228
      %v268 = vpack.c.bf16 %v231, %v230
      %v269 = vpack.c.bf16 %v233, %v232
      %v270 = vpack.c.bf16 %v235, %v234
      %v271 = vpack.c.bf16 %v237, %v236
      %v272 = vpack.c.bf16 %v239, %v238
      %v273 = vpack.c.bf16 %v241, %v240
      %v274 = vpack.c.bf16 %v243, %v242
      %v275 = vpack.c.bf16 %v245, %v244
      %v276 = vpack.c.bf16 %v247, %v246
      %v277 = vpack.c.bf16 %v249, %v248
      %v278 = vpack.c.bf16 %v251, %v250
      %v279 = vpack.c.bf16 %v253, %v252
      %v280 = vpack.c.bf16 %v255, %v254
      %v281 = vpack.c.bf16 %v257, %v256
      %v283 = vshrl.u32 %v266, 16
      %v285 = vrot.slane %v283, 7
      %v286 = vshll.u32 %v266, 16
      %v288 = vor.u32 %v285, %v286
      %v290 = vshrl.u32 %v267, 16
      %v292 = vrot.slane %v290, 7
      %v293 = vshll.u32 %v267, 16
      %v295 = vor.u32 %v292, %v293
      %v297 = vshrl.u32 %v268, 16
      %v299 = vrot.slane %v297, 7
      %v300 = vshll.u32 %v268, 16
      %v302 = vor.u32 %v299, %v300
      %v304 = vshrl.u32 %v269, 16
      %v306 = vrot.slane %v304, 7
      %v307 = vshll.u32 %v269, 16
      %v309 = vor.u32 %v306, %v307
      %v311 = vshrl.u32 %v270, 16
      %v313 = vrot.slane %v311, 7
      %v314 = vshll.u32 %v270, 16
      %v316 = vor.u32 %v313, %v314
      %v318 = vshrl.u32 %v271, 16
      %v320 = vrot.slane %v318, 7
      %v321 = vshll.u32 %v271, 16
      %v323 = vor.u32 %v320, %v321
      %v325 = vshrl.u32 %v272, 16
      %v327 = vrot.slane %v325, 7
      %v328 = vshll.u32 %v272, 16
      %v330 = vor.u32 %v327, %v328
      %v332 = vshrl.u32 %v273, 16
      %v334 = vrot.slane %v332, 7
      %v335 = vshll.u32 %v273, 16
      %v337 = vor.u32 %v334, %v335
      %v339 = vshrl.u32 %v274, 16
      %v341 = vrot.slane %v339, 7
      %v342 = vshll.u32 %v274, 16
      %v344 = vor.u32 %v341, %v342
      %v346 = vshrl.u32 %v275, 16
      %v348 = vrot.slane %v346, 7
      %v349 = vshll.u32 %v275, 16
      %v351 = vor.u32 %v348, %v349
      %v353 = vshrl.u32 %v276, 16
      %v355 = vrot.slane %v353, 7
      %v356 = vshll.u32 %v276, 16
      %v358 = vor.u32 %v355, %v356
      %v360 = vshrl.u32 %v277, 16
      %v362 = vrot.slane %v360, 7
      %v363 = vshll.u32 %v277, 16
      %v365 = vor.u32 %v362, %v363
      %v367 = vshrl.u32 %v278, 16
      %v369 = vrot.slane %v367, 7
      %v370 = vshll.u32 %v278, 16
      %v372 = vor.u32 %v369, %v370
      %v374 = vshrl.u32 %v279, 16
      %v376 = vrot.slane %v374, 7
      %v377 = vshll.u32 %v279, 16
      %v379 = vor.u32 %v376, %v377
      %v381 = vshrl.u32 %v280, 16
      %v383 = vrot.slane %v381, 7
      %v384 = vshll.u32 %v280, 16
      %v386 = vor.u32 %v383, %v384
      %v388 = vshrl.u32 %v281, 16
      %v390 = vrot.slane %v388, 7
      %v391 = vshll.u32 %v281, 16
      %v393 = vor.u32 %v390, %v391
      %vm426 = vcmask 1040384
      %vm427 = vsmask.f32 256
      %vm428 = vmand %vm426, %vm427
      %v429 = vsel %vm428, 0, %v288
      %v430 = vsel %vm428, 0, %v295
      %v431 = vsel %vm428, 0, %v302
      %v432 = vsel %vm428, 0, %v309
      %v433 = vsel %vm428, 0, %v316
      %v434 = vsel %vm428, 0, %v323
      %v435 = vsel %vm428, 0, %v330
      %v436 = vsel %vm428, 0, %v337
      %v437 = vsel %vm428, 0, %v344
      %v438 = vsel %vm428, 0, %v351
      %v439 = vsel %vm428, 0, %v358
      %v440 = vsel %vm428, 0, %v365
      %v441 = vsel %vm428, 0, %v372
      %v442 = vsel %vm428, 0, %v379
      %v443 = vsel %vm428, 0, %v386
      %v444 = vsel %vm428, 0, %v393
      %v445 = vsel %vm428, %v285, 0
      %v446 = vsel %vm428, %v292, 0
      %v447 = vsel %vm428, %v299, 0
      %v448 = vsel %vm428, %v306, 0
      %v449 = vsel %vm428, %v313, 0
      %v450 = vsel %vm428, %v320, 0
      %v451 = vsel %vm428, %v327, 0
      %v452 = vsel %vm428, %v334, 0
      %v453 = vsel %vm428, %v341, 0
      %v454 = vsel %vm428, %v348, 0
      %v455 = vsel %vm428, %v355, 0
      %v456 = vsel %vm428, %v362, 0
      %v457 = vsel %vm428, %v369, 0
      %v458 = vsel %vm428, %v376, 0
      %v459 = vsel %vm428, %v383, 0
      %v460 = vsel %vm428, %v390, 0
      %v493 = vunpack.c.l.b16 %v429
      %v494 = vunpack.c.h.b16 %v429
      %v495 = vunpack.c.l.b16 %v445
      %v496 = vunpack.c.l.b16 %v430
      %v497 = vunpack.c.h.b16 %v430
      %v498 = vunpack.c.l.b16 %v446
      %v499 = vunpack.c.l.b16 %v431
      %v500 = vunpack.c.h.b16 %v431
      %v501 = vunpack.c.l.b16 %v447
      %v502 = vunpack.c.l.b16 %v432
      %v503 = vunpack.c.h.b16 %v432
      %v504 = vunpack.c.l.b16 %v448
      %v505 = vunpack.c.l.b16 %v433
      %v506 = vunpack.c.h.b16 %v433
      %v507 = vunpack.c.l.b16 %v449
      %v508 = vunpack.c.l.b16 %v434
      %v509 = vunpack.c.h.b16 %v434
      %v510 = vunpack.c.l.b16 %v450
      %v511 = vunpack.c.l.b16 %v435
      %v512 = vunpack.c.h.b16 %v435
      %v513 = vunpack.c.l.b16 %v451
      %v514 = vunpack.c.l.b16 %v436
      %v515 = vunpack.c.h.b16 %v436
      %v516 = vunpack.c.l.b16 %v452
      %v517 = vunpack.c.l.b16 %v437
      %v518 = vunpack.c.h.b16 %v437
      %v519 = vunpack.c.l.b16 %v453
      %v520 = vunpack.c.l.b16 %v438
      %v521 = vunpack.c.h.b16 %v438
      %v522 = vunpack.c.l.b16 %v454
      %v523 = vunpack.c.l.b16 %v439
      %v524 = vunpack.c.h.b16 %v439
      %v525 = vunpack.c.l.b16 %v455
      %v526 = vunpack.c.l.b16 %v440
      %v527 = vunpack.c.h.b16 %v440
      %v528 = vunpack.c.l.b16 %v456
      %v529 = vunpack.c.l.b16 %v441
      %v530 = vunpack.c.h.b16 %v441
      %v531 = vunpack.c.l.b16 %v457
      %v532 = vunpack.c.l.b16 %v442
      %v533 = vunpack.c.h.b16 %v442
      %v534 = vunpack.c.l.b16 %v458
      %v535 = vunpack.c.l.b16 %v443
      %v536 = vunpack.c.h.b16 %v443
      %v537 = vunpack.c.l.b16 %v459
      %v538 = vunpack.c.l.b16 %v444
      %v539 = vunpack.c.h.b16 %v444
      %v540 = vunpack.c.l.b16 %v460
      %v541 = vpack.c.b16 %v493, %v493
      %v542 = vpack.c.b16 %v494, %v494
      %v543 = vpack.c.b16 %v495, %v495
      %v544 = vpack.c.b16 %v496, %v496
      %v545 = vpack.c.b16 %v497, %v497
      %v546 = vpack.c.b16 %v498, %v498
      %v547 = vpack.c.b16 %v499, %v499
      %v548 = vpack.c.b16 %v500, %v500
      %v549 = vpack.c.b16 %v501, %v501
      %v550 = vpack.c.b16 %v502, %v502
      %v551 = vpack.c.b16 %v503, %v503
      %v552 = vpack.c.b16 %v504, %v504
      %v553 = vpack.c.b16 %v505, %v505
      %v554 = vpack.c.b16 %v506, %v506
      %v555 = vpack.c.b16 %v507, %v507
      %v556 = vpack.c.b16 %v508, %v508
      %v557 = vpack.c.b16 %v509, %v509
      %v558 = vpack.c.b16 %v510, %v510
      %v559 = vpack.c.b16 %v511, %v511
      %v560 = vpack.c.b16 %v512, %v512
      %v561 = vpack.c.b16 %v513, %v513
      %v562 = vpack.c.b16 %v514, %v514
      %v563 = vpack.c.b16 %v515, %v515
      %v564 = vpack.c.b16 %v516, %v516
      %v565 = vpack.c.b16 %v517, %v517
      %v566 = vpack.c.b16 %v518, %v518
      %v567 = vpack.c.b16 %v519, %v519
      %v568 = vpack.c.b16 %v520, %v520
      %v569 = vpack.c.b16 %v521, %v521
      %v570 = vpack.c.b16 %v522, %v522
      %v571 = vpack.c.b16 %v523, %v523
      %v572 = vpack.c.b16 %v524, %v524
      %v573 = vpack.c.b16 %v525, %v525
      %v574 = vpack.c.b16 %v526, %v526
      %v575 = vpack.c.b16 %v527, %v527
      %v576 = vpack.c.b16 %v528, %v528
      %v577 = vpack.c.b16 %v529, %v529
      %v578 = vpack.c.b16 %v530, %v530
      %v579 = vpack.c.b16 %v531, %v531
      %v580 = vpack.c.b16 %v532, %v532
      %v581 = vpack.c.b16 %v533, %v533
      %v582 = vpack.c.b16 %v534, %v534
      %v583 = vpack.c.b16 %v535, %v535
      %v584 = vpack.c.b16 %v536, %v536
      %v585 = vpack.c.b16 %v537, %v537
      %v586 = vpack.c.b16 %v538, %v538
      %v587 = vpack.c.b16 %v539, %v539
      %v588 = vpack.c.b16 %v540, %v540
      %s637 = scalar_lea.vmem [#allocation2], 12
      %638 = vst.msk [vmem:[%s637] sm:$0xf] %vm258, %v541
      %639 = vst.msk [vmem:[%s637 + $0x4] sm:$0xf] %vm258, %v542
      %640 = vst.msk [vmem:[%s637 + $0x8] sm:$0xf] %vm258, %v543
      %641 = vst.msk [vmem:[%s637 + $0xc] sm:$0xf] %vm258, %v544
      %642 = vst.msk [vmem:[%s637 + $0x10] sm:$0xf] %vm258, %v545
      %643 = vst.msk [vmem:[%s637 + $0x14] sm:$0xf] %vm258, %v546
      %644 = vst.msk [vmem:[%s637 + $0x18] sm:$0xf] %vm258, %v547
      %645 = vst.msk [vmem:[%s637 + $0x1c] sm:$0xf] %vm258, %v548
      %646 = vst.msk [vmem:[%s637 + $0x20] sm:$0xf] %vm258, %v549
      %647 = vst.msk [vmem:[%s637 + $0x24] sm:$0xf] %vm258, %v550
      %648 = vst.msk [vmem:[%s637 + $0x28] sm:$0xf] %vm258, %v551
      %649 = vst.msk [vmem:[%s637 + $0x2c] sm:$0xf] %vm258, %v552
      %650 = vst.msk [vmem:[%s637 + $0x30] sm:$0xf] %vm258, %v553
      %651 = vst.msk [vmem:[%s637 + $0x34] sm:$0xf] %vm258, %v554
      %652 = vst.msk [vmem:[%s637 + $0x38] sm:$0xf] %vm258, %v555
      %653 = vst.msk [vmem:[%s637 + $0x3c] sm:$0xf] %vm258, %v556
      %654 = vst.msk [vmem:[%s637 + $0x40] sm:$0xf] %vm258, %v557
      %655 = vst.msk [vmem:[%s637 + $0x44] sm:$0xf] %vm258, %v558
      %656 = vst.msk [vmem:[%s637 + $0x48] sm:$0xf] %vm258, %v559
      %657 = vst.msk [vmem:[%s637 + $0x4c] sm:$0xf] %vm258, %v560
      %658 = vst.msk [vmem:[%s637 + $0x50] sm:$0xf] %vm258, %v561
      %659 = vst.msk [vmem:[%s637 + $0x54] sm:$0xf] %vm258, %v562
      %660 = vst.msk [vmem:[%s637 + $0x58] sm:$0xf] %vm258, %v563
      %661 = vst.msk [vmem:[%s637 + $0x5c] sm:$0xf] %vm258, %v564
      %662 = vst.msk [vmem:[%s637 + $0x60] sm:$0xf] %vm258, %v565
      %663 = vst.msk [vmem:[%s637 + $0x64] sm:$0xf] %vm258, %v566
      %664 = vst.msk [vmem:[%s637 + $0x68] sm:$0xf] %vm258, %v567
      %665 = vst.msk [vmem:[%s637 + $0x6c] sm:$0xf] %vm258, %v568
      %666 = vst.msk [vmem:[%s637 + $0x70] sm:$0xf] %vm258, %v569
      %667 = vst.msk [vmem:[%s637 + $0x74] sm:$0xf] %vm258, %v570
      %668 = vst.msk [vmem:[%s637 + $0x78] sm:$0xf] %vm258, %v571
      %669 = vst.msk [vmem:[%s637 + $0x7c] sm:$0xf] %vm258, %v572
      %670 = vst.msk [vmem:[%s637 + $0x80] sm:$0xf] %vm258, %v573
      %671 = vst.msk [vmem:[%s637 + $0x84] sm:$0xf] %vm258, %v574
      %672 = vst.msk [vmem:[%s637 + $0x88] sm:$0xf] %vm258, %v575
      %673 = vst.msk [vmem:[%s637 + $0x8c] sm:$0xf] %vm258, %v576
      %674 = vst.msk [vmem:[%s637 + $0x90] sm:$0xf] %vm258, %v577
      %675 = vst.msk [vmem:[%s637 + $0x94] sm:$0xf] %vm258, %v578
      %676 = vst.msk [vmem:[%s637 + $0x98] sm:$0xf] %vm258, %v579
      %677 = vst.msk [vmem:[%s637 + $0x9c] sm:$0xf] %vm258, %v580
      %678 = vst.msk [vmem:[%s637 + $0xa0] sm:$0xf] %vm258, %v581
      %679 = vst.msk [vmem:[%s637 + $0xa4] sm:$0xf] %vm258, %v582
      %680 = vst.msk [vmem:[%s637 + $0xa8] sm:$0xf] %vm258, %v583
      %681 = vst.msk [vmem:[%s637 + $0xac] sm:$0xf] %vm258, %v584
      %682 = vst.msk [vmem:[%s637 + $0xb0] sm:$0xf] %vm258, %v585
      %683 = vst.msk [vmem:[%s637 + $0xb4] sm:$0xf] %vm258, %v586
      %684 = vst.msk [vmem:[%s637 + $0xb8] sm:$0xf] %vm258, %v587
      %685 = vst.msk [vmem:[%s637 + $0xbc] sm:$0xf] %vm258, %v588
      %v686 = vld [vmem:[#allocation2] sm:$0xf]
      %v687 = vld [vmem:[#allocation2 + $0x4] sm:$0xf]
      %v688 = vld [vmem:[#allocation2 + $0x8] sm:$0xf]
      %v689 = vld [vmem:[#allocation2 + $0xc] sm:$0xf]
      %v690 = vld [vmem:[#allocation2 + $0x10] sm:$0xf]
      %v691 = vld [vmem:[#allocation2 + $0x14] sm:$0xf]
      %v692 = vld [vmem:[#allocation2 + $0x18] sm:$0xf]
      %v693 = vld [vmem:[#allocation2 + $0x1c] sm:$0xf]
      %v694 = vld [vmem:[#allocation2 + $0x20] sm:$0xf]
      %v695 = vld [vmem:[#allocation2 + $0x24] sm:$0xf]
      %v696 = vld [vmem:[#allocation2 + $0x28] sm:$0xf]
      %v697 = vld [vmem:[#allocation2 + $0x2c] sm:$0xf]
      %v698 = vld [vmem:[#allocation2 + $0x30] sm:$0xf]
      %v699 = vld [vmem:[#allocation2 + $0x34] sm:$0xf]
      %v700 = vld [vmem:[#allocation2 + $0x38] sm:$0xf]
      %v701 = vld [vmem:[#allocation2 + $0x3c] sm:$0xf]
      %v702 = vld [vmem:[#allocation2 + $0x40] sm:$0xf]
      %v703 = vld [vmem:[#allocation2 + $0x44] sm:$0xf]
      %v704 = vld [vmem:[#allocation2 + $0x48] sm:$0xf]
      %v705 = vld [vmem:[#allocation2 + $0x4c] sm:$0xf]
      %v706 = vld [vmem:[#allocation2 + $0x50] sm:$0xf]
      %v707 = vld [vmem:[#allocation2 + $0x54] sm:$0xf]
      %v708 = vld [vmem:[#allocation2 + $0x58] sm:$0xf]
      %v709 = vld [vmem:[#allocation2 + $0x5c] sm:$0xf]
      %v710 = vld [vmem:[#allocation2 + $0x60] sm:$0xf]
      %v711 = vld [vmem:[#allocation2 + $0x64] sm:$0xf]
      %v712 = vld [vmem:[#allocation2 + $0x68] sm:$0xf]
      %v713 = vld [vmem:[#allocation2 + $0x6c] sm:$0xf]
      %v714 = vld [vmem:[#allocation2 + $0x70] sm:$0xf]
      %v715 = vld [vmem:[#allocation2 + $0x74] sm:$0xf]
      %v716 = vld [vmem:[#allocation2 + $0x78] sm:$0xf]
      %v717 = vld [vmem:[#allocation2 + $0x7c] sm:$0xf]
      %v718 = vld [vmem:[#allocation2 + $0x80] sm:$0xf]
      %v719 = vld [vmem:[#allocation2 + $0x84] sm:$0xf]
      %v720 = vld [vmem:[#allocation2 + $0x88] sm:$0xf]
      %v721 = vld [vmem:[#allocation2 + $0x8c] sm:$0xf]
      %v722 = vld [vmem:[#allocation2 + $0x90] sm:$0xf]
      %v723 = vld [vmem:[#allocation2 + $0x94] sm:$0xf]
      %v724 = vld [vmem:[#allocation2 + $0x98] sm:$0xf]
      %v725 = vld [vmem:[#allocation2 + $0x9c] sm:$0xf]
      %v726 = vld [vmem:[#allocation2 + $0xa0] sm:$0xf]
      %v727 = vld [vmem:[#allocation2 + $0xa4] sm:$0xf]
      %v728 = vld [vmem:[#allocation2 + $0xa8] sm:$0xf]
      %v729 = vld [vmem:[#allocation2 + $0xac] sm:$0xf]
      %v730 = vld [vmem:[#allocation2 + $0xb0] sm:$0xf]
      %v731 = vld [vmem:[#allocation2 + $0xb4] sm:$0xf]
      %v732 = vld [vmem:[#allocation2 + $0xb8] sm:$0xf]
      %v733 = vld [vmem:[#allocation2 + $0xbc] sm:$0xf]
      %v734 = vld [vmem:[#allocation2 + $0xc0] sm:$0xf]
      %v735 = vld [vmem:[#allocation2 + $0xc4] sm:$0xf]
      %v736 = vld [vmem:[#allocation2 + $0xc8] sm:$0xf]
      %v737 = vld [vmem:[#allocation2 + $0xcc] sm:$0xf]
      %v738 = vld [vmem:[#allocation2 + $0xd0] sm:$0xf]
      %v739 = vld [vmem:[#allocation2 + $0xd4] sm:$0xf]
      %vm740 = vsmask.f32 3328
      %vm741 = vsmask.f32 7440
      %vm742 = vmor %vm740, %vm741
      %v744 = vshrl.u32 %v686, 16
      %v746 = vrot.slane %v744, 4
      %v747 = vshll.u32 %v686, 16
      %v749 = vrot.slane %v747, 5
      %v750 = vor.u32 %v746, %v749
      %v751 = vrot.slane %v750, 4
      %v753 = vshll.u32 %v687, 16
      %v755 = vrot.slane %v753, 5
      %v756 = vsel %vm742, %v751, %v755
      %v757 = vshrl.u32 %v687, 16
      %v759 = vrot.slane %v757, 4
      %v760 = vor.u32 %v759, %v755
      %v761 = vrot.slane %v760, 4
      %v763 = vshll.u32 %v688, 16
      %v765 = vrot.slane %v763, 5
      %v766 = vsel %vm742, %v761, %v765
      %v768 = vshrl.u32 %v689, 16
      %v770 = vrot.slane %v768, 4
      %v771 = vshll.u32 %v689, 16
      %v773 = vrot.slane %v771, 5
      %v774 = vor.u32 %v770, %v773
      %v775 = vrot.slane %v774, 4
      %v777 = vshll.u32 %v690, 16
      %v779 = vrot.slane %v777, 5
      %v780 = vsel %vm742, %v775, %v779
      %v781 = vshrl.u32 %v690, 16
      %v783 = vrot.slane %v781, 4
      %v784 = vor.u32 %v783, %v779
      %v785 = vrot.slane %v784, 4
      %v787 = vshll.u32 %v691, 16
      %v789 = vrot.slane %v787, 5
      %v790 = vsel %vm742, %v785, %v789
      %v792 = vshrl.u32 %v692, 16
      %v794 = vrot.slane %v792, 4
      %v795 = vshll.u32 %v692, 16
      %v797 = vrot.slane %v795, 5
      %v798 = vor.u32 %v794, %v797
      %v799 = vrot.slane %v798, 4
      %v801 = vshll.u32 %v693, 16
      %v803 = vrot.slane %v801, 5
      %v804 = vsel %vm742, %v799, %v803
      %v805 = vshrl.u32 %v693, 16
      %v807 = vrot.slane %v805, 4
      %v808 = vor.u32 %v807, %v803
      %v809 = vrot.slane %v808, 4
      %v811 = vshll.u32 %v694, 16
      %v813 = vrot.slane %v811, 5
      %v814 = vsel %vm742, %v809, %v813
      %v816 = vshrl.u32 %v695, 16
      %v818 = vrot.slane %v816, 4
      %v819 = vshll.u32 %v695, 16
      %v821 = vrot.slane %v819, 5
      %v822 = vor.u32 %v818, %v821
      %v823 = vrot.slane %v822, 4
      %v825 = vshll.u32 %v696, 16
      %v827 = vrot.slane %v825, 5
      %v828 = vsel %vm742, %v823, %v827
      %v829 = vshrl.u32 %v696, 16
      %v831 = vrot.slane %v829, 4
      %v832 = vor.u32 %v831, %v827
      %v833 = vrot.slane %v832, 4
      %v835 = vshll.u32 %v697, 16
      %v837 = vrot.slane %v835, 5
      %v838 = vsel %vm742, %v833, %v837
      %v840 = vshrl.u32 %v698, 16
      %v842 = vrot.slane %v840, 4
      %v843 = vshll.u32 %v698, 16
      %v845 = vrot.slane %v843, 5
      %v846 = vor.u32 %v842, %v845
      %v847 = vrot.slane %v846, 4
      %v849 = vshll.u32 %v699, 16
      %v851 = vrot.slane %v849, 5
      %v852 = vsel %vm742, %v847, %v851
      %v853 = vshrl.u32 %v699, 16
      %v855 = vrot.slane %v853, 4
      %v856 = vor.u32 %v855, %v851
      %v857 = vrot.slane %v856, 4
      %v859 = vshll.u32 %v700, 16
      %v861 = vrot.slane %v859, 5
      %v862 = vsel %vm742, %v857, %v861
      %v864 = vshrl.u32 %v701, 16
      %v866 = vrot.slane %v864, 4
      %v867 = vshll.u32 %v701, 16
      %v869 = vrot.slane %v867, 5
      %v870 = vor.u32 %v866, %v869
      %v871 = vrot.slane %v870, 4
      %v873 = vshll.u32 %v702, 16
      %v875 = vrot.slane %v873, 5
      %v876 = vsel %vm742, %v871, %v875
      %v877 = vshrl.u32 %v702, 16
      %v879 = vrot.slane %v877, 4
      %v880 = vor.u32 %v879, %v875
      %v881 = vrot.slane %v880, 4
      %v883 = vshll.u32 %v703, 16
      %v885 = vrot.slane %v883, 5
      %v886 = vsel %vm742, %v881, %v885
      %v888 = vshrl.u32 %v704, 16
      %v890 = vrot.slane %v888, 4
      %v891 = vshll.u32 %v704, 16
      %v893 = vrot.slane %v891, 5
      %v894 = vor.u32 %v890, %v893
      %v895 = vrot.slane %v894, 4
      %v897 = vshll.u32 %v705, 16
      %v899 = vrot.slane %v897, 5
      %v900 = vsel %vm742, %v895, %v899
      %v901 = vshrl.u32 %v705, 16
      %v903 = vrot.slane %v901, 4
      %v904 = vor.u32 %v903, %v899
      %v905 = vrot.slane %v904, 4
      %v907 = vshll.u32 %v706, 16
      %v909 = vrot.slane %v907, 5
      %v910 = vsel %vm742, %v905, %v909
      %v912 = vshrl.u32 %v707, 16
      %v914 = vrot.slane %v912, 4
      %v915 = vshll.u32 %v707, 16
      %v917 = vrot.slane %v915, 5
      %v918 = vor.u32 %v914, %v917
      %v919 = vrot.slane %v918, 4
      %v921 = vshll.u32 %v708, 16
      %v923 = vrot.slane %v921, 5
      %v924 = vsel %vm742, %v919, %v923
      %v925 = vshrl.u32 %v708, 16
      %v927 = vrot.slane %v925, 4
      %v928 = vor.u32 %v927, %v923
      %v929 = vrot.slane %v928, 4
      %v931 = vshll.u32 %v709, 16
      %v933 = vrot.slane %v931, 5
      %v934 = vsel %vm742, %v929, %v933
      %v936 = vshrl.u32 %v710, 16
      %v938 = vrot.slane %v936, 4
      %v939 = vshll.u32 %v710, 16
      %v941 = vrot.slane %v939, 5
      %v942 = vor.u32 %v938, %v941
      %v943 = vrot.slane %v942, 4
      %v945 = vshll.u32 %v711, 16
      %v947 = vrot.slane %v945, 5
      %v948 = vsel %vm742, %v943, %v947
      %v949 = vshrl.u32 %v711, 16
      %v951 = vrot.slane %v949, 4
      %v952 = vor.u32 %v951, %v947
      %v953 = vrot.slane %v952, 4
      %v955 = vshll.u32 %v712, 16
      %v957 = vrot.slane %v955, 5
      %v958 = vsel %vm742, %v953, %v957
      %v960 = vshrl.u32 %v713, 16
      %v962 = vrot.slane %v960, 4
      %v963 = vshll.u32 %v713, 16
      %v965 = vrot.slane %v963, 5
      %v966 = vor.u32 %v962, %v965
      %v967 = vrot.slane %v966, 4
      %v969 = vshll.u32 %v714, 16
      %v971 = vrot.slane %v969, 5
      %v972 = vsel %vm742, %v967, %v971
      %v973 = vshrl.u32 %v714, 16
      %v975 = vrot.slane %v973, 4
      %v976 = vor.u32 %v975, %v971
      %v977 = vrot.slane %v976, 4
      %v979 = vshll.u32 %v715, 16
      %v981 = vrot.slane %v979, 5
      %v982 = vsel %vm742, %v977, %v981
      %v984 = vshrl.u32 %v716, 16
      %v986 = vrot.slane %v984, 4
      %v987 = vshll.u32 %v716, 16
      %v989 = vrot.slane %v987, 5
      %v990 = vor.u32 %v986, %v989
      %v991 = vrot.slane %v990, 4
      %v993 = vshll.u32 %v717, 16
      %v995 = vrot.slane %v993, 5
      %v996 = vsel %vm742, %v991, %v995
      %v997 = vshrl.u32 %v717, 16
      %v999 = vrot.slane %v997, 4
      %v1000 = vor.u32 %v999, %v995
      %v1001 = vrot.slane %v1000, 4
      %v1003 = vshll.u32 %v718, 16
      %v1005 = vrot.slane %v1003, 5
      %v1006 = vsel %vm742, %v1001, %v1005
      %v1008 = vshrl.u32 %v719, 16
      %v1010 = vrot.slane %v1008, 4
      %v1011 = vshll.u32 %v719, 16
      %v1013 = vrot.slane %v1011, 5
      %v1014 = vor.u32 %v1010, %v1013
      %v1015 = vrot.slane %v1014, 4
      %v1017 = vshll.u32 %v720, 16
      %v1019 = vrot.slane %v1017, 5
      %v1020 = vsel %vm742, %v1015, %v1019
      %v1021 = vshrl.u32 %v720, 16
      %v1023 = vrot.slane %v1021, 4
      %v1024 = vor.u32 %v1023, %v1019
      %v1025 = vrot.slane %v1024, 4
      %v1027 = vshll.u32 %v721, 16
      %v1029 = vrot.slane %v1027, 5
      %v1030 = vsel %vm742, %v1025, %v1029
      %v1032 = vshrl.u32 %v722, 16
      %v1034 = vrot.slane %v1032, 4
      %v1035 = vshll.u32 %v722, 16
      %v1037 = vrot.slane %v1035, 5
      %v1038 = vor.u32 %v1034, %v1037
      %v1039 = vrot.slane %v1038, 4
      %v1041 = vshll.u32 %v723, 16
      %v1043 = vrot.slane %v1041, 5
      %v1044 = vsel %vm742, %v1039, %v1043
      %v1045 = vshrl.u32 %v723, 16
      %v1047 = vrot.slane %v1045, 4
      %v1048 = vor.u32 %v1047, %v1043
      %v1049 = vrot.slane %v1048, 4
      %v1051 = vshll.u32 %v724, 16
      %v1053 = vrot.slane %v1051, 5
      %v1054 = vsel %vm742, %v1049, %v1053
      %v1056 = vshrl.u32 %v725, 16
      %v1058 = vrot.slane %v1056, 4
      %v1059 = vshll.u32 %v725, 16
      %v1061 = vrot.slane %v1059, 5
      %v1062 = vor.u32 %v1058, %v1061
      %v1063 = vrot.slane %v1062, 4
      %v1065 = vshll.u32 %v726, 16
      %v1067 = vrot.slane %v1065, 5
      %v1068 = vsel %vm742, %v1063, %v1067
      %v1069 = vshrl.u32 %v726, 16
      %v1071 = vrot.slane %v1069, 4
      %v1072 = vor.u32 %v1071, %v1067
      %v1073 = vrot.slane %v1072, 4
      %v1075 = vshll.u32 %v727, 16
      %v1077 = vrot.slane %v1075, 5
      %v1078 = vsel %vm742, %v1073, %v1077
      %v1080 = vshrl.u32 %v728, 16
      %v1082 = vrot.slane %v1080, 4
      %v1083 = vshll.u32 %v728, 16
      %v1085 = vrot.slane %v1083, 5
      %v1086 = vor.u32 %v1082, %v1085
      %v1087 = vrot.slane %v1086, 4
      %v1089 = vshll.u32 %v729, 16
      %v1091 = vrot.slane %v1089, 5
      %v1092 = vsel %vm742, %v1087, %v1091
      %v1093 = vshrl.u32 %v729, 16
      %v1095 = vrot.slane %v1093, 4
      %v1096 = vor.u32 %v1095, %v1091
      %v1097 = vrot.slane %v1096, 4
      %v1099 = vshll.u32 %v730, 16
      %v1101 = vrot.slane %v1099, 5
      %v1102 = vsel %vm742, %v1097, %v1101
      %v1104 = vshrl.u32 %v731, 16
      %v1106 = vrot.slane %v1104, 4
      %v1107 = vshll.u32 %v731, 16
      %v1109 = vrot.slane %v1107, 5
      %v1110 = vor.u32 %v1106, %v1109
      %v1111 = vrot.slane %v1110, 4
      %v1113 = vshll.u32 %v732, 16
      %v1115 = vrot.slane %v1113, 5
      %v1116 = vsel %vm742, %v1111, %v1115
      %v1117 = vshrl.u32 %v732, 16
      %v1119 = vrot.slane %v1117, 4
      %v1120 = vor.u32 %v1119, %v1115
      %v1121 = vrot.slane %v1120, 4
      %v1123 = vshll.u32 %v733, 16
      %v1125 = vrot.slane %v1123, 5
      %v1126 = vsel %vm742, %v1121, %v1125
      %v1128 = vshrl.u32 %v734, 16
      %v1130 = vrot.slane %v1128, 4
      %v1131 = vshll.u32 %v734, 16
      %v1133 = vrot.slane %v1131, 5
      %v1134 = vor.u32 %v1130, %v1133
      %v1135 = vrot.slane %v1134, 4
      %v1137 = vshll.u32 %v735, 16
      %v1139 = vrot.slane %v1137, 5
      %v1140 = vsel %vm742, %v1135, %v1139
      %v1141 = vshrl.u32 %v735, 16
      %v1143 = vrot.slane %v1141, 4
      %v1144 = vor.u32 %v1143, %v1139
      %v1145 = vrot.slane %v1144, 4
      %v1147 = vshll.u32 %v736, 16
      %v1149 = vrot.slane %v1147, 5
      %v1150 = vsel %vm742, %v1145, %v1149
      %v1152 = vshrl.u32 %v737, 16
      %v1154 = vrot.slane %v1152, 4
      %v1155 = vshll.u32 %v737, 16
      %v1157 = vrot.slane %v1155, 5
      %v1158 = vor.u32 %v1154, %v1157
      %v1159 = vrot.slane %v1158, 4
      %v1161 = vshll.u32 %v738, 16
      %v1163 = vrot.slane %v1161, 5
      %v1164 = vsel %vm742, %v1159, %v1163
      %v1165 = vshrl.u32 %v738, 16
      %v1167 = vrot.slane %v1165, 4
      %v1168 = vor.u32 %v1167, %v1163
      %v1169 = vrot.slane %v1168, 4
      %v1171 = vshll.u32 %v739, 16
      %v1173 = vrot.slane %v1171, 5
      %v1174 = vsel %vm742, %v1169, %v1173
      %vm1229 = vcmask 1042432
      %vm1230 = vcmask 1046532
      %vm1231 = vmor %vm1229, %vm1230
      %v1232 = vrot.slane %v686, 5
      %v1233 = vrot.slane %v1232, 4
      %v1234 = vrot.slane %v687, 5
      %v1235 = vsel %vm1231, %v1233, %v1234
      %v1236 = vrot.slane %v1234, 4
      %v1237 = vrot.slane %v688, 5
      %v1238 = vsel %vm1231, %v1236, %v1237
      %v1239 = vrot.slane %v689, 5
      %v1240 = vrot.slane %v1239, 4
      %v1241 = vrot.slane %v690, 5
      %v1242 = vsel %vm1231, %v1240, %v1241
      %v1243 = vrot.slane %v1241, 4
      %v1244 = vrot.slane %v691, 5
      %v1245 = vsel %vm1231, %v1243, %v1244
      %v1246 = vrot.slane %v692, 5
      %v1247 = vrot.slane %v1246, 4
      %v1248 = vrot.slane %v693, 5
      %v1249 = vsel %vm1231, %v1247, %v1248
      %v1250 = vrot.slane %v1248, 4
      %v1251 = vrot.slane %v694, 5
      %v1252 = vsel %vm1231, %v1250, %v1251
      %v1253 = vrot.slane %v695, 5
      %v1254 = vrot.slane %v1253, 4
      %v1255 = vrot.slane %v696, 5
      %v1256 = vsel %vm1231, %v1254, %v1255
      %v1257 = vrot.slane %v1255, 4
      %v1258 = vrot.slane %v697, 5
      %v1259 = vsel %vm1231, %v1257, %v1258
      %v1260 = vrot.slane %v698, 5
      %v1261 = vrot.slane %v1260, 4
      %v1262 = vrot.slane %v699, 5
      %v1263 = vsel %vm1231, %v1261, %v1262
      %v1264 = vrot.slane %v1262, 4
      %v1265 = vrot.slane %v700, 5
      %v1266 = vsel %vm1231, %v1264, %v1265
      %v1267 = vrot.slane %v701, 5
      %v1268 = vrot.slane %v1267, 4
      %v1269 = vrot.slane %v702, 5
      %v1270 = vsel %vm1231, %v1268, %v1269
      %v1271 = vrot.slane %v1269, 4
      %v1272 = vrot.slane %v703, 5
      %v1273 = vsel %vm1231, %v1271, %v1272
      %v1274 = vrot.slane %v704, 5
      %v1275 = vrot.slane %v1274, 4
      %v1276 = vrot.slane %v705, 5
      %v1277 = vsel %vm1231, %v1275, %v1276
      %v1278 = vrot.slane %v1276, 4
      %v1279 = vrot.slane %v706, 5
      %v1280 = vsel %vm1231, %v1278, %v1279
      %v1281 = vrot.slane %v707, 5
      %v1282 = vrot.slane %v1281, 4
      %v1283 = vrot.slane %v708, 5
      %v1284 = vsel %vm1231, %v1282, %v1283
      %v1285 = vrot.slane %v1283, 4
      %v1286 = vrot.slane %v709, 5
      %v1287 = vsel %vm1231, %v1285, %v1286
      %v1288 = vrot.slane %v710, 5
      %v1289 = vrot.slane %v1288, 4
      %v1290 = vrot.slane %v711, 5
      %v1291 = vsel %vm1231, %v1289, %v1290
      %v1292 = vrot.slane %v1290, 4
      %v1293 = vrot.slane %v712, 5
      %v1294 = vsel %vm1231, %v1292, %v1293
      %v1295 = vrot.slane %v713, 5
      %v1296 = vrot.slane %v1295, 4
      %v1297 = vrot.slane %v714, 5
      %v1298 = vsel %vm1231, %v1296, %v1297
      %v1299 = vrot.slane %v1297, 4
      %v1300 = vrot.slane %v715, 5
      %v1301 = vsel %vm1231, %v1299, %v1300
      %v1302 = vrot.slane %v716, 5
      %v1303 = vrot.slane %v1302, 4
      %v1304 = vrot.slane %v717, 5
      %v1305 = vsel %vm1231, %v1303, %v1304
      %v1306 = vrot.slane %v1304, 4
      %v1307 = vrot.slane %v718, 5
      %v1308 = vsel %vm1231, %v1306, %v1307
      %v1309 = vrot.slane %v719, 5
      %v1310 = vrot.slane %v1309, 4
      %v1311 = vrot.slane %v720, 5
      %v1312 = vsel %vm1231, %v1310, %v1311
      %v1313 = vrot.slane %v1311, 4
      %v1314 = vrot.slane %v721, 5
      %v1315 = vsel %vm1231, %v1313, %v1314
      %v1316 = vrot.slane %v722, 5
      %v1317 = vrot.slane %v1316, 4
      %v1318 = vrot.slane %v723, 5
      %v1319 = vsel %vm1231, %v1317, %v1318
      %v1320 = vrot.slane %v1318, 4
      %v1321 = vrot.slane %v724, 5
      %v1322 = vsel %vm1231, %v1320, %v1321
      %v1323 = vrot.slane %v725, 5
      %v1324 = vrot.slane %v1323, 4
      %v1325 = vrot.slane %v726, 5
      %v1326 = vsel %vm1231, %v1324, %v1325
      %v1327 = vrot.slane %v1325, 4
      %v1328 = vrot.slane %v727, 5
      %v1329 = vsel %vm1231, %v1327, %v1328
      %v1330 = vrot.slane %v728, 5
      %v1331 = vrot.slane %v1330, 4
      %v1332 = vrot.slane %v729, 5
      %v1333 = vsel %vm1231, %v1331, %v1332
      %v1334 = vrot.slane %v1332, 4
      %v1335 = vrot.slane %v730, 5
      %v1336 = vsel %vm1231, %v1334, %v1335
      %v1337 = vrot.slane %v731, 5
      %v1338 = vrot.slane %v1337, 4
      %v1339 = vrot.slane %v732, 5
      %v1340 = vsel %vm1231, %v1338, %v1339
      %v1341 = vrot.slane %v1339, 4
      %v1342 = vrot.slane %v733, 5
      %v1343 = vsel %vm1231, %v1341, %v1342
      %v1344 = vrot.slane %v734, 5
      %v1345 = vrot.slane %v1344, 4
      %v1346 = vrot.slane %v735, 5
      %v1347 = vsel %vm1231, %v1345, %v1346
      %v1348 = vrot.slane %v1346, 4
      %v1349 = vrot.slane %v736, 5
      %v1350 = vsel %vm1231, %v1348, %v1349
      %v1351 = vrot.slane %v737, 5
      %v1352 = vrot.slane %v1351, 4
      %v1353 = vrot.slane %v738, 5
      %v1354 = vsel %vm1231, %v1352, %v1353
      %v1355 = vrot.slane %v1353, 4
      %v1356 = vrot.slane %v739, 5
      %v1357 = vsel %vm1231, %v1355, %v1356
      %v1358 = vunpack.c.l.b16 %v686
      %v1359 = vunpack.c.l.b16 %v687
      %v1360 = vunpack.c.l.b16 %v689
      %v1361 = vunpack.c.l.b16 %v690
      %v1362 = vunpack.c.l.b16 %v692
      %v1363 = vunpack.c.l.b16 %v693
      %v1364 = vunpack.c.l.b16 %v695
      %v1365 = vunpack.c.l.b16 %v696
      %v1366 = vunpack.c.l.b16 %v698
      %v1367 = vunpack.c.l.b16 %v699
      %v1368 = vunpack.c.l.b16 %v701
      %v1369 = vunpack.c.l.b16 %v702
      %v1370 = vunpack.c.l.b16 %v704
      %v1371 = vunpack.c.l.b16 %v705
      %v1372 = vunpack.c.l.b16 %v707
      %v1373 = vunpack.c.l.b16 %v708
      %v1374 = vunpack.c.l.b16 %v710
      %v1375 = vunpack.c.l.b16 %v711
      %v1376 = vunpack.c.l.b16 %v713
      %v1377 = vunpack.c.l.b16 %v714
      %v1378 = vunpack.c.l.b16 %v716
      %v1379 = vunpack.c.l.b16 %v717
      %v1380 = vunpack.c.l.b16 %v719
      %v1381 = vunpack.c.l.b16 %v720
      %v1382 = vunpack.c.l.b16 %v722
      %v1383 = vunpack.c.l.b16 %v723
      %v1384 = vunpack.c.l.b16 %v725
      %v1385 = vunpack.c.l.b16 %v726
      %v1386 = vunpack.c.l.b16 %v728
      %v1387 = vunpack.c.l.b16 %v729
      %v1388 = vunpack.c.l.b16 %v731
      %v1389 = vunpack.c.l.b16 %v732
      %v1390 = vunpack.c.l.b16 %v734
      %v1391 = vunpack.c.l.b16 %v735
      %v1392 = vunpack.c.l.b16 %v737
      %v1393 = vunpack.c.l.b16 %v738
      %v1394 = vpack.c.b16 %v1359, %v1358
      %v1395 = vpack.c.b16 %v1361, %v1360
      %v1396 = vpack.c.b16 %v1363, %v1362
      %v1397 = vpack.c.b16 %v1365, %v1364
      %v1398 = vpack.c.b16 %v1367, %v1366
      %v1399 = vpack.c.b16 %v1369, %v1368
      %v1400 = vpack.c.b16 %v1371, %v1370
      %v1401 = vpack.c.b16 %v1373, %v1372
      %v1402 = vpack.c.b16 %v1375, %v1374
      %v1403 = vpack.c.b16 %v1377, %v1376
      %v1404 = vpack.c.b16 %v1379, %v1378
      %v1405 = vpack.c.b16 %v1381, %v1380
      %v1406 = vpack.c.b16 %v1383, %v1382
      %v1407 = vpack.c.b16 %v1385, %v1384
      %v1408 = vpack.c.b16 %v1387, %v1386
      %v1409 = vpack.c.b16 %v1389, %v1388
      %v1410 = vpack.c.b16 %v1391, %v1390
      %v1411 = vpack.c.b16 %v1393, %v1392
      %v1412 = vunpack.c.l.b16 %v756
      %v1413 = vunpack.c.l.b16 %v766
      %v1414 = vunpack.c.l.b16 %v780
      %v1415 = vunpack.c.l.b16 %v790
      %v1416 = vunpack.c.l.b16 %v804
      %v1417 = vunpack.c.l.b16 %v814
      %v1418 = vunpack.c.l.b16 %v828
      %v1419 = vunpack.c.l.b16 %v838
      %v1420 = vunpack.c.l.b16 %v852
      %v1421 = vunpack.c.l.b16 %v862
      %v1422 = vunpack.c.l.b16 %v876
      %v1423 = vunpack.c.l.b16 %v886
      %v1424 = vunpack.c.l.b16 %v900
      %v1425 = vunpack.c.l.b16 %v910
      %v1426 = vunpack.c.l.b16 %v924
      %v1427 = vunpack.c.l.b16 %v934
      %v1428 = vunpack.c.l.b16 %v948
      %v1429 = vunpack.c.l.b16 %v958
      %v1430 = vunpack.c.l.b16 %v972
      %v1431 = vunpack.c.l.b16 %v982
      %v1432 = vunpack.c.l.b16 %v996
      %v1433 = vunpack.c.l.b16 %v1006
      %v1434 = vunpack.c.l.b16 %v1020
      %v1435 = vunpack.c.l.b16 %v1030
      %v1436 = vunpack.c.l.b16 %v1044
      %v1437 = vunpack.c.l.b16 %v1054
      %v1438 = vunpack.c.l.b16 %v1068
      %v1439 = vunpack.c.l.b16 %v1078
      %v1440 = vunpack.c.l.b16 %v1092
      %v1441 = vunpack.c.l.b16 %v1102
      %v1442 = vunpack.c.l.b16 %v1116
      %v1443 = vunpack.c.l.b16 %v1126
      %v1444 = vunpack.c.l.b16 %v1140
      %v1445 = vunpack.c.l.b16 %v1150
      %v1446 = vunpack.c.l.b16 %v1164
      %v1447 = vunpack.c.l.b16 %v1174
      %v1448 = vpack.c.b16 %v1413, %v1412
      %v1449 = vpack.c.b16 %v1415, %v1414
      %v1450 = vpack.c.b16 %v1417, %v1416
      %v1451 = vpack.c.b16 %v1419, %v1418
      %v1452 = vpack.c.b16 %v1421, %v1420
      %v1453 = vpack.c.b16 %v1423, %v1422
      %v1454 = vpack.c.b16 %v1425, %v1424
      %v1455 = vpack.c.b16 %v1427, %v1426
      %v1456 = vpack.c.b16 %v1429, %v1428
      %v1457 = vpack.c.b16 %v1431, %v1430
      %v1458 = vpack.c.b16 %v1433, %v1432
      %v1459 = vpack.c.b16 %v1435, %v1434
      %v1460 = vpack.c.b16 %v1437, %v1436
      %v1461 = vpack.c.b16 %v1439, %v1438
      %v1462 = vpack.c.b16 %v1441, %v1440
      %v1463 = vpack.c.b16 %v1443, %v1442
      %v1464 = vpack.c.b16 %v1445, %v1444
      %v1465 = vpack.c.b16 %v1447, %v1446
      %1466 = vrot.lane.b32.xlu0 %v1448, 4
      %v1467 = vpop.permute.xlu0 %1466
      %1468 = vrot.lane.b32.xlu0 %v1449, 4
      %v1469 = vpop.permute.xlu0 %1468
      %1470 = vrot.lane.b32.xlu0 %v1450, 4
      %v1471 = vpop.permute.xlu0 %1470
      %1472 = vrot.lane.b32.xlu0 %v1451, 4
      %v1473 = vpop.permute.xlu0 %1472
      %1474 = vrot.lane.b32.xlu0 %v1452, 4
      %v1475 = vpop.permute.xlu0 %1474
      %1476 = vrot.lane.b32.xlu0 %v1453, 4
      %v1477 = vpop.permute.xlu0 %1476
      %1478 = vrot.lane.b32.xlu0 %v1454, 4
      %v1479 = vpop.permute.xlu0 %1478
      %1480 = vrot.lane.b32.xlu0 %v1455, 4
      %v1481 = vpop.permute.xlu0 %1480
      %1482 = vrot.lane.b32.xlu0 %v1456, 4
      %v1483 = vpop.permute.xlu0 %1482
      %1484 = vrot.lane.b32.xlu0 %v1457, 4
      %v1485 = vpop.permute.xlu0 %1484
      %1486 = vrot.lane.b32.xlu0 %v1458, 4
      %v1487 = vpop.permute.xlu0 %1486
      %1488 = vrot.lane.b32.xlu0 %v1459, 4
      %v1489 = vpop.permute.xlu0 %1488
      %1490 = vrot.lane.b32.xlu0 %v1460, 4
      %v1491 = vpop.permute.xlu0 %1490
      %1492 = vrot.lane.b32.xlu0 %v1461, 4
      %v1493 = vpop.permute.xlu0 %1492
      %1494 = vrot.lane.b32.xlu0 %v1462, 4
      %v1495 = vpop.permute.xlu0 %1494
      %1496 = vrot.lane.b32.xlu0 %v1463, 4
      %v1497 = vpop.permute.xlu0 %1496
      %1498 = vrot.lane.b32.xlu0 %v1464, 4
      %v1499 = vpop.permute.xlu0 %1498
      %1500 = vrot.lane.b32.xlu0 %v1465, 4
      %v1501 = vpop.permute.xlu0 %1500
      %v1502 = vunpack.c.l.b16 %v1235
      %v1503 = vunpack.c.l.b16 %v1238
      %v1504 = vunpack.c.l.b16 %v1242
      %v1505 = vunpack.c.l.b16 %v1245
      %v1506 = vunpack.c.l.b16 %v1249
      %v1507 = vunpack.c.l.b16 %v1252
      %v1508 = vunpack.c.l.b16 %v1256
      %v1509 = vunpack.c.l.b16 %v1259
      %v1510 = vunpack.c.l.b16 %v1263
      %v1511 = vunpack.c.l.b16 %v1266
      %v1512 = vunpack.c.l.b16 %v1270
      %v1513 = vunpack.c.l.b16 %v1273
      %v1514 = vunpack.c.l.b16 %v1277
      %v1515 = vunpack.c.l.b16 %v1280
      %v1516 = vunpack.c.l.b16 %v1284
      %v1517 = vunpack.c.l.b16 %v1287
      %v1518 = vunpack.c.l.b16 %v1291
      %v1519 = vunpack.c.l.b16 %v1294
      %v1520 = vunpack.c.l.b16 %v1298
      %v1521 = vunpack.c.l.b16 %v1301
      %v1522 = vunpack.c.l.b16 %v1305
      %v1523 = vunpack.c.l.b16 %v1308
      %v1524 = vunpack.c.l.b16 %v1312
      %v1525 = vunpack.c.l.b16 %v1315
      %v1526 = vunpack.c.l.b16 %v1319
      %v1527 = vunpack.c.l.b16 %v1322
      %v1528 = vunpack.c.l.b16 %v1326
      %v1529 = vunpack.c.l.b16 %v1329
      %v1530 = vunpack.c.l.b16 %v1333
      %v1531 = vunpack.c.l.b16 %v1336
      %v1532 = vunpack.c.l.b16 %v1340
      %v1533 = vunpack.c.l.b16 %v1343
      %v1534 = vunpack.c.l.b16 %v1347
      %v1535 = vunpack.c.l.b16 %v1350
      %v1536 = vunpack.c.l.b16 %v1354
      %v1537 = vunpack.c.l.b16 %v1357
      %v1538 = vpack.c.b16 %v1503, %v1502
      %v1539 = vpack.c.b16 %v1505, %v1504
      %v1540 = vpack.c.b16 %v1507, %v1506
      %v1541 = vpack.c.b16 %v1509, %v1508
      %v1542 = vpack.c.b16 %v1511, %v1510
      %v1543 = vpack.c.b16 %v1513, %v1512
      %v1544 = vpack.c.b16 %v1515, %v1514
      %v1545 = vpack.c.b16 %v1517, %v1516
      %v1546 = vpack.c.b16 %v1519, %v1518
      %v1547 = vpack.c.b16 %v1521, %v1520
      %v1548 = vpack.c.b16 %v1523, %v1522
      %v1549 = vpack.c.b16 %v1525, %v1524
      %v1550 = vpack.c.b16 %v1527, %v1526
      %v1551 = vpack.c.b16 %v1529, %v1528
      %v1552 = vpack.c.b16 %v1531, %v1530
      %v1553 = vpack.c.b16 %v1533, %v1532
      %v1554 = vpack.c.b16 %v1535, %v1534
      %v1555 = vpack.c.b16 %v1537, %v1536
      %1556 = vrot.lane.b32.xlu0 %v1538, 8
      %v1557 = vpop.permute.xlu0 %1556
      %1558 = vrot.lane.b32.xlu0 %v1539, 8
      %v1559 = vpop.permute.xlu0 %1558
      %1560 = vrot.lane.b32.xlu0 %v1540, 8
      %v1561 = vpop.permute.xlu0 %1560
      %1562 = vrot.lane.b32.xlu0 %v1541, 8
      %v1563 = vpop.permute.xlu0 %1562
      %1564 = vrot.lane.b32.xlu0 %v1542, 8
      %v1565 = vpop.permute.xlu0 %1564
      %1566 = vrot.lane.b32.xlu0 %v1543, 8
      %v1567 = vpop.permute.xlu0 %1566
      %1568 = vrot.lane.b32.xlu0 %v1544, 8
      %v1569 = vpop.permute.xlu0 %1568
      %1570 = vrot.lane.b32.xlu0 %v1545, 8
      %v1571 = vpop.permute.xlu0 %1570
      %1572 = vrot.lane.b32.xlu0 %v1546, 8
      %v1573 = vpop.permute.xlu0 %1572
      %1574 = vrot.lane.b32.xlu0 %v1547, 8
      %v1575 = vpop.permute.xlu0 %1574
      %1576 = vrot.lane.b32.xlu0 %v1548, 8
      %v1577 = vpop.permute.xlu0 %1576
      %1578 = vrot.lane.b32.xlu0 %v1549, 8
      %v1579 = vpop.permute.xlu0 %1578
      %1580 = vrot.lane.b32.xlu0 %v1550, 8
      %v1581 = vpop.permute.xlu0 %1580
      %1582 = vrot.lane.b32.xlu0 %v1551, 8
      %v1583 = vpop.permute.xlu0 %1582
      %1584 = vrot.lane.b32.xlu0 %v1552, 8
      %v1585 = vpop.permute.xlu0 %1584
      %1586 = vrot.lane.b32.xlu0 %v1553, 8
      %v1587 = vpop.permute.xlu0 %1586
      %1588 = vrot.lane.b32.xlu0 %v1554, 8
      %v1589 = vpop.permute.xlu0 %1588
      %1590 = vrot.lane.b32.xlu0 %v1555, 8
      %v1591 = vpop.permute.xlu0 %1590
      %vm1592 = vcmask 31744
      %v1595 = vsel %vm1592, %v1394, %v1467
      %v1598 = vsel %vm1592, %v1395, %v1469
      %v1601 = vsel %vm1592, %v1396, %v1471
      %v1604 = vsel %vm1592, %v1397, %v1473
      %v1607 = vsel %vm1592, %v1398, %v1475
      %v1610 = vsel %vm1592, %v1399, %v1477
      %v1613 = vsel %vm1592, %v1400, %v1479
      %v1616 = vsel %vm1592, %v1401, %v1481
      %v1619 = vsel %vm1592, %v1402, %v1483
      %v1622 = vsel %vm1592, %v1403, %v1485
      %v1625 = vsel %vm1592, %v1404, %v1487
      %v1628 = vsel %vm1592, %v1405, %v1489
      %v1631 = vsel %vm1592, %v1406, %v1491
      %v1634 = vsel %vm1592, %v1407, %v1493
      %v1637 = vsel %vm1592, %v1408, %v1495
      %v1640 = vsel %vm1592, %v1409, %v1497
      %v1643 = vsel %vm1592, %v1410, %v1499
      %v1646 = vsel %vm1592, %v1411, %v1501
      %vm1647 = vcmask 64512
      %v1649 = vsel %vm1647, %v1595, %v1557
      %v1651 = vsel %vm1647, %v1598, %v1559
      %v1653 = vsel %vm1647, %v1601, %v1561
      %v1655 = vsel %vm1647, %v1604, %v1563
      %v1657 = vsel %vm1647, %v1607, %v1565
      %v1659 = vsel %vm1647, %v1610, %v1567
      %v1661 = vsel %vm1647, %v1613, %v1569
      %v1663 = vsel %vm1647, %v1616, %v1571
      %v1665 = vsel %vm1647, %v1619, %v1573
      %v1667 = vsel %vm1647, %v1622, %v1575
      %v1669 = vsel %vm1647, %v1625, %v1577
      %v1671 = vsel %vm1647, %v1628, %v1579
      %v1673 = vsel %vm1647, %v1631, %v1581
      %v1675 = vsel %vm1647, %v1634, %v1583
      %v1677 = vsel %vm1647, %v1637, %v1585
      %v1679 = vsel %vm1647, %v1640, %v1587
      %v1681 = vsel %vm1647, %v1643, %v1589
      %v1683 = vsel %vm1647, %v1646, %v1591
      %v1684 = vld [vmem:[%s1] sm:$0xf]
      %v1685 = vld [vmem:[%s1 + $0x4] sm:$0x3]
      %s1686 = scalar_lea.vmem %s1, 8
      %v1687 = vld [vmem:[%s1686] sm:$0xf]
      %v1688 = vld [vmem:[%s1686 + $0x4] sm:$0x3]
      %v1691 = vunpack.c.l.b16 %v1687
      %v1692 = vunpack.c.l.b16 %v1688
      %v1693 = vpack.c.b16 %v1692, %v1691
      %vm1694 = vcmask 97280
      %v1695 = vsel %vm1694, %v1651, 0
      %v1697 = vsel %vm1694, %v1653, 0
      %v1699 = vsel %vm1694, %v1655, 0
      %v1701 = vsel %vm1694, %v1657, 0
      %v1703 = vsel %vm1694, %v1659, 0
      %v1705 = vsel %vm1694, %v1661, 0
      %v1707 = vsel %vm1694, %v1663, 0
      %v1709 = vsel %vm1694, %v1665, 0
      %v1711 = vsel %vm1694, %v1667, 0
      %v1713 = vsel %vm1694, %v1669, 0
      %v1715 = vsel %vm1694, %v1671, 0
      %v1717 = vsel %vm1694, %v1673, 0
      %v1719 = vsel %vm1694, %v1675, 0
      %v1721 = vsel %vm1694, %v1677, 0
      %v1723 = vsel %vm1694, %v1679, 0
      %v1725 = vsel %vm1694, %v1681, 0
      %vm1727 = vcmask 1045504
      %v1729 = vsel %vm1727, %v1693, 0
      %1731 = vmatprep.subr.bf16.mxu0 0
      %1732 = vmatpush1.bf16.msra.mxu0 %v1729
      %1733 = vmatprep.subr.bf16.mxu0 0
      %1734 = vmatpush1.bf16.msra.mxu0 0
      %1735 = vmatprep.subr.bf16.mxu0 0
      %1736 = vmatpush1.bf16.msra.mxu0 0
      %1737 = vmatprep.subr.bf16.mxu0 0
      %1738 = vmatpush1.bf16.msra.mxu0 0
      %1739 = vmatprep.subr.bf16.mxu0 0
      %1740 = vmatpush1.bf16.msra.mxu0 0
      %1741 = vmatprep.subr.bf16.mxu0 0
      %1742 = vmatpush1.bf16.msra.mxu0 0
      %1743 = vmatprep.subr.bf16.mxu0 0
      %1744 = vmatpush1.bf16.msra.mxu0 0
      %1745 = vmatprep.subr.bf16.mxu0 0
      %1746 = vmatpush1.bf16.msra.mxu0 0
      %1747 = vmatprep.subr.bf16.mxu0 0
      %1748 = vmatpush1.bf16.msra.mxu0 0
      %1749 = vmatprep.subr.bf16.mxu0 0
      %1750 = vmatpush1.bf16.msra.mxu0 0
      %1751 = vmatprep.subr.bf16.mxu0 0
      %1752 = vmatpush1.bf16.msra.mxu0 0
      %1753 = vmatprep.subr.bf16.mxu0 0
      %1754 = vmatpush1.bf16.msra.mxu0 0
      %1755 = vmatprep.subr.bf16.mxu0 0
      %1756 = vmatpush1.bf16.msra.mxu0 0
      %1757 = vmatprep.subr.bf16.mxu0 0
      %1758 = vmatpush1.bf16.msra.mxu0 0
      %1759 = vmatprep.subr.bf16.mxu0 0
      %1760 = vmatpush1.bf16.msra.mxu0 0
      %1761 = vmatprep.subr.bf16.mxu0 0
      %1762 = vmatpush1.bf16.msra.mxu0 0
      %1763 = vmatprep.mubr.bf16.mxu0 0
      %1764 = vmatmul.mubr.bf16.gmra.mrb[0].mxu0 %v1695
      %v1765 = vpop.f32.mrb[0].mxu0
      %v1766 = vadd.f32 0.0, %v1765
      %v1767 = vpop.f32.mrb[0].mxu0
      %v1768 = vpop.f32.mrb[0].mxu0
      %v1769 = vadd.f32 0.0, %v1768
      %v1770 = vpop.f32.mrb[0].mxu0
      %1771 = vmatprep.mubr.bf16.mxu0 0
      %1772 = vmatmul.mubr.bf16.gmra.mrb[0].mxu0 %v1697
      %v1773 = vpop.f32.mrb[0].mxu0
      %v1774 = vadd.f32 0.0, %v1773
      %v1775 = vpop.f32.mrb[0].mxu0
      %v1776 = vpop.f32.mrb[0].mxu0
      %v1777 = vadd.f32 0.0, %v1776
      %v1778 = vpop.f32.mrb[0].mxu0
      %1779 = vmatprep.mubr.bf16.mxu0 0
      %1780 = vmatmul.mubr.bf16.gmra.mrb[0].mxu0 %v1699
      %v1781 = vpop.f32.mrb[0].mxu0
      %v1782 = vadd.f32 0.0, %v1781
      %v1783 = vpop.f32.mrb[0].mxu0
      %v1784 = vpop.f32.mrb[0].mxu0
      %v1785 = vadd.f32 0.0, %v1784
      %v1786 = vpop.f32.mrb[0].mxu0
      %1787 = vmatprep.mubr.bf16.mxu0 0
      %1788 = vmatmul.mubr.bf16.gmra.mrb[0].mxu0 %v1701
      %v1789 = vpop.f32.mrb[0].mxu0
      %v1790 = vadd.f32 0.0, %v1789
      %v1791 = vpop.f32.mrb[0].mxu0
      %v1792 = vpop.f32.mrb[0].mxu0
      %v1793 = vadd.f32 0.0, %v1792
      %v1794 = vpop.f32.mrb[0].mxu0
      %1795 = vmatprep.mubr.bf16.mxu0 0
      %1796 = vmatmul.mubr.bf16.gmra.mrb[0].mxu0 %v1703
      %v1797 = vpop.f32.mrb[0].mxu0
      %v1798 = vadd.f32 0.0, %v1797
      %v1799 = vpop.f32.mrb[0].mxu0
      %v1800 = vpop.f32.mrb[0].mxu0
      %v1801 = vadd.f32 0.0, %v1800
      %v1802 = vpop.f32.mrb[0].mxu0
      %1803 = vmatprep.mubr.bf16.mxu0 0
      %1804 = vmatmul.mubr.bf16.gmra.mrb[0].mxu0 %v1705
      %v1805 = vpop.f32.mrb[0].mxu0
      %v1806 = vadd.f32 0.0, %v1805
      %v1807 = vpop.f32.mrb[0].mxu0
      %v1808 = vpop.f32.mrb[0].mxu0
      %v1809 = vadd.f32 0.0, %v1808
      %v1810 = vpop.f32.mrb[0].mxu0
      %1811 = vmatprep.mubr.bf16.mxu0 0
      %1812 = vmatmul.mubr.bf16.gmra.mrb[0].mxu0 %v1707
      %v1813 = vpop.f32.mrb[0].mxu0
      %v1814 = vadd.f32 0.0, %v1813
      %v1815 = vpop.f32.mrb[0].mxu0
      %v1816 = vpop.f32.mrb[0].mxu0
      %v1817 = vadd.f32 0.0, %v1816
      %v1818 = vpop.f32.mrb[0].mxu0
      %1819 = vmatprep.mubr.bf16.mxu0 0
      %1820 = vmatmul.mubr.bf16.gmra.mrb[0].mxu0 %v1709
      %v1821 = vpop.f32.mrb[0].mxu0
      %v1822 = vadd.f32 0.0, %v1821
      %v1823 = vpop.f32.mrb[0].mxu0
      %v1824 = vpop.f32.mrb[0].mxu0
      %v1825 = vadd.f32 0.0, %v1824
      %v1826 = vpop.f32.mrb[0].mxu0
      %1827 = vmatprep.mubr.bf16.mxu0 0
      %1828 = vmatmul.mubr.bf16.gmra.mrb[0].mxu0 %v1711
      %v1829 = vpop.f32.mrb[0].mxu0
      %v1830 = vadd.f32 0.0, %v1829
      %v1831 = vpop.f32.mrb[0].mxu0
      %v1832 = vpop.f32.mrb[0].mxu0
      %v1833 = vadd.f32 0.0, %v1832
      %v1834 = vpop.f32.mrb[0].mxu0
      %1835 = vmatprep.mubr.bf16.mxu0 0
      %1836 = vmatmul.mubr.bf16.gmra.mrb[0].mxu0 %v1713
      %v1837 = vpop.f32.mrb[0].mxu0
      %v1838 = vadd.f32 0.0, %v1837
      %v1839 = vpop.f32.mrb[0].mxu0
      %v1840 = vpop.f32.mrb[0].mxu0
      %v1841 = vadd.f32 0.0, %v1840
      %v1842 = vpop.f32.mrb[0].mxu0
      %1843 = vmatprep.mubr.bf16.mxu0 0
      %1844 = vmatmul.mubr.bf16.gmra.mrb[0].mxu0 %v1715
      %v1845 = vpop.f32.mrb[0].mxu0
      %v1846 = vadd.f32 0.0, %v1845
      %v1847 = vpop.f32.mrb[0].mxu0
      %v1848 = vpop.f32.mrb[0].mxu0
      %v1849 = vadd.f32 0.0, %v1848
      %v1850 = vpop.f32.mrb[0].mxu0
      %1851 = vmatprep.mubr.bf16.mxu0 0
      %1852 = vmatmul.mubr.bf16.gmra.mrb[0].mxu0 %v1717
      %v1853 = vpop.f32.mrb[0].mxu0
      %v1854 = vadd.f32 0.0, %v1853
      %v1855 = vpop.f32.mrb[0].mxu0
      %v1856 = vpop.f32.mrb[0].mxu0
      %v1857 = vadd.f32 0.0, %v1856
      %v1858 = vpop.f32.mrb[0].mxu0
      %1859 = vmatprep.mubr.bf16.mxu0 0
      %1860 = vmatmul.mubr.bf16.gmra.mrb[0].mxu0 %v1719
      %v1861 = vpop.f32.mrb[0].mxu0
      %v1862 = vadd.f32 0.0, %v1861
      %v1863 = vpop.f32.mrb[0].mxu0
      %v1864 = vpop.f32.mrb[0].mxu0
      %v1865 = vadd.f32 0.0, %v1864
      %v1866 = vpop.f32.mrb[0].mxu0
      %1867 = vmatprep.mubr.bf16.mxu0 0
      %1868 = vmatmul.mubr.bf16.gmra.mrb[0].mxu0 %v1721
      %v1869 = vpop.f32.mrb[0].mxu0
      %v1870 = vadd.f32 0.0, %v1869
      %v1871 = vpop.f32.mrb[0].mxu0
      %v1872 = vpop.f32.mrb[0].mxu0
      %v1873 = vadd.f32 0.0, %v1872
      %v1874 = vpop.f32.mrb[0].mxu0
      %1875 = vmatprep.mubr.bf16.mxu0 0
      %1876 = vmatmul.mubr.bf16.gmra.mrb[0].mxu0 %v1723
      %v1877 = vpop.f32.mrb[0].mxu0
      %v1878 = vadd.f32 0.0, %v1877
      %v1879 = vpop.f32.mrb[0].mxu0
      %v1880 = vpop.f32.mrb[0].mxu0
      %v1881 = vadd.f32 0.0, %v1880
      %v1882 = vpop.f32.mrb[0].mxu0
      %1883 = vmatprep.mubr.bf16.mxu0 0
      %1884 = vmatmul.mubr.bf16.gmra.mrb[0].mxu0 %v1725
      %v1885 = vpop.f32.mrb[0].mxu0
      %v1886 = vadd.f32 0.0, %v1885
      %v1887 = vpop.f32.mrb[0].mxu0
      %v1888 = vpop.f32.mrb[0].mxu0
      %v1889 = vadd.f32 0.0, %v1888
      %v1890 = vpop.f32.mrb[0].mxu0
      %1891 = vdwg.mxu0
      %v1894 = vunpack.c.l.b16 %v1684
      %v1895 = vunpack.c.l.b16 %v1685
      %v1896 = vpack.c.b16 %v1895, %v1894
      %v1897 = vsel %vm1694, %v1649, 0
      %v1900 = vsel %vm1727, %v1896, 0
      %1902 = vmatprep.subr.bf16.mxu0 0
      %1903 = vmatpush1.bf16.msra.mxu0 %v1900
      %1904 = vmatprep.subr.bf16.mxu0 0
      %1905 = vmatpush1.bf16.msra.mxu0 0
      %1906 = vmatprep.subr.bf16.mxu0 0
      %1907 = vmatpush1.bf16.msra.mxu0 0
      %1908 = vmatprep.subr.bf16.mxu0 0
      %1909 = vmatpush1.bf16.msra.mxu0 0
      %1910 = vmatprep.subr.bf16.mxu0 0
      %1911 = vmatpush1.bf16.msra.mxu0 0
      %1912 = vmatprep.subr.bf16.mxu0 0
      %1913 = vmatpush1.bf16.msra.mxu0 0
      %1914 = vmatprep.subr.bf16.mxu0 0
      %1915 = vmatpush1.bf16.msra.mxu0 0
      %1916 = vmatprep.subr.bf16.mxu0 0
      %1917 = vmatpush1.bf16.msra.mxu0 0
      %1918 = vmatprep.subr.bf16.mxu0 0
      %1919 = vmatpush1.bf16.msra.mxu0 0
      %1920 = vmatprep.subr.bf16.mxu0 0
      %1921 = vmatpush1.bf16.msra.mxu0 0
      %1922 = vmatprep.subr.bf16.mxu0 0
      %1923 = vmatpush1.bf16.msra.mxu0 0
      %1924 = vmatprep.subr.bf16.mxu0 0
      %1925 = vmatpush1.bf16.msra.mxu0 0
      %1926 = vmatprep.subr.bf16.mxu0 0
      %1927 = vmatpush1.bf16.msra.mxu0 0
      %1928 = vmatprep.subr.bf16.mxu0 0
      %1929 = vmatpush1.bf16.msra.mxu0 0
      %1930 = vmatprep.subr.bf16.mxu0 0
      %1931 = vmatpush1.bf16.msra.mxu0 0
      %1932 = vmatprep.subr.bf16.mxu0 0
      %1933 = vmatpush1.bf16.msra.mxu0 0
      %1934 = vmatprep.mubr.bf16.mxu0 0
      %1935 = vmatmul.mubr.bf16.gmra.mrb[0].mxu0 %v1897
      %v1936 = vpop.f32.mrb[0].mxu0
      %v1937 = vadd.f32 %v1766, %v1936
      %v1938 = vpop.f32.mrb[0].mxu0
      %v1939 = vpop.f32.mrb[0].mxu0
      %v1940 = vadd.f32 %v1769, %v1939
      %v1941 = vpop.f32.mrb[0].mxu0
      %1942 = vmatprep.mubr.bf16.mxu0 0
      %1943 = vmatmul.mubr.bf16.gmra.mrb[0].mxu0 %v1695
      %v1944 = vpop.f32.mrb[0].mxu0
      %v1945 = vadd.f32 %v1774, %v1944
      %v1946 = vpop.f32.mrb[0].mxu0
      %v1947 = vpop.f32.mrb[0].mxu0
      %v1948 = vadd.f32 %v1777, %v1947
      %v1949 = vpop.f32.mrb[0].mxu0
      %1950 = vmatprep.mubr.bf16.mxu0 0
      %1951 = vmatmul.mubr.bf16.gmra.mrb[0].mxu0 %v1697
      %v1952 = vpop.f32.mrb[0].mxu0
      %v1953 = vadd.f32 %v1782, %v1952
      %v1954 = vpop.f32.mrb[0].mxu0
      %v1955 = vpop.f32.mrb[0].mxu0
      %v1956 = vadd.f32 %v1785, %v1955
      %v1957 = vpop.f32.mrb[0].mxu0
      %1958 = vmatprep.mubr.bf16.mxu0 0
      %1959 = vmatmul.mubr.bf16.gmra.mrb[0].mxu0 %v1699
      %v1960 = vpop.f32.mrb[0].mxu0
      %v1961 = vadd.f32 %v1790, %v1960
      %v1962 = vpop.f32.mrb[0].mxu0
      %v1963 = vpop.f32.mrb[0].mxu0
      %v1964 = vadd.f32 %v1793, %v1963
      %v1965 = vpop.f32.mrb[0].mxu0
      %1966 = vmatprep.mubr.bf16.mxu0 0
      %1967 = vmatmul.mubr.bf16.gmra.mrb[0].mxu0 %v1701
      %v1968 = vpop.f32.mrb[0].mxu0
      %v1969 = vadd.f32 %v1798, %v1968
      %v1970 = vpop.f32.mrb[0].mxu0
      %v1971 = vpop.f32.mrb[0].mxu0
      %v1972 = vadd.f32 %v1801, %v1971
      %v1973 = vpop.f32.mrb[0].mxu0
      %1974 = vmatprep.mubr.bf16.mxu0 0
      %1975 = vmatmul.mubr.bf16.gmra.mrb[0].mxu0 %v1703
      %v1976 = vpop.f32.mrb[0].mxu0
      %v1977 = vadd.f32 %v1806, %v1976
      %v1978 = vpop.f32.mrb[0].mxu0
      %v1979 = vpop.f32.mrb[0].mxu0
      %v1980 = vadd.f32 %v1809, %v1979
      %v1981 = vpop.f32.mrb[0].mxu0
      %1982 = vmatprep.mubr.bf16.mxu0 0
      %1983 = vmatmul.mubr.bf16.gmra.mrb[0].mxu0 %v1705
      %v1984 = vpop.f32.mrb[0].mxu0
      %v1985 = vadd.f32 %v1814, %v1984
      %v1986 = vpop.f32.mrb[0].mxu0
      %v1987 = vpop.f32.mrb[0].mxu0
      %v1988 = vadd.f32 %v1817, %v1987
      %v1989 = vpop.f32.mrb[0].mxu0
      %1990 = vmatprep.mubr.bf16.mxu0 0
      %1991 = vmatmul.mubr.bf16.gmra.mrb[0].mxu0 %v1707
      %v1992 = vpop.f32.mrb[0].mxu0
      %v1993 = vadd.f32 %v1822, %v1992
      %v1994 = vpop.f32.mrb[0].mxu0
      %v1995 = vpop.f32.mrb[0].mxu0
      %v1996 = vadd.f32 %v1825, %v1995
      %v1997 = vpop.f32.mrb[0].mxu0
      %1998 = vmatprep.mubr.bf16.mxu0 0
      %1999 = vmatmul.mubr.bf16.gmra.mrb[0].mxu0 %v1709
      %v2000 = vpop.f32.mrb[0].mxu0
      %v2001 = vadd.f32 %v1830, %v2000
      %v2002 = vpop.f32.mrb[0].mxu0
      %v2003 = vpop.f32.mrb[0].mxu0
      %v2004 = vadd.f32 %v1833, %v2003
      %v2005 = vpop.f32.mrb[0].mxu0
      %2006 = vmatprep.mubr.bf16.mxu0 0
      %2007 = vmatmul.mubr.bf16.gmra.mrb[0].mxu0 %v1711
      %v2008 = vpop.f32.mrb[0].mxu0
      %v2009 = vadd.f32 %v1838, %v2008
      %v2010 = vpop.f32.mrb[0].mxu0
      %v2011 = vpop.f32.mrb[0].mxu0
      %v2012 = vadd.f32 %v1841, %v2011
      %v2013 = vpop.f32.mrb[0].mxu0
      %2014 = vmatprep.mubr.bf16.mxu0 0
      %2015 = vmatmul.mubr.bf16.gmra.mrb[0].mxu0 %v1713
      %v2016 = vpop.f32.mrb[0].mxu0
      %v2017 = vadd.f32 %v1846, %v2016
      %v2018 = vpop.f32.mrb[0].mxu0
      %v2019 = vpop.f32.mrb[0].mxu0
      %v2020 = vadd.f32 %v1849, %v2019
      %v2021 = vpop.f32.mrb[0].mxu0
      %2022 = vmatprep.mubr.bf16.mxu0 0
      %2023 = vmatmul.mubr.bf16.gmra.mrb[0].mxu0 %v1715
      %v2024 = vpop.f32.mrb[0].mxu0
      %v2025 = vadd.f32 %v1854, %v2024
      %v2026 = vpop.f32.mrb[0].mxu0
      %v2027 = vpop.f32.mrb[0].mxu0
      %v2028 = vadd.f32 %v1857, %v2027
      %v2029 = vpop.f32.mrb[0].mxu0
      %2030 = vmatprep.mubr.bf16.mxu0 0
      %2031 = vmatmul.mubr.bf16.gmra.mrb[0].mxu0 %v1717
      %v2032 = vpop.f32.mrb[0].mxu0
      %v2033 = vadd.f32 %v1862, %v2032
      %v2034 = vpop.f32.mrb[0].mxu0
      %v2035 = vpop.f32.mrb[0].mxu0
      %v2036 = vadd.f32 %v1865, %v2035
      %v2037 = vpop.f32.mrb[0].mxu0
      %2038 = vmatprep.mubr.bf16.mxu0 0
      %2039 = vmatmul.mubr.bf16.gmra.mrb[0].mxu0 %v1719
      %v2040 = vpop.f32.mrb[0].mxu0
      %v2041 = vadd.f32 %v1870, %v2040
      %v2042 = vpop.f32.mrb[0].mxu0
      %v2043 = vpop.f32.mrb[0].mxu0
      %v2044 = vadd.f32 %v1873, %v2043
      %v2045 = vpop.f32.mrb[0].mxu0
      %2046 = vmatprep.mubr.bf16.mxu0 0
      %2047 = vmatmul.mubr.bf16.gmra.mrb[0].mxu0 %v1721
      %v2048 = vpop.f32.mrb[0].mxu0
      %v2049 = vadd.f32 %v1878, %v2048
      %v2050 = vpop.f32.mrb[0].mxu0
      %v2051 = vpop.f32.mrb[0].mxu0
      %v2052 = vadd.f32 %v1881, %v2051
      %v2053 = vpop.f32.mrb[0].mxu0
      %2054 = vmatprep.mubr.bf16.mxu0 0
      %2055 = vmatmul.mubr.bf16.gmra.mrb[0].mxu0 %v1723
      %v2056 = vpop.f32.mrb[0].mxu0
      %v2057 = vadd.f32 %v1886, %v2056
      %v2058 = vpop.f32.mrb[0].mxu0
      %v2059 = vpop.f32.mrb[0].mxu0
      %v2060 = vadd.f32 %v1889, %v2059
      %v2061 = vpop.f32.mrb[0].mxu0
      %2062 = vdwg.mxu0
      %s2063 = scalar_lea.vmem %s1, 16
      %v2064 = vld [vmem:[%s2063] sm:$0xf]
      %v2065 = vld [vmem:[%s2063 + $0x4] sm:$0x3]
      %v2068 = vunpack.c.l.b16 %v2064
      %v2069 = vunpack.c.l.b16 %v2065
      %v2070 = vpack.c.b16 %v2069, %v2068
      %v2071 = vsel %vm1694, %v1683, 0
      %v2074 = vsel %vm1727, %v2070, 0
      %2076 = vmatprep.subr.bf16.mxu0 0
      %2077 = vmatpush1.bf16.msra.mxu0 %v2074
      %2078 = vmatprep.subr.bf16.mxu0 0
      %2079 = vmatpush1.bf16.msra.mxu0 0
      %2080 = vmatprep.subr.bf16.mxu0 0
      %2081 = vmatpush1.bf16.msra.mxu0 0
      %2082 = vmatprep.subr.bf16.mxu0 0
      %2083 = vmatpush1.bf16.msra.mxu0 0
      %2084 = vmatprep.subr.bf16.mxu0 0
      %2085 = vmatpush1.bf16.msra.mxu0 0
      %2086 = vmatprep.subr.bf16.mxu0 0
      %2087 = vmatpush1.bf16.msra.mxu0 0
      %2088 = vmatprep.subr.bf16.mxu0 0
      %2089 = vmatpush1.bf16.msra.mxu0 0
      %2090 = vmatprep.subr.bf16.mxu0 0
      %2091 = vmatpush1.bf16.msra.mxu0 0
      %2092 = vmatprep.subr.bf16.mxu0 0
      %2093 = vmatpush1.bf16.msra.mxu0 0
      %2094 = vmatprep.subr.bf16.mxu0 0
      %2095 = vmatpush1.bf16.msra.mxu0 0
      %2096 = vmatprep.subr.bf16.mxu0 0
      %2097 = vmatpush1.bf16.msra.mxu0 0
      %2098 = vmatprep.subr.bf16.mxu0 0
      %2099 = vmatpush1.bf16.msra.mxu0 0
      %2100 = vmatprep.subr.bf16.mxu0 0
      %2101 = vmatpush1.bf16.msra.mxu0 0
      %2102 = vmatprep.subr.bf16.mxu0 0
      %2103 = vmatpush1.bf16.msra.mxu0 0
      %2104 = vmatprep.subr.bf16.mxu0 0
      %2105 = vmatpush1.bf16.msra.mxu0 0
      %2106 = vmatprep.subr.bf16.mxu0 0
      %2107 = vmatpush1.bf16.msra.mxu0 0
      %2108 = vmatprep.mubr.bf16.mxu0 0
      %2109 = vmatmul.mubr.bf16.gmra.mrb[0].mxu0 %v1697
      %v2110 = vpop.f32.mrb[0].mxu0
      %v2111 = vadd.f32 0.0, %v2110
      %v2112 = vpop.f32.mrb[0].mxu0
      %v2113 = vpop.f32.mrb[0].mxu0
      %v2114 = vadd.f32 0.0, %v2113
      %v2115 = vpop.f32.mrb[0].mxu0
      %2116 = vmatprep.mubr.bf16.mxu0 0
      %2117 = vmatmul.mubr.bf16.gmra.mrb[0].mxu0 %v1699
      %v2118 = vpop.f32.mrb[0].mxu0
      %v2119 = vadd.f32 0.0, %v2118
      %v2120 = vpop.f32.mrb[0].mxu0
      %v2121 = vpop.f32.mrb[0].mxu0
      %v2122 = vadd.f32 0.0, %v2121
      %v2123 = vpop.f32.mrb[0].mxu0
      %2124 = vmatprep.mubr.bf16.mxu0 0
      %2125 = vmatmul.mubr.bf16.gmra.mrb[0].mxu0 %v1701
      %v2126 = vpop.f32.mrb[0].mxu0
      %v2127 = vadd.f32 0.0, %v2126
      %v2128 = vpop.f32.mrb[0].mxu0
      %v2129 = vpop.f32.mrb[0].mxu0
      %v2130 = vadd.f32 0.0, %v2129
      %v2131 = vpop.f32.mrb[0].mxu0
      %2132 = vmatprep.mubr.bf16.mxu0 0
      %2133 = vmatmul.mubr.bf16.gmra.mrb[0].mxu0 %v1703
      %v2134 = vpop.f32.mrb[0].mxu0
      %v2135 = vadd.f32 0.0, %v2134
      %v2136 = vpop.f32.mrb[0].mxu0
      %v2137 = vpop.f32.mrb[0].mxu0
      %v2138 = vadd.f32 0.0, %v2137
      %v2139 = vpop.f32.mrb[0].mxu0
      %2140 = vmatprep.mubr.bf16.mxu0 0
      %2141 = vmatmul.mubr.bf16.gmra.mrb[0].mxu0 %v1705
      %v2142 = vpop.f32.mrb[0].mxu0
      %v2143 = vadd.f32 0.0, %v2142
      %v2144 = vpop.f32.mrb[0].mxu0
      %v2145 = vpop.f32.mrb[0].mxu0
      %v2146 = vadd.f32 0.0, %v2145
      %v2147 = vpop.f32.mrb[0].mxu0
      %2148 = vmatprep.mubr.bf16.mxu0 0
      %2149 = vmatmul.mubr.bf16.gmra.mrb[0].mxu0 %v1707
      %v2150 = vpop.f32.mrb[0].mxu0
      %v2151 = vadd.f32 0.0, %v2150
      %v2152 = vpop.f32.mrb[0].mxu0
      %v2153 = vpop.f32.mrb[0].mxu0
      %v2154 = vadd.f32 0.0, %v2153
      %v2155 = vpop.f32.mrb[0].mxu0
      %2156 = vmatprep.mubr.bf16.mxu0 0
      %2157 = vmatmul.mubr.bf16.gmra.mrb[0].mxu0 %v1709
      %v2158 = vpop.f32.mrb[0].mxu0
      %v2159 = vadd.f32 0.0, %v2158
      %v2160 = vpop.f32.mrb[0].mxu0
      %v2161 = vpop.f32.mrb[0].mxu0
      %v2162 = vadd.f32 0.0, %v2161
      %v2163 = vpop.f32.mrb[0].mxu0
      %2164 = vmatprep.mubr.bf16.mxu0 0
      %2165 = vmatmul.mubr.bf16.gmra.mrb[0].mxu0 %v1711
      %v2166 = vpop.f32.mrb[0].mxu0
      %v2167 = vadd.f32 0.0, %v2166
      %v2168 = vpop.f32.mrb[0].mxu0
      %v2169 = vpop.f32.mrb[0].mxu0
      %v2170 = vadd.f32 0.0, %v2169
      %v2171 = vpop.f32.mrb[0].mxu0
      %2172 = vmatprep.mubr.bf16.mxu0 0
      %2173 = vmatmul.mubr.bf16.gmra.mrb[0].mxu0 %v1713
      %v2174 = vpop.f32.mrb[0].mxu0
      %v2175 = vadd.f32 0.0, %v2174
      %v2176 = vpop.f32.mrb[0].mxu0
      %v2177 = vpop.f32.mrb[0].mxu0
      %v2178 = vadd.f32 0.0, %v2177
      %v2179 = vpop.f32.mrb[0].mxu0
      %2180 = vmatprep.mubr.bf16.mxu0 0
      %2181 = vmatmul.mubr.bf16.gmra.mrb[0].mxu0 %v1715
      %v2182 = vpop.f32.mrb[0].mxu0
      %v2183 = vadd.f32 0.0, %v2182
      %v2184 = vpop.f32.mrb[0].mxu0
      %v2185 = vpop.f32.mrb[0].mxu0
      %v2186 = vadd.f32 0.0, %v2185
      %v2187 = vpop.f32.mrb[0].mxu0
      %2188 = vmatprep.mubr.bf16.mxu0 0
      %2189 = vmatmul.mubr.bf16.gmra.mrb[0].mxu0 %v1717
      %v2190 = vpop.f32.mrb[0].mxu0
      %v2191 = vadd.f32 0.0, %v2190
      %v2192 = vpop.f32.mrb[0].mxu0
      %v2193 = vpop.f32.mrb[0].mxu0
      %v2194 = vadd.f32 0.0, %v2193
      %v2195 = vpop.f32.mrb[0].mxu0
      %2196 = vmatprep.mubr.bf16.mxu0 0
      %2197 = vmatmul.mubr.bf16.gmra.mrb[0].mxu0 %v1719
      %v2198 = vpop.f32.mrb[0].mxu0
      %v2199 = vadd.f32 0.0, %v2198
      %v2200 = vpop.f32.mrb[0].mxu0
      %v2201 = vpop.f32.mrb[0].mxu0
      %v2202 = vadd.f32 0.0, %v2201
      %v2203 = vpop.f32.mrb[0].mxu0
      %2204 = vmatprep.mubr.bf16.mxu0 0
      %2205 = vmatmul.mubr.bf16.gmra.mrb[0].mxu0 %v1721
      %v2206 = vpop.f32.mrb[0].mxu0
      %v2207 = vadd.f32 0.0, %v2206
      %v2208 = vpop.f32.mrb[0].mxu0
      %v2209 = vpop.f32.mrb[0].mxu0
      %v2210 = vadd.f32 0.0, %v2209
      %v2211 = vpop.f32.mrb[0].mxu0
      %2212 = vmatprep.mubr.bf16.mxu0 0
      %2213 = vmatmul.mubr.bf16.gmra.mrb[0].mxu0 %v1723
      %v2214 = vpop.f32.mrb[0].mxu0
      %v2215 = vadd.f32 0.0, %v2214
      %v2216 = vpop.f32.mrb[0].mxu0
      %v2217 = vpop.f32.mrb[0].mxu0
      %v2218 = vadd.f32 0.0, %v2217
      %v2219 = vpop.f32.mrb[0].mxu0
      %2220 = vmatprep.mubr.bf16.mxu0 0
      %2221 = vmatmul.mubr.bf16.gmra.mrb[0].mxu0 %v1725
      %v2222 = vpop.f32.mrb[0].mxu0
      %v2223 = vadd.f32 0.0, %v2222
      %v2224 = vpop.f32.mrb[0].mxu0
      %v2225 = vpop.f32.mrb[0].mxu0
      %v2226 = vadd.f32 0.0, %v2225
      %v2227 = vpop.f32.mrb[0].mxu0
      %2228 = vmatprep.mubr.bf16.mxu0 0
      %2229 = vmatmul.mubr.bf16.gmra.mrb[0].mxu0 %v2071
      %v2230 = vpop.f32.mrb[0].mxu0
      %v2231 = vadd.f32 0.0, %v2230
      %v2232 = vpop.f32.mrb[0].mxu0
      %v2233 = vpop.f32.mrb[0].mxu0
      %v2234 = vadd.f32 0.0, %v2233
      %v2235 = vpop.f32.mrb[0].mxu0
      %2236 = vdwg.mxu0
      %v2237 = vadd.f32 %v1937, %v2111
      %v2238 = vadd.f32 %v1940, %v2114
      %v2239 = vadd.f32 %v1945, %v2119
      %v2240 = vadd.f32 %v1948, %v2122
      %v2241 = vadd.f32 %v1953, %v2127
      %v2242 = vadd.f32 %v1956, %v2130
      %v2243 = vadd.f32 %v1961, %v2135
      %v2244 = vadd.f32 %v1964, %v2138
      %v2245 = vadd.f32 %v1969, %v2143
      %v2246 = vadd.f32 %v1972, %v2146
      %v2247 = vadd.f32 %v1977, %v2151
      %v2248 = vadd.f32 %v1980, %v2154
      %v2249 = vadd.f32 %v1985, %v2159
      %v2250 = vadd.f32 %v1988, %v2162
      %v2251 = vadd.f32 %v1993, %v2167
      %v2252 = vadd.f32 %v1996, %v2170
      %v2253 = vadd.f32 %v2001, %v2175
      %v2254 = vadd.f32 %v2004, %v2178
      %v2255 = vadd.f32 %v2009, %v2183
      %v2256 = vadd.f32 %v2012, %v2186
      %v2257 = vadd.f32 %v2017, %v2191
      %v2258 = vadd.f32 %v2020, %v2194
      %v2259 = vadd.f32 %v2025, %v2199
      %v2260 = vadd.f32 %v2028, %v2202
      %v2261 = vadd.f32 %v2033, %v2207
      %v2262 = vadd.f32 %v2036, %v2210
      %v2263 = vadd.f32 %v2041, %v2215
      %v2264 = vadd.f32 %v2044, %v2218
      %v2265 = vadd.f32 %v2049, %v2223
      %v2266 = vadd.f32 %v2052, %v2226
      %v2267 = vadd.f32 %v2057, %v2231
      %v2268 = vadd.f32 %v2060, %v2234
      %v2269 = vld [vmem:[%s3] sm:$0x1]
      %v2271 = vlaneseq
      %v2272 = vshrl.u32 %v2271, 7
      %v2273 = vsub.s32 0, %v2272
      %v2274 = vrot.slane %v2269, %v2273
      %v2276 = vadd.f32 %v2237, %v2274
      %v2277 = vadd.f32 %v2238, %v2274
      %v2278 = vadd.f32 %v2239, %v2274
      %v2279 = vadd.f32 %v2240, %v2274
      %v2280 = vadd.f32 %v2241, %v2274
      %v2281 = vadd.f32 %v2242, %v2274
      %v2282 = vadd.f32 %v2243, %v2274
      %v2283 = vadd.f32 %v2244, %v2274
      %v2284 = vadd.f32 %v2245, %v2274
      %v2285 = vadd.f32 %v2246, %v2274
      %v2286 = vadd.f32 %v2247, %v2274
      %v2287 = vadd.f32 %v2248, %v2274
      %v2288 = vadd.f32 %v2249, %v2274
      %v2289 = vadd.f32 %v2250, %v2274
      %v2290 = vadd.f32 %v2251, %v2274
      %v2291 = vadd.f32 %v2252, %v2274
      %v2292 = vadd.f32 %v2253, %v2274
      %v2293 = vadd.f32 %v2254, %v2274
      %v2294 = vadd.f32 %v2255, %v2274
      %v2295 = vadd.f32 %v2256, %v2274
      %v2296 = vadd.f32 %v2257, %v2274
      %v2297 = vadd.f32 %v2258, %v2274
      %v2298 = vadd.f32 %v2259, %v2274
      %v2299 = vadd.f32 %v2260, %v2274
      %v2300 = vadd.f32 %v2261, %v2274
      %v2301 = vadd.f32 %v2262, %v2274
      %v2302 = vadd.f32 %v2263, %v2274
      %v2303 = vadd.f32 %v2264, %v2274
      %v2304 = vadd.f32 %v2265, %v2274
      %v2305 = vadd.f32 %v2266, %v2274
      %v2306 = vadd.f32 %v2267, %v2274
      %v2307 = vadd.f32 %v2268, %v2274
      %v2308 = vmax.f32 %v2276, 0.0
      %v2309 = vmax.f32 %v2277, 0.0
      %v2310 = vmax.f32 %v2278, 0.0
      %v2311 = vmax.f32 %v2279, 0.0
      %v2312 = vmax.f32 %v2280, 0.0
      %v2313 = vmax.f32 %v2281, 0.0
      %v2314 = vmax.f32 %v2282, 0.0
      %v2315 = vmax.f32 %v2283, 0.0
      %v2316 = vmax.f32 %v2284, 0.0
      %v2317 = vmax.f32 %v2285, 0.0
      %v2318 = vmax.f32 %v2286, 0.0
      %v2319 = vmax.f32 %v2287, 0.0
      %v2320 = vmax.f32 %v2288, 0.0
      %v2321 = vmax.f32 %v2289, 0.0
      %v2322 = vmax.f32 %v2290, 0.0
      %v2323 = vmax.f32 %v2291, 0.0
      %v2324 = vmax.f32 %v2292, 0.0
      %v2325 = vmax.f32 %v2293, 0.0
      %v2326 = vmax.f32 %v2294, 0.0
      %v2327 = vmax.f32 %v2295, 0.0
      %v2328 = vmax.f32 %v2296, 0.0
      %v2329 = vmax.f32 %v2297, 0.0
      %v2330 = vmax.f32 %v2298, 0.0
      %v2331 = vmax.f32 %v2299, 0.0
      %v2332 = vmax.f32 %v2300, 0.0
      %v2333 = vmax.f32 %v2301, 0.0
      %v2334 = vmax.f32 %v2302, 0.0
      %v2335 = vmax.f32 %v2303, 0.0
      %v2336 = vmax.f32 %v2304, 0.0
      %v2337 = vmax.f32 %v2305, 0.0
      %v2338 = vmax.f32 %v2306, 0.0
      %v2339 = vmax.f32 %v2307, 0.0
      %2340 = vst.msk [vmem:[#allocation3] sm:$0xf] %vm258, 0
      %2341 = vst.msk [vmem:[#allocation3 + $0x4] sm:$0xf] %vm258, 0
      %2342 = vst.msk [vmem:[#allocation3 + $0x8] sm:$0xf] %vm258, 0
      %s2343 = scalar_lea.vmem [#allocation3], 204
      %2344 = vst.msk [vmem:[%s2343] sm:$0xf] %vm258, 0
      %2345 = vst.msk [vmem:[%s2343 + $0x4] sm:$0xf] %vm258, 0
      %2346 = vst.msk [vmem:[%s2343 + $0x8] sm:$0xf] %vm258, 0
      %v2347 = vpack.c.bf16 %v2309, %v2308
      %v2348 = vpack.c.bf16 %v2311, %v2310
      %v2349 = vpack.c.bf16 %v2313, %v2312
      %v2350 = vpack.c.bf16 %v2315, %v2314
      %v2351 = vpack.c.bf16 %v2317, %v2316
      %v2352 = vpack.c.bf16 %v2319, %v2318
      %v2353 = vpack.c.bf16 %v2321, %v2320
      %v2354 = vpack.c.bf16 %v2323, %v2322
      %v2355 = vpack.c.bf16 %v2325, %v2324
      %v2356 = vpack.c.bf16 %v2327, %v2326
      %v2357 = vpack.c.bf16 %v2329, %v2328
      %v2358 = vpack.c.bf16 %v2331, %v2330
      %v2359 = vpack.c.bf16 %v2333, %v2332
      %v2360 = vpack.c.bf16 %v2335, %v2334
      %v2361 = vpack.c.bf16 %v2337, %v2336
      %v2362 = vpack.c.bf16 %v2339, %v2338
      %v2364 = vshrl.u32 %v2347, 16
      %v2366 = vrot.slane %v2364, 7
      %v2367 = vshll.u32 %v2347, 16
      %v2369 = vor.u32 %v2366, %v2367
      %v2371 = vshrl.u32 %v2348, 16
      %v2373 = vrot.slane %v2371, 7
      %v2374 = vshll.u32 %v2348, 16
      %v2376 = vor.u32 %v2373, %v2374
      %v2378 = vshrl.u32 %v2349, 16
      %v2380 = vrot.slane %v2378, 7
      %v2381 = vshll.u32 %v2349, 16
      %v2383 = vor.u32 %v2380, %v2381
      %v2385 = vshrl.u32 %v2350, 16
      %v2387 = vrot.slane %v2385, 7
      %v2388 = vshll.u32 %v2350, 16
      %v2390 = vor.u32 %v2387, %v2388
      %v2392 = vshrl.u32 %v2351, 16
      %v2394 = vrot.slane %v2392, 7
      %v2395 = vshll.u32 %v2351, 16
      %v2397 = vor.u32 %v2394, %v2395
      %v2399 = vshrl.u32 %v2352, 16
      %v2401 = vrot.slane %v2399, 7
      %v2402 = vshll.u32 %v2352, 16
      %v2404 = vor.u32 %v2401, %v2402
      %v2406 = vshrl.u32 %v2353, 16
      %v2408 = vrot.slane %v2406, 7
      %v2409 = vshll.u32 %v2353, 16
      %v2411 = vor.u32 %v2408, %v2409
      %v2413 = vshrl.u32 %v2354, 16
      %v2415 = vrot.slane %v2413, 7
      %v2416 = vshll.u32 %v2354, 16
      %v2418 = vor.u32 %v2415, %v2416
      %v2420 = vshrl.u32 %v2355, 16
      %v2422 = vrot.slane %v2420, 7
      %v2423 = vshll.u32 %v2355, 16
      %v2425 = vor.u32 %v2422, %v2423
      %v2427 = vshrl.u32 %v2356, 16
      %v2429 = vrot.slane %v2427, 7
      %v2430 = vshll.u32 %v2356, 16
      %v2432 = vor.u32 %v2429, %v2430
      %v2434 = vshrl.u32 %v2357, 16
      %v2436 = vrot.slane %v2434, 7
      %v2437 = vshll.u32 %v2357, 16
      %v2439 = vor.u32 %v2436, %v2437
      %v2441 = vshrl.u32 %v2358, 16
      %v2443 = vrot.slane %v2441, 7
      %v2444 = vshll.u32 %v2358, 16
      %v2446 = vor.u32 %v2443, %v2444
      %v2448 = vshrl.u32 %v2359, 16
      %v2450 = vrot.slane %v2448, 7
      %v2451 = vshll.u32 %v2359, 16
      %v2453 = vor.u32 %v2450, %v2451
      %v2455 = vshrl.u32 %v2360, 16
      %v2457 = vrot.slane %v2455, 7
      %v2458 = vshll.u32 %v2360, 16
      %v2460 = vor.u32 %v2457, %v2458
      %v2462 = vshrl.u32 %v2361, 16
      %v2464 = vrot.slane %v2462, 7
      %v2465 = vshll.u32 %v2361, 16
      %v2467 = vor.u32 %v2464, %v2465
      %v2469 = vshrl.u32 %v2362, 16
      %v2471 = vrot.slane %v2469, 7
      %v2472 = vshll.u32 %v2362, 16
      %v2474 = vor.u32 %v2471, %v2472
      %v2507 = vsel %vm428, 0, %v2369
      %v2508 = vsel %vm428, 0, %v2376
      %v2509 = vsel %vm428, 0, %v2383
      %v2510 = vsel %vm428, 0, %v2390
      %v2511 = vsel %vm428, 0, %v2397
      %v2512 = vsel %vm428, 0, %v2404
      %v2513 = vsel %vm428, 0, %v2411
      %v2514 = vsel %vm428, 0, %v2418
      %v2515 = vsel %vm428, 0, %v2425
      %v2516 = vsel %vm428, 0, %v2432
      %v2517 = vsel %vm428, 0, %v2439
      %v2518 = vsel %vm428, 0, %v2446
      %v2519 = vsel %vm428, 0, %v2453
      %v2520 = vsel %vm428, 0, %v2460
      %v2521 = vsel %vm428, 0, %v2467
      %v2522 = vsel %vm428, 0, %v2474
      %v2523 = vsel %vm428, %v2366, 0
      %v2524 = vsel %vm428, %v2373, 0
      %v2525 = vsel %vm428, %v2380, 0
      %v2526 = vsel %vm428, %v2387, 0
      %v2527 = vsel %vm428, %v2394, 0
      %v2528 = vsel %vm428, %v2401, 0
      %v2529 = vsel %vm428, %v2408, 0
      %v2530 = vsel %vm428, %v2415, 0
      %v2531 = vsel %vm428, %v2422, 0
      %v2532 = vsel %vm428, %v2429, 0
      %v2533 = vsel %vm428, %v2436, 0
      %v2534 = vsel %vm428, %v2443, 0
      %v2535 = vsel %vm428, %v2450, 0
      %v2536 = vsel %vm428, %v2457, 0
      %v2537 = vsel %vm428, %v2464, 0
      %v2538 = vsel %vm428, %v2471, 0
      %v2571 = vunpack.c.l.b16 %v2507
      %v2572 = vunpack.c.h.b16 %v2507
      %v2573 = vunpack.c.l.b16 %v2523
      %v2574 = vunpack.c.l.b16 %v2508
      %v2575 = vunpack.c.h.b16 %v2508
      %v2576 = vunpack.c.l.b16 %v2524
      %v2577 = vunpack.c.l.b16 %v2509
      %v2578 = vunpack.c.h.b16 %v2509
      %v2579 = vunpack.c.l.b16 %v2525
      %v2580 = vunpack.c.l.b16 %v2510
      %v2581 = vunpack.c.h.b16 %v2510
      %v2582 = vunpack.c.l.b16 %v2526
      %v2583 = vunpack.c.l.b16 %v2511
      %v2584 = vunpack.c.h.b16 %v2511
      %v2585 = vunpack.c.l.b16 %v2527
      %v2586 = vunpack.c.l.b16 %v2512
      %v2587 = vunpack.c.h.b16 %v2512
      %v2588 = vunpack.c.l.b16 %v2528
      %v2589 = vunpack.c.l.b16 %v2513
      %v2590 = vunpack.c.h.b16 %v2513
      %v2591 = vunpack.c.l.b16 %v2529
      %v2592 = vunpack.c.l.b16 %v2514
      %v2593 = vunpack.c.h.b16 %v2514
      %v2594 = vunpack.c.l.b16 %v2530
      %v2595 = vunpack.c.l.b16 %v2515
      %v2596 = vunpack.c.h.b16 %v2515
      %v2597 = vunpack.c.l.b16 %v2531
      %v2598 = vunpack.c.l.b16 %v2516
      %v2599 = vunpack.c.h.b16 %v2516
      %v2600 = vunpack.c.l.b16 %v2532
      %v2601 = vunpack.c.l.b16 %v2517
      %v2602 = vunpack.c.h.b16 %v2517
      %v2603 = vunpack.c.l.b16 %v2533
      %v2604 = vunpack.c.l.b16 %v2518
      %v2605 = vunpack.c.h.b16 %v2518
      %v2606 = vunpack.c.l.b16 %v2534
      %v2607 = vunpack.c.l.b16 %v2519
      %v2608 = vunpack.c.h.b16 %v2519
      %v2609 = vunpack.c.l.b16 %v2535
      %v2610 = vunpack.c.l.b16 %v2520
      %v2611 = vunpack.c.h.b16 %v2520
      %v2612 = vunpack.c.l.b16 %v2536
      %v2613 = vunpack.c.l.b16 %v2521
      %v2614 = vunpack.c.h.b16 %v2521
      %v2615 = vunpack.c.l.b16 %v2537
      %v2616 = vunpack.c.l.b16 %v2522
      %v2617 = vunpack.c.h.b16 %v2522
      %v2618 = vunpack.c.l.b16 %v2538
      %v2619 = vpack.c.b16 %v2571, %v2571
      %v2620 = vpack.c.b16 %v2572, %v2572
      %v2621 = vpack.c.b16 %v2573, %v2573
      %v2622 = vpack.c.b16 %v2574, %v2574
      %v2623 = vpack.c.b16 %v2575, %v2575
      %v2624 = vpack.c.b16 %v2576, %v2576
      %v2625 = vpack.c.b16 %v2577, %v2577
      %v2626 = vpack.c.b16 %v2578, %v2578
      %v2627 = vpack.c.b16 %v2579, %v2579
      %v2628 = vpack.c.b16 %v2580, %v2580
      %v2629 = vpack.c.b16 %v2581, %v2581
      %v2630 = vpack.c.b16 %v2582, %v2582
      %v2631 = vpack.c.b16 %v2583, %v2583
      %v2632 = vpack.c.b16 %v2584, %v2584
      %v2633 = vpack.c.b16 %v2585, %v2585
      %v2634 = vpack.c.b16 %v2586, %v2586
      %v2635 = vpack.c.b16 %v2587, %v2587
      %v2636 = vpack.c.b16 %v2588, %v2588
      %v2637 = vpack.c.b16 %v2589, %v2589
      %v2638 = vpack.c.b16 %v2590, %v2590
      %v2639 = vpack.c.b16 %v2591, %v2591
      %v2640 = vpack.c.b16 %v2592, %v2592
      %v2641 = vpack.c.b16 %v2593, %v2593
      %v2642 = vpack.c.b16 %v2594, %v2594
      %v2643 = vpack.c.b16 %v2595, %v2595
      %v2644 = vpack.c.b16 %v2596, %v2596
      %v2645 = vpack.c.b16 %v2597, %v2597
      %v2646 = vpack.c.b16 %v2598, %v2598
      %v2647 = vpack.c.b16 %v2599, %v2599
      %v2648 = vpack.c.b16 %v2600, %v2600
      %v2649 = vpack.c.b16 %v2601, %v2601
      %v2650 = vpack.c.b16 %v2602, %v2602
      %v2651 = vpack.c.b16 %v2603, %v2603
      %v2652 = vpack.c.b16 %v2604, %v2604
      %v2653 = vpack.c.b16 %v2605, %v2605
      %v2654 = vpack.c.b16 %v2606, %v2606
      %v2655 = vpack.c.b16 %v2607, %v2607
      %v2656 = vpack.c.b16 %v2608, %v2608
      %v2657 = vpack.c.b16 %v2609, %v2609
      %v2658 = vpack.c.b16 %v2610, %v2610
      %v2659 = vpack.c.b16 %v2611, %v2611
      %v2660 = vpack.c.b16 %v2612, %v2612
      %v2661 = vpack.c.b16 %v2613, %v2613
      %v2662 = vpack.c.b16 %v2614, %v2614
      %v2663 = vpack.c.b16 %v2615, %v2615
      %v2664 = vpack.c.b16 %v2616, %v2616
      %v2665 = vpack.c.b16 %v2617, %v2617
      %v2666 = vpack.c.b16 %v2618, %v2618
      %s2715 = scalar_lea.vmem [#allocation3], 12
      %2716 = vst.msk [vmem:[%s2715] sm:$0xf] %vm258, %v2619
      %2717 = vst.msk [vmem:[%s2715 + $0x4] sm:$0xf] %vm258, %v2620
      %2718 = vst.msk [vmem:[%s2715 + $0x8] sm:$0xf] %vm258, %v2621
      %2719 = vst.msk [vmem:[%s2715 + $0xc] sm:$0xf] %vm258, %v2622
      %2720 = vst.msk [vmem:[%s2715 + $0x10] sm:$0xf] %vm258, %v2623
      %2721 = vst.msk [vmem:[%s2715 + $0x14] sm:$0xf] %vm258, %v2624
      %2722 = vst.msk [vmem:[%s2715 + $0x18] sm:$0xf] %vm258, %v2625
      %2723 = vst.msk [vmem:[%s2715 + $0x1c] sm:$0xf] %vm258, %v2626
      %2724 = vst.msk [vmem:[%s2715 + $0x20] sm:$0xf] %vm258, %v2627
      %2725 = vst.msk [vmem:[%s2715 + $0x24] sm:$0xf] %vm258, %v2628
      %2726 = vst.msk [vmem:[%s2715 + $0x28] sm:$0xf] %vm258, %v2629
      %2727 = vst.msk [vmem:[%s2715 + $0x2c] sm:$0xf] %vm258, %v2630
      %2728 = vst.msk [vmem:[%s2715 + $0x30] sm:$0xf] %vm258, %v2631
      %2729 = vst.msk [vmem:[%s2715 + $0x34] sm:$0xf] %vm258, %v2632
      %2730 = vst.msk [vmem:[%s2715 + $0x38] sm:$0xf] %vm258, %v2633
      %2731 = vst.msk [vmem:[%s2715 + $0x3c] sm:$0xf] %vm258, %v2634
      %2732 = vst.msk [vmem:[%s2715 + $0x40] sm:$0xf] %vm258, %v2635
      %2733 = vst.msk [vmem:[%s2715 + $0x44] sm:$0xf] %vm258, %v2636
      %2734 = vst.msk [vmem:[%s2715 + $0x48] sm:$0xf] %vm258, %v2637
      %2735 = vst.msk [vmem:[%s2715 + $0x4c] sm:$0xf] %vm258, %v2638
      %2736 = vst.msk [vmem:[%s2715 + $0x50] sm:$0xf] %vm258, %v2639
      %2737 = vst.msk [vmem:[%s2715 + $0x54] sm:$0xf] %vm258, %v2640
      %2738 = vst.msk [vmem:[%s2715 + $0x58] sm:$0xf] %vm258, %v2641
      %2739 = vst.msk [vmem:[%s2715 + $0x5c] sm:$0xf] %vm258, %v2642
      %2740 = vst.msk [vmem:[%s2715 + $0x60] sm:$0xf] %vm258, %v2643
      %2741 = vst.msk [vmem:[%s2715 + $0x64] sm:$0xf] %vm258, %v2644
      %2742 = vst.msk [vmem:[%s2715 + $0x68] sm:$0xf] %vm258, %v2645
      %2743 = vst.msk [vmem:[%s2715 + $0x6c] sm:$0xf] %vm258, %v2646
      %2744 = vst.msk [vmem:[%s2715 + $0x70] sm:$0xf] %vm258, %v2647
      %2745 = vst.msk [vmem:[%s2715 + $0x74] sm:$0xf] %vm258, %v2648
      %2746 = vst.msk [vmem:[%s2715 + $0x78] sm:$0xf] %vm258, %v2649
      %2747 = vst.msk [vmem:[%s2715 + $0x7c] sm:$0xf] %vm258, %v2650
      %2748 = vst.msk [vmem:[%s2715 + $0x80] sm:$0xf] %vm258, %v2651
      %2749 = vst.msk [vmem:[%s2715 + $0x84] sm:$0xf] %vm258, %v2652
      %2750 = vst.msk [vmem:[%s2715 + $0x88] sm:$0xf] %vm258, %v2653
      %2751 = vst.msk [vmem:[%s2715 + $0x8c] sm:$0xf] %vm258, %v2654
      %2752 = vst.msk [vmem:[%s2715 + $0x90] sm:$0xf] %vm258, %v2655
      %2753 = vst.msk [vmem:[%s2715 + $0x94] sm:$0xf] %vm258, %v2656
      %2754 = vst.msk [vmem:[%s2715 + $0x98] sm:$0xf] %vm258, %v2657
      %2755 = vst.msk [vmem:[%s2715 + $0x9c] sm:$0xf] %vm258, %v2658
      %2756 = vst.msk [vmem:[%s2715 + $0xa0] sm:$0xf] %vm258, %v2659
      %2757 = vst.msk [vmem:[%s2715 + $0xa4] sm:$0xf] %vm258, %v2660
      %2758 = vst.msk [vmem:[%s2715 + $0xa8] sm:$0xf] %vm258, %v2661
      %2759 = vst.msk [vmem:[%s2715 + $0xac] sm:$0xf] %vm258, %v2662
      %2760 = vst.msk [vmem:[%s2715 + $0xb0] sm:$0xf] %vm258, %v2663
      %2761 = vst.msk [vmem:[%s2715 + $0xb4] sm:$0xf] %vm258, %v2664
      %2762 = vst.msk [vmem:[%s2715 + $0xb8] sm:$0xf] %vm258, %v2665
      %2763 = vst.msk [vmem:[%s2715 + $0xbc] sm:$0xf] %vm258, %v2666
      %v2764 = vld [vmem:[#allocation3] sm:$0xf]
      %v2765 = vld [vmem:[#allocation3 + $0x4] sm:$0xf]
      %v2766 = vld [vmem:[#allocation3 + $0x8] sm:$0xf]
      %v2767 = vld [vmem:[#allocation3 + $0xc] sm:$0xf]
      %v2768 = vld [vmem:[#allocation3 + $0x10] sm:$0xf]
      %v2769 = vld [vmem:[#allocation3 + $0x14] sm:$0xf]
      %v2770 = vld [vmem:[#allocation3 + $0x18] sm:$0xf]
      %v2771 = vld [vmem:[#allocation3 + $0x1c] sm:$0xf]
      %v2772 = vld [vmem:[#allocation3 + $0x20] sm:$0xf]
      %v2773 = vld [vmem:[#allocation3 + $0x24] sm:$0xf]
      %v2774 = vld [vmem:[#allocation3 + $0x28] sm:$0xf]
      %v2775 = vld [vmem:[#allocation3 + $0x2c] sm:$0xf]
      %v2776 = vld [vmem:[#allocation3 + $0x30] sm:$0xf]
      %v2777 = vld [vmem:[#allocation3 + $0x34] sm:$0xf]
      %v2778 = vld [vmem:[#allocation3 + $0x38] sm:$0xf]
      %v2779 = vld [vmem:[#allocation3 + $0x3c] sm:$0xf]
      %v2780 = vld [vmem:[#allocation3 + $0x40] sm:$0xf]
      %v2781 = vld [vmem:[#allocation3 + $0x44] sm:$0xf]
      %v2782 = vld [vmem:[#allocation3 + $0x48] sm:$0xf]
      %v2783 = vld [vmem:[#allocation3 + $0x4c] sm:$0xf]
      %v2784 = vld [vmem:[#allocation3 + $0x50] sm:$0xf]
      %v2785 = vld [vmem:[#allocation3 + $0x54] sm:$0xf]
      %v2786 = vld [vmem:[#allocation3 + $0x58] sm:$0xf]
      %v2787 = vld [vmem:[#allocation3 + $0x5c] sm:$0xf]
      %v2788 = vld [vmem:[#allocation3 + $0x60] sm:$0xf]
      %v2789 = vld [vmem:[#allocation3 + $0x64] sm:$0xf]
      %v2790 = vld [vmem:[#allocation3 + $0x68] sm:$0xf]
      %v2791 = vld [vmem:[#allocation3 + $0x6c] sm:$0xf]
      %v2792 = vld [vmem:[#allocation3 + $0x70] sm:$0xf]
      %v2793 = vld [vmem:[#allocation3 + $0x74] sm:$0xf]
      %v2794 = vld [vmem:[#allocation3 + $0x78] sm:$0xf]
      %v2795 = vld [vmem:[#allocation3 + $0x7c] sm:$0xf]
      %v2796 = vld [vmem:[#allocation3 + $0x80] sm:$0xf]
      %v2797 = vld [vmem:[#allocation3 + $0x84] sm:$0xf]
      %v2798 = vld [vmem:[#allocation3 + $0x88] sm:$0xf]
      %v2799 = vld [vmem:[#allocation3 + $0x8c] sm:$0xf]
      %v2800 = vld [vmem:[#allocation3 + $0x90] sm:$0xf]
      %v2801 = vld [vmem:[#allocation3 + $0x94] sm:$0xf]
      %v2802 = vld [vmem:[#allocation3 + $0x98] sm:$0xf]
      %v2803 = vld [vmem:[#allocation3 + $0x9c] sm:$0xf]
      %v2804 = vld [vmem:[#allocation3 + $0xa0] sm:$0xf]
      %v2805 = vld [vmem:[#allocation3 + $0xa4] sm:$0xf]
      %v2806 = vld [vmem:[#allocation3 + $0xa8] sm:$0xf]
      %v2807 = vld [vmem:[#allocation3 + $0xac] sm:$0xf]
      %v2808 = vld [vmem:[#allocation3 + $0xb0] sm:$0xf]
      %v2809 = vld [vmem:[#allocation3 + $0xb4] sm:$0xf]
      %v2810 = vld [vmem:[#allocation3 + $0xb8] sm:$0xf]
      %v2811 = vld [vmem:[#allocation3 + $0xbc] sm:$0xf]
      %v2812 = vld [vmem:[#allocation3 + $0xc0] sm:$0xf]
      %v2813 = vld [vmem:[#allocation3 + $0xc4] sm:$0xf]
      %v2814 = vld [vmem:[#allocation3 + $0xc8] sm:$0xf]
      %v2815 = vld [vmem:[#allocation3 + $0xcc] sm:$0xf]
      %v2816 = vld [vmem:[#allocation3 + $0xd0] sm:$0xf]
      %v2817 = vld [vmem:[#allocation3 + $0xd4] sm:$0xf]
      %v2819 = vshrl.u32 %v2764, 16
      %v2821 = vrot.slane %v2819, 4
      %v2822 = vshll.u32 %v2764, 16
      %v2824 = vrot.slane %v2822, 5
      %v2825 = vor.u32 %v2821, %v2824
      %v2826 = vrot.slane %v2825, 4
      %v2828 = vshll.u32 %v2765, 16
      %v2830 = vrot.slane %v2828, 5
      %v2831 = vsel %vm742, %v2826, %v2830
      %v2832 = vshrl.u32 %v2765, 16
      %v2834 = vrot.slane %v2832, 4
      %v2835 = vor.u32 %v2834, %v2830
      %v2836 = vrot.slane %v2835, 4
      %v2838 = vshll.u32 %v2766, 16
      %v2840 = vrot.slane %v2838, 5
      %v2841 = vsel %vm742, %v2836, %v2840
      %v2843 = vshrl.u32 %v2767, 16
      %v2845 = vrot.slane %v2843, 4
      %v2846 = vshll.u32 %v2767, 16
      %v2848 = vrot.slane %v2846, 5
      %v2849 = vor.u32 %v2845, %v2848
      %v2850 = vrot.slane %v2849, 4
      %v2852 = vshll.u32 %v2768, 16
      %v2854 = vrot.slane %v2852, 5
      %v2855 = vsel %vm742, %v2850, %v2854
      %v2856 = vshrl.u32 %v2768, 16
      %v2858 = vrot.slane %v2856, 4
      %v2859 = vor.u32 %v2858, %v2854
      %v2860 = vrot.slane %v2859, 4
      %v2862 = vshll.u32 %v2769, 16
      %v2864 = vrot.slane %v2862, 5
      %v2865 = vsel %vm742, %v2860, %v2864
      %v2867 = vshrl.u32 %v2770, 16
      %v2869 = vrot.slane %v2867, 4
      %v2870 = vshll.u32 %v2770, 16
      %v2872 = vrot.slane %v2870, 5
      %v2873 = vor.u32 %v2869, %v2872
      %v2874 = vrot.slane %v2873, 4
      %v2876 = vshll.u32 %v2771, 16
      %v2878 = vrot.slane %v2876, 5
      %v2879 = vsel %vm742, %v2874, %v2878
      %v2880 = vshrl.u32 %v2771, 16
      %v2882 = vrot.slane %v2880, 4
      %v2883 = vor.u32 %v2882, %v2878
      %v2884 = vrot.slane %v2883, 4
      %v2886 = vshll.u32 %v2772, 16
      %v2888 = vrot.slane %v2886, 5
      %v2889 = vsel %vm742, %v2884, %v2888
      %v2891 = vshrl.u32 %v2773, 16
      %v2893 = vrot.slane %v2891, 4
      %v2894 = vshll.u32 %v2773, 16
      %v2896 = vrot.slane %v2894, 5
      %v2897 = vor.u32 %v2893, %v2896
      %v2898 = vrot.slane %v2897, 4
      %v2900 = vshll.u32 %v2774, 16
      %v2902 = vrot.slane %v2900, 5
      %v2903 = vsel %vm742, %v2898, %v2902
      %v2904 = vshrl.u32 %v2774, 16
      %v2906 = vrot.slane %v2904, 4
      %v2907 = vor.u32 %v2906, %v2902
      %v2908 = vrot.slane %v2907, 4
      %v2910 = vshll.u32 %v2775, 16
      %v2912 = vrot.slane %v2910, 5
      %v2913 = vsel %vm742, %v2908, %v2912
      %v2915 = vshrl.u32 %v2776, 16
      %v2917 = vrot.slane %v2915, 4
      %v2918 = vshll.u32 %v2776, 16
      %v2920 = vrot.slane %v2918, 5
      %v2921 = vor.u32 %v2917, %v2920
      %v2922 = vrot.slane %v2921, 4
      %v2924 = vshll.u32 %v2777, 16
      %v2926 = vrot.slane %v2924, 5
      %v2927 = vsel %vm742, %v2922, %v2926
      %v2928 = vshrl.u32 %v2777, 16
      %v2930 = vrot.slane %v2928, 4
      %v2931 = vor.u32 %v2930, %v2926
      %v2932 = vrot.slane %v2931, 4
      %v2934 = vshll.u32 %v2778, 16
      %v2936 = vrot.slane %v2934, 5
      %v2937 = vsel %vm742, %v2932, %v2936
      %v2939 = vshrl.u32 %v2779, 16
      %v2941 = vrot.slane %v2939, 4
      %v2942 = vshll.u32 %v2779, 16
      %v2944 = vrot.slane %v2942, 5
      %v2945 = vor.u32 %v2941, %v2944
      %v2946 = vrot.slane %v2945, 4
      %v2948 = vshll.u32 %v2780, 16
      %v2950 = vrot.slane %v2948, 5
      %v2951 = vsel %vm742, %v2946, %v2950
      %v2952 = vshrl.u32 %v2780, 16
      %v2954 = vrot.slane %v2952, 4
      %v2955 = vor.u32 %v2954, %v2950
      %v2956 = vrot.slane %v2955, 4
      %v2958 = vshll.u32 %v2781, 16
      %v2960 = vrot.slane %v2958, 5
      %v2961 = vsel %vm742, %v2956, %v2960
      %v2963 = vshrl.u32 %v2782, 16
      %v2965 = vrot.slane %v2963, 4
      %v2966 = vshll.u32 %v2782, 16
      %v2968 = vrot.slane %v2966, 5
      %v2969 = vor.u32 %v2965, %v2968
      %v2970 = vrot.slane %v2969, 4
      %v2972 = vshll.u32 %v2783, 16
      %v2974 = vrot.slane %v2972, 5
      %v2975 = vsel %vm742, %v2970, %v2974
      %v2976 = vshrl.u32 %v2783, 16
      %v2978 = vrot.slane %v2976, 4
      %v2979 = vor.u32 %v2978, %v2974
      %v2980 = vrot.slane %v2979, 4
      %v2982 = vshll.u32 %v2784, 16
      %v2984 = vrot.slane %v2982, 5
      %v2985 = vsel %vm742, %v2980, %v2984
      %v2987 = vshrl.u32 %v2785, 16
      %v2989 = vrot.slane %v2987, 4
      %v2990 = vshll.u32 %v2785, 16
      %v2992 = vrot.slane %v2990, 5
      %v2993 = vor.u32 %v2989, %v2992
      %v2994 = vrot.slane %v2993, 4
      %v2996 = vshll.u32 %v2786, 16
      %v2998 = vrot.slane %v2996, 5
      %v2999 = vsel %vm742, %v2994, %v2998
      %v3000 = vshrl.u32 %v2786, 16
      %v3002 = vrot.slane %v3000, 4
      %v3003 = vor.u32 %v3002, %v2998
      %v3004 = vrot.slane %v3003, 4
      %v3006 = vshll.u32 %v2787, 16
      %v3008 = vrot.slane %v3006, 5
      %v3009 = vsel %vm742, %v3004, %v3008
      %v3011 = vshrl.u32 %v2788, 16
      %v3013 = vrot.slane %v3011, 4
      %v3014 = vshll.u32 %v2788, 16
      %v3016 = vrot.slane %v3014, 5
      %v3017 = vor.u32 %v3013, %v3016
      %v3018 = vrot.slane %v3017, 4
      %v3020 = vshll.u32 %v2789, 16
      %v3022 = vrot.slane %v3020, 5
      %v3023 = vsel %vm742, %v3018, %v3022
      %v3024 = vshrl.u32 %v2789, 16
      %v3026 = vrot.slane %v3024, 4
      %v3027 = vor.u32 %v3026, %v3022
      %v3028 = vrot.slane %v3027, 4
      %v3030 = vshll.u32 %v2790, 16
      %v3032 = vrot.slane %v3030, 5
      %v3033 = vsel %vm742, %v3028, %v3032
      %v3035 = vshrl.u32 %v2791, 16
      %v3037 = vrot.slane %v3035, 4
      %v3038 = vshll.u32 %v2791, 16
      %v3040 = vrot.slane %v3038, 5
      %v3041 = vor.u32 %v3037, %v3040
      %v3042 = vrot.slane %v3041, 4
      %v3044 = vshll.u32 %v2792, 16
      %v3046 = vrot.slane %v3044, 5
      %v3047 = vsel %vm742, %v3042, %v3046
      %v3048 = vshrl.u32 %v2792, 16
      %v3050 = vrot.slane %v3048, 4
      %v3051 = vor.u32 %v3050, %v3046
      %v3052 = vrot.slane %v3051, 4
      %v3054 = vshll.u32 %v2793, 16
      %v3056 = vrot.slane %v3054, 5
      %v3057 = vsel %vm742, %v3052, %v3056
      %v3059 = vshrl.u32 %v2794, 16
      %v3061 = vrot.slane %v3059, 4
      %v3062 = vshll.u32 %v2794, 16
      %v3064 = vrot.slane %v3062, 5
      %v3065 = vor.u32 %v3061, %v3064
      %v3066 = vrot.slane %v3065, 4
      %v3068 = vshll.u32 %v2795, 16
      %v3070 = vrot.slane %v3068, 5
      %v3071 = vsel %vm742, %v3066, %v3070
      %v3072 = vshrl.u32 %v2795, 16
      %v3074 = vrot.slane %v3072, 4
      %v3075 = vor.u32 %v3074, %v3070
      %v3076 = vrot.slane %v3075, 4
      %v3078 = vshll.u32 %v2796, 16
      %v3080 = vrot.slane %v3078, 5
      %v3081 = vsel %vm742, %v3076, %v3080
      %v3083 = vshrl.u32 %v2797, 16
      %v3085 = vrot.slane %v3083, 4
      %v3086 = vshll.u32 %v2797, 16
      %v3088 = vrot.slane %v3086, 5
      %v3089 = vor.u32 %v3085, %v3088
      %v3090 = vrot.slane %v3089, 4
      %v3092 = vshll.u32 %v2798, 16
      %v3094 = vrot.slane %v3092, 5
      %v3095 = vsel %vm742, %v3090, %v3094
      %v3096 = vshrl.u32 %v2798, 16
      %v3098 = vrot.slane %v3096, 4
      %v3099 = vor.u32 %v3098, %v3094
      %v3100 = vrot.slane %v3099, 4
      %v3102 = vshll.u32 %v2799, 16
      %v3104 = vrot.slane %v3102, 5
      %v3105 = vsel %vm742, %v3100, %v3104
      %v3107 = vshrl.u32 %v2800, 16
      %v3109 = vrot.slane %v3107, 4
      %v3110 = vshll.u32 %v2800, 16
      %v3112 = vrot.slane %v3110, 5
      %v3113 = vor.u32 %v3109, %v3112
      %v3114 = vrot.slane %v3113, 4
      %v3116 = vshll.u32 %v2801, 16
      %v3118 = vrot.slane %v3116, 5
      %v3119 = vsel %vm742, %v3114, %v3118
      %v3120 = vshrl.u32 %v2801, 16
      %v3122 = vrot.slane %v3120, 4
      %v3123 = vor.u32 %v3122, %v3118
      %v3124 = vrot.slane %v3123, 4
      %v3126 = vshll.u32 %v2802, 16
      %v3128 = vrot.slane %v3126, 5
      %v3129 = vsel %vm742, %v3124, %v3128
      %v3131 = vshrl.u32 %v2803, 16
      %v3133 = vrot.slane %v3131, 4
      %v3134 = vshll.u32 %v2803, 16
      %v3136 = vrot.slane %v3134, 5
      %v3137 = vor.u32 %v3133, %v3136
      %v3138 = vrot.slane %v3137, 4
      %v3140 = vshll.u32 %v2804, 16
      %v3142 = vrot.slane %v3140, 5
      %v3143 = vsel %vm742, %v3138, %v3142
      %v3144 = vshrl.u32 %v2804, 16
      %v3146 = vrot.slane %v3144, 4
      %v3147 = vor.u32 %v3146, %v3142
      %v3148 = vrot.slane %v3147, 4
      %v3150 = vshll.u32 %v2805, 16
      %v3152 = vrot.slane %v3150, 5
      %v3153 = vsel %vm742, %v3148, %v3152
      %v3155 = vshrl.u32 %v2806, 16
      %v3157 = vrot.slane %v3155, 4
      %v3158 = vshll.u32 %v2806, 16
      %v3160 = vrot.slane %v3158, 5
      %v3161 = vor.u32 %v3157, %v3160
      %v3162 = vrot.slane %v3161, 4
      %v3164 = vshll.u32 %v2807, 16
      %v3166 = vrot.slane %v3164, 5
      %v3167 = vsel %vm742, %v3162, %v3166
      %v3168 = vshrl.u32 %v2807, 16
      %v3170 = vrot.slane %v3168, 4
      %v3171 = vor.u32 %v3170, %v3166
      %v3172 = vrot.slane %v3171, 4
      %v3174 = vshll.u32 %v2808, 16
      %v3176 = vrot.slane %v3174, 5
      %v3177 = vsel %vm742, %v3172, %v3176
      %v3179 = vshrl.u32 %v2809, 16
      %v3181 = vrot.slane %v3179, 4
      %v3182 = vshll.u32 %v2809, 16
      %v3184 = vrot.slane %v3182, 5
      %v3185 = vor.u32 %v3181, %v3184
      %v3186 = vrot.slane %v3185, 4
      %v3188 = vshll.u32 %v2810, 16
      %v3190 = vrot.slane %v3188, 5
      %v3191 = vsel %vm742, %v3186, %v3190
      %v3192 = vshrl.u32 %v2810, 16
      %v3194 = vrot.slane %v3192, 4
      %v3195 = vor.u32 %v3194, %v3190
      %v3196 = vrot.slane %v3195, 4
      %v3198 = vshll.u32 %v2811, 16
      %v3200 = vrot.slane %v3198, 5
      %v3201 = vsel %vm742, %v3196, %v3200
      %v3203 = vshrl.u32 %v2812, 16
      %v3205 = vrot.slane %v3203, 4
      %v3206 = vshll.u32 %v2812, 16
      %v3208 = vrot.slane %v3206, 5
      %v3209 = vor.u32 %v3205, %v3208
      %v3210 = vrot.slane %v3209, 4
      %v3212 = vshll.u32 %v2813, 16
      %v3214 = vrot.slane %v3212, 5
      %v3215 = vsel %vm742, %v3210, %v3214
      %v3216 = vshrl.u32 %v2813, 16
      %v3218 = vrot.slane %v3216, 4
      %v3219 = vor.u32 %v3218, %v3214
      %v3220 = vrot.slane %v3219, 4
      %v3222 = vshll.u32 %v2814, 16
      %v3224 = vrot.slane %v3222, 5
      %v3225 = vsel %vm742, %v3220, %v3224
      %v3227 = vshrl.u32 %v2815, 16
      %v3229 = vrot.slane %v3227, 4
      %v3230 = vshll.u32 %v2815, 16
      %v3232 = vrot.slane %v3230, 5
      %v3233 = vor.u32 %v3229, %v3232
      %v3234 = vrot.slane %v3233, 4
      %v3236 = vshll.u32 %v2816, 16
      %v3238 = vrot.slane %v3236, 5
      %v3239 = vsel %vm742, %v3234, %v3238
      %v3240 = vshrl.u32 %v2816, 16
      %v3242 = vrot.slane %v3240, 4
      %v3243 = vor.u32 %v3242, %v3238
      %v3244 = vrot.slane %v3243, 4
      %v3246 = vshll.u32 %v2817, 16
      %v3248 = vrot.slane %v3246, 5
      %v3249 = vsel %vm742, %v3244, %v3248
      %v3304 = vrot.slane %v2764, 5
      %v3305 = vrot.slane %v3304, 4
      %v3306 = vrot.slane %v2765, 5
      %v3307 = vsel %vm1231, %v3305, %v3306
      %v3308 = vrot.slane %v3306, 4
      %v3309 = vrot.slane %v2766, 5
      %v3310 = vsel %vm1231, %v3308, %v3309
      %v3311 = vrot.slane %v2767, 5
      %v3312 = vrot.slane %v3311, 4
      %v3313 = vrot.slane %v2768, 5
      %v3314 = vsel %vm1231, %v3312, %v3313
      %v3315 = vrot.slane %v3313, 4
      %v3316 = vrot.slane %v2769, 5
      %v3317 = vsel %vm1231, %v3315, %v3316
      %v3318 = vrot.slane %v2770, 5
      %v3319 = vrot.slane %v3318, 4
      %v3320 = vrot.slane %v2771, 5
      %v3321 = vsel %vm1231, %v3319, %v3320
      %v3322 = vrot.slane %v3320, 4
      %v3323 = vrot.slane %v2772, 5
      %v3324 = vsel %vm1231, %v3322, %v3323
      %v3325 = vrot.slane %v2773, 5
      %v3326 = vrot.slane %v3325, 4
      %v3327 = vrot.slane %v2774, 5
      %v3328 = vsel %vm1231, %v3326, %v3327
      %v3329 = vrot.slane %v3327, 4
      %v3330 = vrot.slane %v2775, 5
      %v3331 = vsel %vm1231, %v3329, %v3330
      %v3332 = vrot.slane %v2776, 5
      %v3333 = vrot.slane %v3332, 4
      %v3334 = vrot.slane %v2777, 5
      %v3335 = vsel %vm1231, %v3333, %v3334
      %v3336 = vrot.slane %v3334, 4
      %v3337 = vrot.slane %v2778, 5
      %v3338 = vsel %vm1231, %v3336, %v3337
      %v3339 = vrot.slane %v2779, 5
      %v3340 = vrot.slane %v3339, 4
      %v3341 = vrot.slane %v2780, 5
      %v3342 = vsel %vm1231, %v3340, %v3341
      %v3343 = vrot.slane %v3341, 4
      %v3344 = vrot.slane %v2781, 5
      %v3345 = vsel %vm1231, %v3343, %v3344
      %v3346 = vrot.slane %v2782, 5
      %v3347 = vrot.slane %v3346, 4
      %v3348 = vrot.slane %v2783, 5
      %v3349 = vsel %vm1231, %v3347, %v3348
      %v3350 = vrot.slane %v3348, 4
      %v3351 = vrot.slane %v2784, 5
      %v3352 = vsel %vm1231, %v3350, %v3351
      %v3353 = vrot.slane %v2785, 5
      %v3354 = vrot.slane %v3353, 4
      %v3355 = vrot.slane %v2786, 5
      %v3356 = vsel %vm1231, %v3354, %v3355
      %v3357 = vrot.slane %v3355, 4
      %v3358 = vrot.slane %v2787, 5
      %v3359 = vsel %vm1231, %v3357, %v3358
      %v3360 = vrot.slane %v2788, 5
      %v3361 = vrot.slane %v3360, 4
      %v3362 = vrot.slane %v2789, 5
      %v3363 = vsel %vm1231, %v3361, %v3362
      %v3364 = vrot.slane %v3362, 4
      %v3365 = vrot.slane %v2790, 5
      %v3366 = vsel %vm1231, %v3364, %v3365
      %v3367 = vrot.slane %v2791, 5
      %v3368 = vrot.slane %v3367, 4
      %v3369 = vrot.slane %v2792, 5
      %v3370 = vsel %vm1231, %v3368, %v3369
      %v3371 = vrot.slane %v3369, 4
      %v3372 = vrot.slane %v2793, 5
      %v3373 = vsel %vm1231, %v3371, %v3372
      %v3374 = vrot.slane %v2794, 5
      %v3375 = vrot.slane %v3374, 4
      %v3376 = vrot.slane %v2795, 5
      %v3377 = vsel %vm1231, %v3375, %v3376
      %v3378 = vrot.slane %v3376, 4
      %v3379 = vrot.slane %v2796, 5
      %v3380 = vsel %vm1231, %v3378, %v3379
      %v3381 = vrot.slane %v2797, 5
      %v3382 = vrot.slane %v3381, 4
      %v3383 = vrot.slane %v2798, 5
      %v3384 = vsel %vm1231, %v3382, %v3383
      %v3385 = vrot.slane %v3383, 4
      %v3386 = vrot.slane %v2799, 5
      %v3387 = vsel %vm1231, %v3385, %v3386
      %v3388 = vrot.slane %v2800, 5
      %v3389 = vrot.slane %v3388, 4
      %v3390 = vrot.slane %v2801, 5
      %v3391 = vsel %vm1231, %v3389, %v3390
      %v3392 = vrot.slane %v3390, 4
      %v3393 = vrot.slane %v2802, 5
      %v3394 = vsel %vm1231, %v3392, %v3393
      %v3395 = vrot.slane %v2803, 5
      %v3396 = vrot.slane %v3395, 4
      %v3397 = vrot.slane %v2804, 5
      %v3398 = vsel %vm1231, %v3396, %v3397
      %v3399 = vrot.slane %v3397, 4
      %v3400 = vrot.slane %v2805, 5
      %v3401 = vsel %vm1231, %v3399, %v3400
      %v3402 = vrot.slane %v2806, 5
      %v3403 = vrot.slane %v3402, 4
      %v3404 = vrot.slane %v2807, 5
      %v3405 = vsel %vm1231, %v3403, %v3404
      %v3406 = vrot.slane %v3404, 4
      %v3407 = vrot.slane %v2808, 5
      %v3408 = vsel %vm1231, %v3406, %v3407
      %v3409 = vrot.slane %v2809, 5
      %v3410 = vrot.slane %v3409, 4
      %v3411 = vrot.slane %v2810, 5
      %v3412 = vsel %vm1231, %v3410, %v3411
      %v3413 = vrot.slane %v3411, 4
      %v3414 = vrot.slane %v2811, 5
      %v3415 = vsel %vm1231, %v3413, %v3414
      %v3416 = vrot.slane %v2812, 5
      %v3417 = vrot.slane %v3416, 4
      %v3418 = vrot.slane %v2813, 5
      %v3419 = vsel %vm1231, %v3417, %v3418
      %v3420 = vrot.slane %v3418, 4
      %v3421 = vrot.slane %v2814, 5
      %v3422 = vsel %vm1231, %v3420, %v3421
      %v3423 = vrot.slane %v2815, 5
      %v3424 = vrot.slane %v3423, 4
      %v3425 = vrot.slane %v2816, 5
      %v3426 = vsel %vm1231, %v3424, %v3425
      %v3427 = vrot.slane %v3425, 4
      %v3428 = vrot.slane %v2817, 5
      %v3429 = vsel %vm1231, %v3427, %v3428
      %v3430 = vunpack.c.l.b16 %v2764
      %v3431 = vunpack.c.l.b16 %v2765
      %v3432 = vunpack.c.l.b16 %v2767
      %v3433 = vunpack.c.l.b16 %v2768
      %v3434 = vunpack.c.l.b16 %v2770
      %v3435 = vunpack.c.l.b16 %v2771
      %v3436 = vunpack.c.l.b16 %v2773
      %v3437 = vunpack.c.l.b16 %v2774
      %v3438 = vunpack.c.l.b16 %v2776
      %v3439 = vunpack.c.l.b16 %v2777
      %v3440 = vunpack.c.l.b16 %v2779
      %v3441 = vunpack.c.l.b16 %v2780
      %v3442 = vunpack.c.l.b16 %v2782
      %v3443 = vunpack.c.l.b16 %v2783
      %v3444 = vunpack.c.l.b16 %v2785
      %v3445 = vunpack.c.l.b16 %v2786
      %v3446 = vunpack.c.l.b16 %v2788
      %v3447 = vunpack.c.l.b16 %v2789
      %v3448 = vunpack.c.l.b16 %v2791
      %v3449 = vunpack.c.l.b16 %v2792
      %v3450 = vunpack.c.l.b16 %v2794
      %v3451 = vunpack.c.l.b16 %v2795
      %v3452 = vunpack.c.l.b16 %v2797
      %v3453 = vunpack.c.l.b16 %v2798
      %v3454 = vunpack.c.l.b16 %v2800
      %v3455 = vunpack.c.l.b16 %v2801
      %v3456 = vunpack.c.l.b16 %v2803
      %v3457 = vunpack.c.l.b16 %v2804
      %v3458 = vunpack.c.l.b16 %v2806
      %v3459 = vunpack.c.l.b16 %v2807
      %v3460 = vunpack.c.l.b16 %v2809
      %v3461 = vunpack.c.l.b16 %v2810
      %v3462 = vunpack.c.l.b16 %v2812
      %v3463 = vunpack.c.l.b16 %v2813
      %v3464 = vunpack.c.l.b16 %v2815
      %v3465 = vunpack.c.l.b16 %v2816
      %v3466 = vpack.c.b16 %v3431, %v3430
      %v3467 = vpack.c.b16 %v3433, %v3432
      %v3468 = vpack.c.b16 %v3435, %v3434
      %v3469 = vpack.c.b16 %v3437, %v3436
      %v3470 = vpack.c.b16 %v3439, %v3438
      %v3471 = vpack.c.b16 %v3441, %v3440
      %v3472 = vpack.c.b16 %v3443, %v3442
      %v3473 = vpack.c.b16 %v3445, %v3444
      %v3474 = vpack.c.b16 %v3447, %v3446
      %v3475 = vpack.c.b16 %v3449, %v3448
      %v3476 = vpack.c.b16 %v3451, %v3450
      %v3477 = vpack.c.b16 %v3453, %v3452
      %v3478 = vpack.c.b16 %v3455, %v3454
      %v3479 = vpack.c.b16 %v3457, %v3456
      %v3480 = vpack.c.b16 %v3459, %v3458
      %v3481 = vpack.c.b16 %v3461, %v3460
      %v3482 = vpack.c.b16 %v3463, %v3462
      %v3483 = vpack.c.b16 %v3465, %v3464
      %v3484 = vunpack.c.l.b16 %v2831
      %v3485 = vunpack.c.l.b16 %v2841
      %v3486 = vunpack.c.l.b16 %v2855
      %v3487 = vunpack.c.l.b16 %v2865
      %v3488 = vunpack.c.l.b16 %v2879
      %v3489 = vunpack.c.l.b16 %v2889
      %v3490 = vunpack.c.l.b16 %v2903
      %v3491 = vunpack.c.l.b16 %v2913
      %v3492 = vunpack.c.l.b16 %v2927
      %v3493 = vunpack.c.l.b16 %v2937
      %v3494 = vunpack.c.l.b16 %v2951
      %v3495 = vunpack.c.l.b16 %v2961
      %v3496 = vunpack.c.l.b16 %v2975
      %v3497 = vunpack.c.l.b16 %v2985
      %v3498 = vunpack.c.l.b16 %v2999
      %v3499 = vunpack.c.l.b16 %v3009
      %v3500 = vunpack.c.l.b16 %v3023
      %v3501 = vunpack.c.l.b16 %v3033
      %v3502 = vunpack.c.l.b16 %v3047
      %v3503 = vunpack.c.l.b16 %v3057
      %v3504 = vunpack.c.l.b16 %v3071
      %v3505 = vunpack.c.l.b16 %v3081
      %v3506 = vunpack.c.l.b16 %v3095
      %v3507 = vunpack.c.l.b16 %v3105
      %v3508 = vunpack.c.l.b16 %v3119
      %v3509 = vunpack.c.l.b16 %v3129
      %v3510 = vunpack.c.l.b16 %v3143
      %v3511 = vunpack.c.l.b16 %v3153
      %v3512 = vunpack.c.l.b16 %v3167
      %v3513 = vunpack.c.l.b16 %v3177
      %v3514 = vunpack.c.l.b16 %v3191
      %v3515 = vunpack.c.l.b16 %v3201
      %v3516 = vunpack.c.l.b16 %v3215
      %v3517 = vunpack.c.l.b16 %v3225
      %v3518 = vunpack.c.l.b16 %v3239
      %v3519 = vunpack.c.l.b16 %v3249
      %v3520 = vpack.c.b16 %v3485, %v3484
      %v3521 = vpack.c.b16 %v3487, %v3486
      %v3522 = vpack.c.b16 %v3489, %v3488
      %v3523 = vpack.c.b16 %v3491, %v3490
      %v3524 = vpack.c.b16 %v3493, %v3492
      %v3525 = vpack.c.b16 %v3495, %v3494
      %v3526 = vpack.c.b16 %v3497, %v3496
      %v3527 = vpack.c.b16 %v3499, %v3498
      %v3528 = vpack.c.b16 %v3501, %v3500
      %v3529 = vpack.c.b16 %v3503, %v3502
      %v3530 = vpack.c.b16 %v3505, %v3504
      %v3531 = vpack.c.b16 %v3507, %v3506
      %v3532 = vpack.c.b16 %v3509, %v3508
      %v3533 = vpack.c.b16 %v3511, %v3510
      %v3534 = vpack.c.b16 %v3513, %v3512
      %v3535 = vpack.c.b16 %v3515, %v3514
      %v3536 = vpack.c.b16 %v3517, %v3516
      %v3537 = vpack.c.b16 %v3519, %v3518
      %3538 = vrot.lane.b32.xlu0 %v3520, 4
      %v3539 = vpop.permute.xlu0 %3538
      %3540 = vrot.lane.b32.xlu0 %v3521, 4
      %v3541 = vpop.permute.xlu0 %3540
      %3542 = vrot.lane.b32.xlu0 %v3522, 4
      %v3543 = vpop.permute.xlu0 %3542
      %3544 = vrot.lane.b32.xlu0 %v3523, 4
      %v3545 = vpop.permute.xlu0 %3544
      %3546 = vrot.lane.b32.xlu0 %v3524, 4
      %v3547 = vpop.permute.xlu0 %3546
      %3548 = vrot.lane.b32.xlu0 %v3525, 4
      %v3549 = vpop.permute.xlu0 %3548
      %3550 = vrot.lane.b32.xlu0 %v3526, 4
      %v3551 = vpop.permute.xlu0 %3550
      %3552 = vrot.lane.b32.xlu0 %v3527, 4
      %v3553 = vpop.permute.xlu0 %3552
      %3554 = vrot.lane.b32.xlu0 %v3528, 4
      %v3555 = vpop.permute.xlu0 %3554
      %3556 = vrot.lane.b32.xlu0 %v3529, 4
      %v3557 = vpop.permute.xlu0 %3556
      %3558 = vrot.lane.b32.xlu0 %v3530, 4
      %v3559 = vpop.permute.xlu0 %3558
      %3560 = vrot.lane.b32.xlu0 %v3531, 4
      %v3561 = vpop.permute.xlu0 %3560
      %3562 = vrot.lane.b32.xlu0 %v3532, 4
      %v3563 = vpop.permute.xlu0 %3562
      %3564 = vrot.lane.b32.xlu0 %v3533, 4
      %v3565 = vpop.permute.xlu0 %3564
      %3566 = vrot.lane.b32.xlu0 %v3534, 4
      %v3567 = vpop.permute.xlu0 %3566
      %3568 = vrot.lane.b32.xlu0 %v3535, 4
      %v3569 = vpop.permute.xlu0 %3568
      %3570 = vrot.lane.b32.xlu0 %v3536, 4
      %v3571 = vpop.permute.xlu0 %3570
      %3572 = vrot.lane.b32.xlu0 %v3537, 4
      %v3573 = vpop.permute.xlu0 %3572
      %v3574 = vunpack.c.l.b16 %v3307
      %v3575 = vunpack.c.l.b16 %v3310
      %v3576 = vunpack.c.l.b16 %v3314
      %v3577 = vunpack.c.l.b16 %v3317
      %v3578 = vunpack.c.l.b16 %v3321
      %v3579 = vunpack.c.l.b16 %v3324
      %v3580 = vunpack.c.l.b16 %v3328
      %v3581 = vunpack.c.l.b16 %v3331
      %v3582 = vunpack.c.l.b16 %v3335
      %v3583 = vunpack.c.l.b16 %v3338
      %v3584 = vunpack.c.l.b16 %v3342
      %v3585 = vunpack.c.l.b16 %v3345
      %v3586 = vunpack.c.l.b16 %v3349
      %v3587 = vunpack.c.l.b16 %v3352
      %v3588 = vunpack.c.l.b16 %v3356
      %v3589 = vunpack.c.l.b16 %v3359
      %v3590 = vunpack.c.l.b16 %v3363
      %v3591 = vunpack.c.l.b16 %v3366
      %v3592 = vunpack.c.l.b16 %v3370
      %v3593 = vunpack.c.l.b16 %v3373
      %v3594 = vunpack.c.l.b16 %v3377
      %v3595 = vunpack.c.l.b16 %v3380
      %v3596 = vunpack.c.l.b16 %v3384
      %v3597 = vunpack.c.l.b16 %v3387
      %v3598 = vunpack.c.l.b16 %v3391
      %v3599 = vunpack.c.l.b16 %v3394
      %v3600 = vunpack.c.l.b16 %v3398
      %v3601 = vunpack.c.l.b16 %v3401
      %v3602 = vunpack.c.l.b16 %v3405
      %v3603 = vunpack.c.l.b16 %v3408
      %v3604 = vunpack.c.l.b16 %v3412
      %v3605 = vunpack.c.l.b16 %v3415
      %v3606 = vunpack.c.l.b16 %v3419
      %v3607 = vunpack.c.l.b16 %v3422
      %v3608 = vunpack.c.l.b16 %v3426
      %v3609 = vunpack.c.l.b16 %v3429
      %v3610 = vpack.c.b16 %v3575, %v3574
      %v3611 = vpack.c.b16 %v3577, %v3576
      %v3612 = vpack.c.b16 %v3579, %v3578
      %v3613 = vpack.c.b16 %v3581, %v3580
      %v3614 = vpack.c.b16 %v3583, %v3582
      %v3615 = vpack.c.b16 %v3585, %v3584
      %v3616 = vpack.c.b16 %v3587, %v3586
      %v3617 = vpack.c.b16 %v3589, %v3588
      %v3618 = vpack.c.b16 %v3591, %v3590
      %v3619 = vpack.c.b16 %v3593, %v3592
      %v3620 = vpack.c.b16 %v3595, %v3594
      %v3621 = vpack.c.b16 %v3597, %v3596
      %v3622 = vpack.c.b16 %v3599, %v3598
      %v3623 = vpack.c.b16 %v3601, %v3600
      %v3624 = vpack.c.b16 %v3603, %v3602
      %v3625 = vpack.c.b16 %v3605, %v3604
      %v3626 = vpack.c.b16 %v3607, %v3606
      %v3627 = vpack.c.b16 %v3609, %v3608
      %3628 = vrot.lane.b32.xlu0 %v3610, 8
      %v3629 = vpop.permute.xlu0 %3628
      %3630 = vrot.lane.b32.xlu0 %v3611, 8
      %v3631 = vpop.permute.xlu0 %3630
      %3632 = vrot.lane.b32.xlu0 %v3612, 8
      %v3633 = vpop.permute.xlu0 %3632
      %3634 = vrot.lane.b32.xlu0 %v3613, 8
      %v3635 = vpop.permute.xlu0 %3634
      %3636 = vrot.lane.b32.xlu0 %v3614, 8
      %v3637 = vpop.permute.xlu0 %3636
      %3638 = vrot.lane.b32.xlu0 %v3615, 8
      %v3639 = vpop.permute.xlu0 %3638
      %3640 = vrot.lane.b32.xlu0 %v3616, 8
      %v3641 = vpop.permute.xlu0 %3640
      %3642 = vrot.lane.b32.xlu0 %v3617, 8
      %v3643 = vpop.permute.xlu0 %3642
      %3644 = vrot.lane.b32.xlu0 %v3618, 8
      %v3645 = vpop.permute.xlu0 %3644
      %3646 = vrot.lane.b32.xlu0 %v3619, 8
      %v3647 = vpop.permute.xlu0 %3646
      %3648 = vrot.lane.b32.xlu0 %v3620, 8
      %v3649 = vpop.permute.xlu0 %3648
      %3650 = vrot.lane.b32.xlu0 %v3621, 8
      %v3651 = vpop.permute.xlu0 %3650
      %3652 = vrot.lane.b32.xlu0 %v3622, 8
      %v3653 = vpop.permute.xlu0 %3652
      %3654 = vrot.lane.b32.xlu0 %v3623, 8
      %v3655 = vpop.permute.xlu0 %3654
      %3656 = vrot.lane.b32.xlu0 %v3624, 8
      %v3657 = vpop.permute.xlu0 %3656
      %3658 = vrot.lane.b32.xlu0 %v3625, 8
      %v3659 = vpop.permute.xlu0 %3658
      %3660 = vrot.lane.b32.xlu0 %v3626, 8
      %v3661 = vpop.permute.xlu0 %3660
      %3662 = vrot.lane.b32.xlu0 %v3627, 8
      %v3663 = vpop.permute.xlu0 %3662
      %v3666 = vsel %vm1592, %v3466, %v3539
      %v3669 = vsel %vm1592, %v3467, %v3541
      %v3672 = vsel %vm1592, %v3468, %v3543
      %v3675 = vsel %vm1592, %v3469, %v3545
      %v3678 = vsel %vm1592, %v3470, %v3547
      %v3681 = vsel %vm1592, %v3471, %v3549
      %v3684 = vsel %vm1592, %v3472, %v3551
      %v3687 = vsel %vm1592, %v3473, %v3553
      %v3690 = vsel %vm1592, %v3474, %v3555
      %v3693 = vsel %vm1592, %v3475, %v3557
      %v3696 = vsel %vm1592, %v3476, %v3559
      %v3699 = vsel %vm1592, %v3477, %v3561
      %v3702 = vsel %vm1592, %v3478, %v3563
      %v3705 = vsel %vm1592, %v3479, %v3565
      %v3708 = vsel %vm1592, %v3480, %v3567
      %v3711 = vsel %vm1592, %v3481, %v3569
      %v3714 = vsel %vm1592, %v3482, %v3571
      %v3717 = vsel %vm1592, %v3483, %v3573
      %v3719 = vsel %vm1647, %v3666, %v3629
      %v3721 = vsel %vm1647, %v3669, %v3631
      %v3723 = vsel %vm1647, %v3672, %v3633
      %v3725 = vsel %vm1647, %v3675, %v3635
      %v3727 = vsel %vm1647, %v3678, %v3637
      %v3729 = vsel %vm1647, %v3681, %v3639
      %v3731 = vsel %vm1647, %v3684, %v3641
      %v3733 = vsel %vm1647, %v3687, %v3643
      %v3735 = vsel %vm1647, %v3690, %v3645
      %v3737 = vsel %vm1647, %v3693, %v3647
      %v3739 = vsel %vm1647, %v3696, %v3649
      %v3741 = vsel %vm1647, %v3699, %v3651
      %v3743 = vsel %vm1647, %v3702, %v3653
      %v3745 = vsel %vm1647, %v3705, %v3655
      %v3747 = vsel %vm1647, %v3708, %v3657
      %v3749 = vsel %vm1647, %v3711, %v3659
      %v3751 = vsel %vm1647, %v3714, %v3661
      %v3753 = vsel %vm1647, %v3717, %v3663
      %v3754 = vld [vmem:[%s2] sm:$0xf]
      %v3755 = vld [vmem:[%s2 + $0x4] sm:$0x3]
      %s3756 = scalar_lea.vmem %s2, 8
      %v3757 = vld [vmem:[%s3756] sm:$0xf]
      %v3758 = vld [vmem:[%s3756 + $0x4] sm:$0x3]
      %v3761 = vunpack.c.l.b16 %v3757
      %v3762 = vunpack.c.l.b16 %v3758
      %v3763 = vpack.c.b16 %v3762, %v3761
      %v3764 = vsel %vm1694, %v3721, 0
      %v3766 = vsel %vm1694, %v3723, 0
      %v3768 = vsel %vm1694, %v3725, 0
      %v3770 = vsel %vm1694, %v3727, 0
      %v3772 = vsel %vm1694, %v3729, 0
      %v3774 = vsel %vm1694, %v3731, 0
      %v3776 = vsel %vm1694, %v3733, 0
      %v3778 = vsel %vm1694, %v3735, 0
      %v3780 = vsel %vm1694, %v3737, 0
      %v3782 = vsel %vm1694, %v3739, 0
      %v3784 = vsel %vm1694, %v3741, 0
      %v3786 = vsel %vm1694, %v3743, 0
      %v3788 = vsel %vm1694, %v3745, 0
      %v3790 = vsel %vm1694, %v3747, 0
      %v3792 = vsel %vm1694, %v3749, 0
      %v3794 = vsel %vm1694, %v3751, 0
      %v3797 = vsel %vm1727, %v3763, 0
      %3799 = vmatprep.subr.bf16.mxu0 0
      %3800 = vmatpush1.bf16.msra.mxu0 %v3797
      %3801 = vmatprep.subr.bf16.mxu0 0
      %3802 = vmatpush1.bf16.msra.mxu0 0
      %3803 = vmatprep.subr.bf16.mxu0 0
      %3804 = vmatpush1.bf16.msra.mxu0 0
      %3805 = vmatprep.subr.bf16.mxu0 0
      %3806 = vmatpush1.bf16.msra.mxu0 0
      %3807 = vmatprep.subr.bf16.mxu0 0
      %3808 = vmatpush1.bf16.msra.mxu0 0
      %3809 = vmatprep.subr.bf16.mxu0 0
      %3810 = vmatpush1.bf16.msra.mxu0 0
      %3811 = vmatprep.subr.bf16.mxu0 0
      %3812 = vmatpush1.bf16.msra.mxu0 0
      %3813 = vmatprep.subr.bf16.mxu0 0
      %3814 = vmatpush1.bf16.msra.mxu0 0
      %3815 = vmatprep.subr.bf16.mxu0 0
      %3816 = vmatpush1.bf16.msra.mxu0 0
      %3817 = vmatprep.subr.bf16.mxu0 0
      %3818 = vmatpush1.bf16.msra.mxu0 0
      %3819 = vmatprep.subr.bf16.mxu0 0
      %3820 = vmatpush1.bf16.msra.mxu0 0
      %3821 = vmatprep.subr.bf16.mxu0 0
      %3822 = vmatpush1.bf16.msra.mxu0 0
      %3823 = vmatprep.subr.bf16.mxu0 0
      %3824 = vmatpush1.bf16.msra.mxu0 0
      %3825 = vmatprep.subr.bf16.mxu0 0
      %3826 = vmatpush1.bf16.msra.mxu0 0
      %3827 = vmatprep.subr.bf16.mxu0 0
      %3828 = vmatpush1.bf16.msra.mxu0 0
      %3829 = vmatprep.subr.bf16.mxu0 0
      %3830 = vmatpush1.bf16.msra.mxu0 0
      %3831 = vmatprep.mubr.bf16.mxu0 0
      %3832 = vmatmul.mubr.bf16.gmra.mrb[0].mxu0 %v3764
      %v3833 = vpop.f32.mrb[0].mxu0
      %v3834 = vadd.f32 0.0, %v3833
      %v3835 = vpop.f32.mrb[0].mxu0
      %v3836 = vpop.f32.mrb[0].mxu0
      %v3837 = vadd.f32 0.0, %v3836
      %v3838 = vpop.f32.mrb[0].mxu0
      %3839 = vmatprep.mubr.bf16.mxu0 0
      %3840 = vmatmul.mubr.bf16.gmra.mrb[0].mxu0 %v3766
      %v3841 = vpop.f32.mrb[0].mxu0
      %v3842 = vadd.f32 0.0, %v3841
      %v3843 = vpop.f32.mrb[0].mxu0
      %v3844 = vpop.f32.mrb[0].mxu0
      %v3845 = vadd.f32 0.0, %v3844
      %v3846 = vpop.f32.mrb[0].mxu0
      %3847 = vmatprep.mubr.bf16.mxu0 0
      %3848 = vmatmul.mubr.bf16.gmra.mrb[0].mxu0 %v3768
      %v3849 = vpop.f32.mrb[0].mxu0
      %v3850 = vadd.f32 0.0, %v3849
      %v3851 = vpop.f32.mrb[0].mxu0
      %v3852 = vpop.f32.mrb[0].mxu0
      %v3853 = vadd.f32 0.0, %v3852
      %v3854 = vpop.f32.mrb[0].mxu0
      %3855 = vmatprep.mubr.bf16.mxu0 0
      %3856 = vmatmul.mubr.bf16.gmra.mrb[0].mxu0 %v3770
      %v3857 = vpop.f32.mrb[0].mxu0
      %v3858 = vadd.f32 0.0, %v3857
      %v3859 = vpop.f32.mrb[0].mxu0
      %v3860 = vpop.f32.mrb[0].mxu0
      %v3861 = vadd.f32 0.0, %v3860
      %v3862 = vpop.f32.mrb[0].mxu0
      %3863 = vmatprep.mubr.bf16.mxu0 0
      %3864 = vmatmul.mubr.bf16.gmra.mrb[0].mxu0 %v3772
      %v3865 = vpop.f32.mrb[0].mxu0
      %v3866 = vadd.f32 0.0, %v3865
      %v3867 = vpop.f32.mrb[0].mxu0
      %v3868 = vpop.f32.mrb[0].mxu0
      %v3869 = vadd.f32 0.0, %v3868
      %v3870 = vpop.f32.mrb[0].mxu0
      %3871 = vmatprep.mubr.bf16.mxu0 0
      %3872 = vmatmul.mubr.bf16.gmra.mrb[0].mxu0 %v3774
      %v3873 = vpop.f32.mrb[0].mxu0
      %v3874 = vadd.f32 0.0, %v3873
      %v3875 = vpop.f32.mrb[0].mxu0
      %v3876 = vpop.f32.mrb[0].mxu0
      %v3877 = vadd.f32 0.0, %v3876
      %v3878 = vpop.f32.mrb[0].mxu0
      %3879 = vmatprep.mubr.bf16.mxu0 0
      %3880 = vmatmul.mubr.bf16.gmra.mrb[0].mxu0 %v3776
      %v3881 = vpop.f32.mrb[0].mxu0
      %v3882 = vadd.f32 0.0, %v3881
      %v3883 = vpop.f32.mrb[0].mxu0
      %v3884 = vpop.f32.mrb[0].mxu0
      %v3885 = vadd.f32 0.0, %v3884
      %v3886 = vpop.f32.mrb[0].mxu0
      %3887 = vmatprep.mubr.bf16.mxu0 0
      %3888 = vmatmul.mubr.bf16.gmra.mrb[0].mxu0 %v3778
      %v3889 = vpop.f32.mrb[0].mxu0
      %v3890 = vadd.f32 0.0, %v3889
      %v3891 = vpop.f32.mrb[0].mxu0
      %v3892 = vpop.f32.mrb[0].mxu0
      %v3893 = vadd.f32 0.0, %v3892
      %v3894 = vpop.f32.mrb[0].mxu0
      %3895 = vmatprep.mubr.bf16.mxu0 0
      %3896 = vmatmul.mubr.bf16.gmra.mrb[0].mxu0 %v3780
      %v3897 = vpop.f32.mrb[0].mxu0
      %v3898 = vadd.f32 0.0, %v3897
      %v3899 = vpop.f32.mrb[0].mxu0
      %v3900 = vpop.f32.mrb[0].mxu0
      %v3901 = vadd.f32 0.0, %v3900
      %v3902 = vpop.f32.mrb[0].mxu0
      %3903 = vmatprep.mubr.bf16.mxu0 0
      %3904 = vmatmul.mubr.bf16.gmra.mrb[0].mxu0 %v3782
      %v3905 = vpop.f32.mrb[0].mxu0
      %v3906 = vadd.f32 0.0, %v3905
      %v3907 = vpop.f32.mrb[0].mxu0
      %v3908 = vpop.f32.mrb[0].mxu0
      %v3909 = vadd.f32 0.0, %v3908
      %v3910 = vpop.f32.mrb[0].mxu0
      %3911 = vmatprep.mubr.bf16.mxu0 0
      %3912 = vmatmul.mubr.bf16.gmra.mrb[0].mxu0 %v3784
      %v3913 = vpop.f32.mrb[0].mxu0
      %v3914 = vadd.f32 0.0, %v3913
      %v3915 = vpop.f32.mrb[0].mxu0
      %v3916 = vpop.f32.mrb[0].mxu0
      %v3917 = vadd.f32 0.0, %v3916
      %v3918 = vpop.f32.mrb[0].mxu0
      %3919 = vmatprep.mubr.bf16.mxu0 0
      %3920 = vmatmul.mubr.bf16.gmra.mrb[0].mxu0 %v3786
      %v3921 = vpop.f32.mrb[0].mxu0
      %v3922 = vadd.f32 0.0, %v3921
      %v3923 = vpop.f32.mrb[0].mxu0
      %v3924 = vpop.f32.mrb[0].mxu0
      %v3925 = vadd.f32 0.0, %v3924
      %v3926 = vpop.f32.mrb[0].mxu0
      %3927 = vmatprep.mubr.bf16.mxu0 0
      %3928 = vmatmul.mubr.bf16.gmra.mrb[0].mxu0 %v3788
      %v3929 = vpop.f32.mrb[0].mxu0
      %v3930 = vadd.f32 0.0, %v3929
      %v3931 = vpop.f32.mrb[0].mxu0
      %v3932 = vpop.f32.mrb[0].mxu0
      %v3933 = vadd.f32 0.0, %v3932
      %v3934 = vpop.f32.mrb[0].mxu0
      %3935 = vmatprep.mubr.bf16.mxu0 0
      %3936 = vmatmul.mubr.bf16.gmra.mrb[0].mxu0 %v3790
      %v3937 = vpop.f32.mrb[0].mxu0
      %v3938 = vadd.f32 0.0, %v3937
      %v3939 = vpop.f32.mrb[0].mxu0
      %v3940 = vpop.f32.mrb[0].mxu0
      %v3941 = vadd.f32 0.0, %v3940
      %v3942 = vpop.f32.mrb[0].mxu0
      %3943 = vmatprep.mubr.bf16.mxu0 0
      %3944 = vmatmul.mubr.bf16.gmra.mrb[0].mxu0 %v3792
      %v3945 = vpop.f32.mrb[0].mxu0
      %v3946 = vadd.f32 0.0, %v3945
      %v3947 = vpop.f32.mrb[0].mxu0
      %v3948 = vpop.f32.mrb[0].mxu0
      %v3949 = vadd.f32 0.0, %v3948
      %v3950 = vpop.f32.mrb[0].mxu0
      %3951 = vmatprep.mubr.bf16.mxu0 0
      %3952 = vmatmul.mubr.bf16.gmra.mrb[0].mxu0 %v3794
      %v3953 = vpop.f32.mrb[0].mxu0
      %v3954 = vadd.f32 0.0, %v3953
      %v3955 = vpop.f32.mrb[0].mxu0
      %v3956 = vpop.f32.mrb[0].mxu0
      %v3957 = vadd.f32 0.0, %v3956
      %v3958 = vpop.f32.mrb[0].mxu0
      %3959 = vdwg.mxu0
      %v3962 = vunpack.c.l.b16 %v3754
      %v3963 = vunpack.c.l.b16 %v3755
      %v3964 = vpack.c.b16 %v3963, %v3962
      %v3965 = vsel %vm1694, %v3719, 0
      %v3968 = vsel %vm1727, %v3964, 0
      %3970 = vmatprep.subr.bf16.mxu0 0
      %3971 = vmatpush1.bf16.msra.mxu0 %v3968
      %3972 = vmatprep.subr.bf16.mxu0 0
      %3973 = vmatpush1.bf16.msra.mxu0 0
      %3974 = vmatprep.subr.bf16.mxu0 0
      %3975 = vmatpush1.bf16.msra.mxu0 0
      %3976 = vmatprep.subr.bf16.mxu0 0
      %3977 = vmatpush1.bf16.msra.mxu0 0
      %3978 = vmatprep.subr.bf16.mxu0 0
      %3979 = vmatpush1.bf16.msra.mxu0 0
      %3980 = vmatprep.subr.bf16.mxu0 0
      %3981 = vmatpush1.bf16.msra.mxu0 0
      %3982 = vmatprep.subr.bf16.mxu0 0
      %3983 = vmatpush1.bf16.msra.mxu0 0
      %3984 = vmatprep.subr.bf16.mxu0 0
      %3985 = vmatpush1.bf16.msra.mxu0 0
      %3986 = vmatprep.subr.bf16.mxu0 0
      %3987 = vmatpush1.bf16.msra.mxu0 0
      %3988 = vmatprep.subr.bf16.mxu0 0
      %3989 = vmatpush1.bf16.msra.mxu0 0
      %3990 = vmatprep.subr.bf16.mxu0 0
      %3991 = vmatpush1.bf16.msra.mxu0 0
      %3992 = vmatprep.subr.bf16.mxu0 0
      %3993 = vmatpush1.bf16.msra.mxu0 0
      %3994 = vmatprep.subr.bf16.mxu0 0
      %3995 = vmatpush1.bf16.msra.mxu0 0
      %3996 = vmatprep.subr.bf16.mxu0 0
      %3997 = vmatpush1.bf16.msra.mxu0 0
      %3998 = vmatprep.subr.bf16.mxu0 0
      %3999 = vmatpush1.bf16.msra.mxu0 0
      %4000 = vmatprep.subr.bf16.mxu0 0
      %4001 = vmatpush1.bf16.msra.mxu0 0
      %4002 = vmatprep.mubr.bf16.mxu0 0
      %4003 = vmatmul.mubr.bf16.gmra.mrb[0].mxu0 %v3965
      %v4004 = vpop.f32.mrb[0].mxu0
      %v4005 = vadd.f32 %v3834, %v4004
      %v4006 = vpop.f32.mrb[0].mxu0
      %v4007 = vpop.f32.mrb[0].mxu0
      %v4008 = vadd.f32 %v3837, %v4007
      %v4009 = vpop.f32.mrb[0].mxu0
      %4010 = vmatprep.mubr.bf16.mxu0 0
      %4011 = vmatmul.mubr.bf16.gmra.mrb[0].mxu0 %v3764
      %v4012 = vpop.f32.mrb[0].mxu0
      %v4013 = vadd.f32 %v3842, %v4012
      %v4014 = vpop.f32.mrb[0].mxu0
      %v4015 = vpop.f32.mrb[0].mxu0
      %v4016 = vadd.f32 %v3845, %v4015
      %v4017 = vpop.f32.mrb[0].mxu0
      %4018 = vmatprep.mubr.bf16.mxu0 0
      %4019 = vmatmul.mubr.bf16.gmra.mrb[0].mxu0 %v3766
      %v4020 = vpop.f32.mrb[0].mxu0
      %v4021 = vadd.f32 %v3850, %v4020
      %v4022 = vpop.f32.mrb[0].mxu0
      %v4023 = vpop.f32.mrb[0].mxu0
      %v4024 = vadd.f32 %v3853, %v4023
      %v4025 = vpop.f32.mrb[0].mxu0
      %4026 = vmatprep.mubr.bf16.mxu0 0
      %4027 = vmatmul.mubr.bf16.gmra.mrb[0].mxu0 %v3768
      %v4028 = vpop.f32.mrb[0].mxu0
      %v4029 = vadd.f32 %v3858, %v4028
      %v4030 = vpop.f32.mrb[0].mxu0
      %v4031 = vpop.f32.mrb[0].mxu0
      %v4032 = vadd.f32 %v3861, %v4031
      %v4033 = vpop.f32.mrb[0].mxu0
      %4034 = vmatprep.mubr.bf16.mxu0 0
      %4035 = vmatmul.mubr.bf16.gmra.mrb[0].mxu0 %v3770
      %v4036 = vpop.f32.mrb[0].mxu0
      %v4037 = vadd.f32 %v3866, %v4036
      %v4038 = vpop.f32.mrb[0].mxu0
      %v4039 = vpop.f32.mrb[0].mxu0
      %v4040 = vadd.f32 %v3869, %v4039
      %v4041 = vpop.f32.mrb[0].mxu0
      %4042 = vmatprep.mubr.bf16.mxu0 0
      %4043 = vmatmul.mubr.bf16.gmra.mrb[0].mxu0 %v3772
      %v4044 = vpop.f32.mrb[0].mxu0
      %v4045 = vadd.f32 %v3874, %v4044
      %v4046 = vpop.f32.mrb[0].mxu0
      %v4047 = vpop.f32.mrb[0].mxu0
      %v4048 = vadd.f32 %v3877, %v4047
      %v4049 = vpop.f32.mrb[0].mxu0
      %4050 = vmatprep.mubr.bf16.mxu0 0
      %4051 = vmatmul.mubr.bf16.gmra.mrb[0].mxu0 %v3774
      %v4052 = vpop.f32.mrb[0].mxu0
      %v4053 = vadd.f32 %v3882, %v4052
      %v4054 = vpop.f32.mrb[0].mxu0
      %v4055 = vpop.f32.mrb[0].mxu0
      %v4056 = vadd.f32 %v3885, %v4055
      %v4057 = vpop.f32.mrb[0].mxu0
      %4058 = vmatprep.mubr.bf16.mxu0 0
      %4059 = vmatmul.mubr.bf16.gmra.mrb[0].mxu0 %v3776
      %v4060 = vpop.f32.mrb[0].mxu0
      %v4061 = vadd.f32 %v3890, %v4060
      %v4062 = vpop.f32.mrb[0].mxu0
      %v4063 = vpop.f32.mrb[0].mxu0
      %v4064 = vadd.f32 %v3893, %v4063
      %v4065 = vpop.f32.mrb[0].mxu0
      %4066 = vmatprep.mubr.bf16.mxu0 0
      %4067 = vmatmul.mubr.bf16.gmra.mrb[0].mxu0 %v3778
      %v4068 = vpop.f32.mrb[0].mxu0
      %v4069 = vadd.f32 %v3898, %v4068
      %v4070 = vpop.f32.mrb[0].mxu0
      %v4071 = vpop.f32.mrb[0].mxu0
      %v4072 = vadd.f32 %v3901, %v4071
      %v4073 = vpop.f32.mrb[0].mxu0
      %4074 = vmatprep.mubr.bf16.mxu0 0
      %4075 = vmatmul.mubr.bf16.gmra.mrb[0].mxu0 %v3780
      %v4076 = vpop.f32.mrb[0].mxu0
      %v4077 = vadd.f32 %v3906, %v4076
      %v4078 = vpop.f32.mrb[0].mxu0
      %v4079 = vpop.f32.mrb[0].mxu0
      %v4080 = vadd.f32 %v3909, %v4079
      %v4081 = vpop.f32.mrb[0].mxu0
      %4082 = vmatprep.mubr.bf16.mxu0 0
      %4083 = vmatmul.mubr.bf16.gmra.mrb[0].mxu0 %v3782
      %v4084 = vpop.f32.mrb[0].mxu0
      %v4085 = vadd.f32 %v3914, %v4084
      %v4086 = vpop.f32.mrb[0].mxu0
      %v4087 = vpop.f32.mrb[0].mxu0
      %v4088 = vadd.f32 %v3917, %v4087
      %v4089 = vpop.f32.mrb[0].mxu0
      %4090 = vmatprep.mubr.bf16.mxu0 0
      %4091 = vmatmul.mubr.bf16.gmra.mrb[0].mxu0 %v3784
      %v4092 = vpop.f32.mrb[0].mxu0
      %v4093 = vadd.f32 %v3922, %v4092
      %v4094 = vpop.f32.mrb[0].mxu0
      %v4095 = vpop.f32.mrb[0].mxu0
      %v4096 = vadd.f32 %v3925, %v4095
      %v4097 = vpop.f32.mrb[0].mxu0
      %4098 = vmatprep.mubr.bf16.mxu0 0
      %4099 = vmatmul.mubr.bf16.gmra.mrb[0].mxu0 %v3786
      %v4100 = vpop.f32.mrb[0].mxu0
      %v4101 = vadd.f32 %v3930, %v4100
      %v4102 = vpop.f32.mrb[0].mxu0
      %v4103 = vpop.f32.mrb[0].mxu0
      %v4104 = vadd.f32 %v3933, %v4103
      %v4105 = vpop.f32.mrb[0].mxu0
      %4106 = vmatprep.mubr.bf16.mxu0 0
      %4107 = vmatmul.mubr.bf16.gmra.mrb[0].mxu0 %v3788
      %v4108 = vpop.f32.mrb[0].mxu0
      %v4109 = vadd.f32 %v3938, %v4108
      %v4110 = vpop.f32.mrb[0].mxu0
      %v4111 = vpop.f32.mrb[0].mxu0
      %v4112 = vadd.f32 %v3941, %v4111
      %v4113 = vpop.f32.mrb[0].mxu0
      %4114 = vmatprep.mubr.bf16.mxu0 0
      %4115 = vmatmul.mubr.bf16.gmra.mrb[0].mxu0 %v3790
      %v4116 = vpop.f32.mrb[0].mxu0
      %v4117 = vadd.f32 %v3946, %v4116
      %v4118 = vpop.f32.mrb[0].mxu0
      %v4119 = vpop.f32.mrb[0].mxu0
      %v4120 = vadd.f32 %v3949, %v4119
      %v4121 = vpop.f32.mrb[0].mxu0
      %4122 = vmatprep.mubr.bf16.mxu0 0
      %4123 = vmatmul.mubr.bf16.gmra.mrb[0].mxu0 %v3792
      %v4124 = vpop.f32.mrb[0].mxu0
      %v4125 = vadd.f32 %v3954, %v4124
      %v4126 = vpop.f32.mrb[0].mxu0
      %v4127 = vpop.f32.mrb[0].mxu0
      %v4128 = vadd.f32 %v3957, %v4127
      %v4129 = vpop.f32.mrb[0].mxu0
      %4130 = vdwg.mxu0
      %s4131 = scalar_lea.vmem %s2, 16
      %v4132 = vld [vmem:[%s4131] sm:$0xf]
      %v4133 = vld [vmem:[%s4131 + $0x4] sm:$0x3]
      %v4136 = vunpack.c.l.b16 %v4132
      %v4137 = vunpack.c.l.b16 %v4133
      %v4138 = vpack.c.b16 %v4137, %v4136
      %v4139 = vsel %vm1694, %v3753, 0
      %v4142 = vsel %vm1727, %v4138, 0
      %4144 = vmatprep.subr.bf16.mxu0 0
      %4145 = vmatpush1.bf16.msra.mxu0 %v4142
      %4146 = vmatprep.subr.bf16.mxu0 0
      %4147 = vmatpush1.bf16.msra.mxu0 0
      %4148 = vmatprep.subr.bf16.mxu0 0
      %4149 = vmatpush1.bf16.msra.mxu0 0
      %4150 = vmatprep.subr.bf16.mxu0 0
      %4151 = vmatpush1.bf16.msra.mxu0 0
      %4152 = vmatprep.subr.bf16.mxu0 0
      %4153 = vmatpush1.bf16.msra.mxu0 0
      %4154 = vmatprep.subr.bf16.mxu0 0
      %4155 = vmatpush1.bf16.msra.mxu0 0
      %4156 = vmatprep.subr.bf16.mxu0 0
      %4157 = vmatpush1.bf16.msra.mxu0 0
      %4158 = vmatprep.subr.bf16.mxu0 0
      %4159 = vmatpush1.bf16.msra.mxu0 0
      %4160 = vmatprep.subr.bf16.mxu0 0
      %4161 = vmatpush1.bf16.msra.mxu0 0
      %4162 = vmatprep.subr.bf16.mxu0 0
      %4163 = vmatpush1.bf16.msra.mxu0 0
      %4164 = vmatprep.subr.bf16.mxu0 0
      %4165 = vmatpush1.bf16.msra.mxu0 0
      %4166 = vmatprep.subr.bf16.mxu0 0
      %4167 = vmatpush1.bf16.msra.mxu0 0
      %4168 = vmatprep.subr.bf16.mxu0 0
      %4169 = vmatpush1.bf16.msra.mxu0 0
      %4170 = vmatprep.subr.bf16.mxu0 0
      %4171 = vmatpush1.bf16.msra.mxu0 0
      %4172 = vmatprep.subr.bf16.mxu0 0
      %4173 = vmatpush1.bf16.msra.mxu0 0
      %4174 = vmatprep.subr.bf16.mxu0 0
      %4175 = vmatpush1.bf16.msra.mxu0 0
      %4176 = vmatprep.mubr.bf16.mxu0 0
      %4177 = vmatmul.mubr.bf16.gmra.mrb[0].mxu0 %v3766
      %v4178 = vpop.f32.mrb[0].mxu0
      %v4179 = vadd.f32 0.0, %v4178
      %v4180 = vpop.f32.mrb[0].mxu0
      %v4181 = vpop.f32.mrb[0].mxu0
      %v4182 = vadd.f32 0.0, %v4181
      %v4183 = vpop.f32.mrb[0].mxu0
      %4184 = vmatprep.mubr.bf16.mxu0 0
      %4185 = vmatmul.mubr.bf16.gmra.mrb[0].mxu0 %v3768
      %v4186 = vpop.f32.mrb[0].mxu0
      %v4187 = vadd.f32 0.0, %v4186
      %v4188 = vpop.f32.mrb[0].mxu0
      %v4189 = vpop.f32.mrb[0].mxu0
      %v4190 = vadd.f32 0.0, %v4189
      %v4191 = vpop.f32.mrb[0].mxu0
      %4192 = vmatprep.mubr.bf16.mxu0 0
      %4193 = vmatmul.mubr.bf16.gmra.mrb[0].mxu0 %v3770
      %v4194 = vpop.f32.mrb[0].mxu0
      %v4195 = vadd.f32 0.0, %v4194
      %v4196 = vpop.f32.mrb[0].mxu0
      %v4197 = vpop.f32.mrb[0].mxu0
      %v4198 = vadd.f32 0.0, %v4197
      %v4199 = vpop.f32.mrb[0].mxu0
      %4200 = vmatprep.mubr.bf16.mxu0 0
      %4201 = vmatmul.mubr.bf16.gmra.mrb[0].mxu0 %v3772
      %v4202 = vpop.f32.mrb[0].mxu0
      %v4203 = vadd.f32 0.0, %v4202
      %v4204 = vpop.f32.mrb[0].mxu0
      %v4205 = vpop.f32.mrb[0].mxu0
      %v4206 = vadd.f32 0.0, %v4205
      %v4207 = vpop.f32.mrb[0].mxu0
      %4208 = vmatprep.mubr.bf16.mxu0 0
      %4209 = vmatmul.mubr.bf16.gmra.mrb[0].mxu0 %v3774
      %v4210 = vpop.f32.mrb[0].mxu0
      %v4211 = vadd.f32 0.0, %v4210
      %v4212 = vpop.f32.mrb[0].mxu0
      %v4213 = vpop.f32.mrb[0].mxu0
      %v4214 = vadd.f32 0.0, %v4213
      %v4215 = vpop.f32.mrb[0].mxu0
      %4216 = vmatprep.mubr.bf16.mxu0 0
      %4217 = vmatmul.mubr.bf16.gmra.mrb[0].mxu0 %v3776
      %v4218 = vpop.f32.mrb[0].mxu0
      %v4219 = vadd.f32 0.0, %v4218
      %v4220 = vpop.f32.mrb[0].mxu0
      %v4221 = vpop.f32.mrb[0].mxu0
      %v4222 = vadd.f32 0.0, %v4221
      %v4223 = vpop.f32.mrb[0].mxu0
      %4224 = vmatprep.mubr.bf16.mxu0 0
      %4225 = vmatmul.mubr.bf16.gmra.mrb[0].mxu0 %v3778
      %v4226 = vpop.f32.mrb[0].mxu0
      %v4227 = vadd.f32 0.0, %v4226
      %v4228 = vpop.f32.mrb[0].mxu0
      %v4229 = vpop.f32.mrb[0].mxu0
      %v4230 = vadd.f32 0.0, %v4229
      %v4231 = vpop.f32.mrb[0].mxu0
      %4232 = vmatprep.mubr.bf16.mxu0 0
      %4233 = vmatmul.mubr.bf16.gmra.mrb[0].mxu0 %v3780
      %v4234 = vpop.f32.mrb[0].mxu0
      %v4235 = vadd.f32 0.0, %v4234
      %v4236 = vpop.f32.mrb[0].mxu0
      %v4237 = vpop.f32.mrb[0].mxu0
      %v4238 = vadd.f32 0.0, %v4237
      %v4239 = vpop.f32.mrb[0].mxu0
      %4240 = vmatprep.mubr.bf16.mxu0 0
      %4241 = vmatmul.mubr.bf16.gmra.mrb[0].mxu0 %v3782
      %v4242 = vpop.f32.mrb[0].mxu0
      %v4243 = vadd.f32 0.0, %v4242
      %v4244 = vpop.f32.mrb[0].mxu0
      %v4245 = vpop.f32.mrb[0].mxu0
      %v4246 = vadd.f32 0.0, %v4245
      %v4247 = vpop.f32.mrb[0].mxu0
      %4248 = vmatprep.mubr.bf16.mxu0 0
      %4249 = vmatmul.mubr.bf16.gmra.mrb[0].mxu0 %v3784
      %v4250 = vpop.f32.mrb[0].mxu0
      %v4251 = vadd.f32 0.0, %v4250
      %v4252 = vpop.f32.mrb[0].mxu0
      %v4253 = vpop.f32.mrb[0].mxu0
      %v4254 = vadd.f32 0.0, %v4253
      %v4255 = vpop.f32.mrb[0].mxu0
      %4256 = vmatprep.mubr.bf16.mxu0 0
      %4257 = vmatmul.mubr.bf16.gmra.mrb[0].mxu0 %v3786
      %v4258 = vpop.f32.mrb[0].mxu0
      %v4259 = vadd.f32 0.0, %v4258
      %v4260 = vpop.f32.mrb[0].mxu0
      %v4261 = vpop.f32.mrb[0].mxu0
      %v4262 = vadd.f32 0.0, %v4261
      %v4263 = vpop.f32.mrb[0].mxu0
      %4264 = vmatprep.mubr.bf16.mxu0 0
      %4265 = vmatmul.mubr.bf16.gmra.mrb[0].mxu0 %v3788
      %v4266 = vpop.f32.mrb[0].mxu0
      %v4267 = vadd.f32 0.0, %v4266
      %v4268 = vpop.f32.mrb[0].mxu0
      %v4269 = vpop.f32.mrb[0].mxu0
      %v4270 = vadd.f32 0.0, %v4269
      %v4271 = vpop.f32.mrb[0].mxu0
      %4272 = vmatprep.mubr.bf16.mxu0 0
      %4273 = vmatmul.mubr.bf16.gmra.mrb[0].mxu0 %v3790
      %v4274 = vpop.f32.mrb[0].mxu0
      %v4275 = vadd.f32 0.0, %v4274
      %v4276 = vpop.f32.mrb[0].mxu0
      %v4277 = vpop.f32.mrb[0].mxu0
      %v4278 = vadd.f32 0.0, %v4277
      %v4279 = vpop.f32.mrb[0].mxu0
      %4280 = vmatprep.mubr.bf16.mxu0 0
      %4281 = vmatmul.mubr.bf16.gmra.mrb[0].mxu0 %v3792
      %v4282 = vpop.f32.mrb[0].mxu0
      %v4283 = vadd.f32 0.0, %v4282
      %v4284 = vpop.f32.mrb[0].mxu0
      %v4285 = vpop.f32.mrb[0].mxu0
      %v4286 = vadd.f32 0.0, %v4285
      %v4287 = vpop.f32.mrb[0].mxu0
      %4288 = vmatprep.mubr.bf16.mxu0 0
      %4289 = vmatmul.mubr.bf16.gmra.mrb[0].mxu0 %v3794
      %v4290 = vpop.f32.mrb[0].mxu0
      %v4291 = vadd.f32 0.0, %v4290
      %v4292 = vpop.f32.mrb[0].mxu0
      %v4293 = vpop.f32.mrb[0].mxu0
      %v4294 = vadd.f32 0.0, %v4293
      %v4295 = vpop.f32.mrb[0].mxu0
      %4296 = vmatprep.mubr.bf16.mxu0 0
      %4297 = vmatmul.mubr.bf16.gmra.mrb[0].mxu0 %v4139
      %v4298 = vpop.f32.mrb[0].mxu0
      %v4299 = vadd.f32 0.0, %v4298
      %v4300 = vpop.f32.mrb[0].mxu0
      %v4301 = vpop.f32.mrb[0].mxu0
      %v4302 = vadd.f32 0.0, %v4301
      %v4303 = vpop.f32.mrb[0].mxu0
      %4304 = vdwg.mxu0
      %v4305 = vadd.f32 %v4005, %v4179
      %v4306 = vadd.f32 %v4008, %v4182
      %v4307 = vadd.f32 %v4013, %v4187
      %v4308 = vadd.f32 %v4016, %v4190
      %v4309 = vadd.f32 %v4021, %v4195
      %v4310 = vadd.f32 %v4024, %v4198
      %v4311 = vadd.f32 %v4029, %v4203
      %v4312 = vadd.f32 %v4032, %v4206
      %v4313 = vadd.f32 %v4037, %v4211
      %v4314 = vadd.f32 %v4040, %v4214
      %v4315 = vadd.f32 %v4045, %v4219
      %v4316 = vadd.f32 %v4048, %v4222
      %v4317 = vadd.f32 %v4053, %v4227
      %v4318 = vadd.f32 %v4056, %v4230
      %v4319 = vadd.f32 %v4061, %v4235
      %v4320 = vadd.f32 %v4064, %v4238
      %v4321 = vadd.f32 %v4069, %v4243
      %v4322 = vadd.f32 %v4072, %v4246
      %v4323 = vadd.f32 %v4077, %v4251
      %v4324 = vadd.f32 %v4080, %v4254
      %v4325 = vadd.f32 %v4085, %v4259
      %v4326 = vadd.f32 %v4088, %v4262
      %v4327 = vadd.f32 %v4093, %v4267
      %v4328 = vadd.f32 %v4096, %v4270
      %v4329 = vadd.f32 %v4101, %v4275
      %v4330 = vadd.f32 %v4104, %v4278
      %v4331 = vadd.f32 %v4109, %v4283
      %v4332 = vadd.f32 %v4112, %v4286
      %v4333 = vadd.f32 %v4117, %v4291
      %v4334 = vadd.f32 %v4120, %v4294
      %v4335 = vadd.f32 %v4125, %v4299
      %v4336 = vadd.f32 %v4128, %v4302
      %v4337 = vld [vmem:[%s4] sm:$0x1]
      %v4339 = vlaneseq
      %v4340 = vshrl.u32 %v4339, 7
      %v4341 = vsub.s32 0, %v4340
      %v4342 = vrot.slane %v4337, %v4341
      %v4344 = vadd.f32 %v4305, %v4342
      %v4345 = vadd.f32 %v4306, %v4342
      %v4346 = vadd.f32 %v4307, %v4342
      %v4347 = vadd.f32 %v4308, %v4342
      %v4348 = vadd.f32 %v4309, %v4342
      %v4349 = vadd.f32 %v4310, %v4342
      %v4350 = vadd.f32 %v4311, %v4342
      %v4351 = vadd.f32 %v4312, %v4342
      %v4352 = vadd.f32 %v4313, %v4342
      %v4353 = vadd.f32 %v4314, %v4342
      %v4354 = vadd.f32 %v4315, %v4342
      %v4355 = vadd.f32 %v4316, %v4342
      %v4356 = vadd.f32 %v4317, %v4342
      %v4357 = vadd.f32 %v4318, %v4342
      %v4358 = vadd.f32 %v4319, %v4342
      %v4359 = vadd.f32 %v4320, %v4342
      %v4360 = vadd.f32 %v4321, %v4342
      %v4361 = vadd.f32 %v4322, %v4342
      %v4362 = vadd.f32 %v4323, %v4342
      %v4363 = vadd.f32 %v4324, %v4342
      %v4364 = vadd.f32 %v4325, %v4342
      %v4365 = vadd.f32 %v4326, %v4342
      %v4366 = vadd.f32 %v4327, %v4342
      %v4367 = vadd.f32 %v4328, %v4342
      %v4368 = vadd.f32 %v4329, %v4342
      %v4369 = vadd.f32 %v4330, %v4342
      %v4370 = vadd.f32 %v4331, %v4342
      %v4371 = vadd.f32 %v4332, %v4342
      %v4372 = vadd.f32 %v4333, %v4342
      %v4373 = vadd.f32 %v4334, %v4342
      %v4374 = vadd.f32 %v4335, %v4342
      %v4375 = vadd.f32 %v4336, %v4342
      %v4376 = vadd.f32 %v4344, %v226
      %v4377 = vadd.f32 %v4345, %v227
      %v4378 = vadd.f32 %v4346, %v228
      %v4379 = vadd.f32 %v4347, %v229
      %v4380 = vadd.f32 %v4348, %v230
      %v4381 = vadd.f32 %v4349, %v231
      %v4382 = vadd.f32 %v4350, %v232
      %v4383 = vadd.f32 %v4351, %v233
      %v4384 = vadd.f32 %v4352, %v234
      %v4385 = vadd.f32 %v4353, %v235
      %v4386 = vadd.f32 %v4354, %v236
      %v4387 = vadd.f32 %v4355, %v237
      %v4388 = vadd.f32 %v4356, %v238
      %v4389 = vadd.f32 %v4357, %v239
      %v4390 = vadd.f32 %v4358, %v240
      %v4391 = vadd.f32 %v4359, %v241
      %v4392 = vadd.f32 %v4360, %v242
      %v4393 = vadd.f32 %v4361, %v243
      %v4394 = vadd.f32 %v4362, %v244
      %v4395 = vadd.f32 %v4363, %v245
      %v4396 = vadd.f32 %v4364, %v246
      %v4397 = vadd.f32 %v4365, %v247
      %v4398 = vadd.f32 %v4366, %v248
      %v4399 = vadd.f32 %v4367, %v249
      %v4400 = vadd.f32 %v4368, %v250
      %v4401 = vadd.f32 %v4369, %v251
      %v4402 = vadd.f32 %v4370, %v252
      %v4403 = vadd.f32 %v4371, %v253
      %v4404 = vadd.f32 %v4372, %v254
      %v4405 = vadd.f32 %v4373, %v255
      %v4406 = vadd.f32 %v4374, %v256
      %v4407 = vadd.f32 %v4375, %v257
      %v4408 = vmax.f32 %v4376, 0.0
      %v4409 = vmax.f32 %v4377, 0.0
      %v4410 = vmax.f32 %v4378, 0.0
      %v4411 = vmax.f32 %v4379, 0.0
      %v4412 = vmax.f32 %v4380, 0.0
      %v4413 = vmax.f32 %v4381, 0.0
      %v4414 = vmax.f32 %v4382, 0.0
      %v4415 = vmax.f32 %v4383, 0.0
      %v4416 = vmax.f32 %v4384, 0.0
      %v4417 = vmax.f32 %v4385, 0.0
      %v4418 = vmax.f32 %v4386, 0.0
      %v4419 = vmax.f32 %v4387, 0.0
      %v4420 = vmax.f32 %v4388, 0.0
      %v4421 = vmax.f32 %v4389, 0.0
      %v4422 = vmax.f32 %v4390, 0.0
      %v4423 = vmax.f32 %v4391, 0.0
      %v4424 = vmax.f32 %v4392, 0.0
      %v4425 = vmax.f32 %v4393, 0.0
      %v4426 = vmax.f32 %v4394, 0.0
      %v4427 = vmax.f32 %v4395, 0.0
      %v4428 = vmax.f32 %v4396, 0.0
      %v4429 = vmax.f32 %v4397, 0.0
      %v4430 = vmax.f32 %v4398, 0.0
      %v4431 = vmax.f32 %v4399, 0.0
      %v4432 = vmax.f32 %v4400, 0.0
      %v4433 = vmax.f32 %v4401, 0.0
      %v4434 = vmax.f32 %v4402, 0.0
      %v4435 = vmax.f32 %v4403, 0.0
      %v4436 = vmax.f32 %v4404, 0.0
      %v4437 = vmax.f32 %v4405, 0.0
      %v4438 = vmax.f32 %v4406, 0.0
      %v4439 = vmax.f32 %v4407, 0.0
      %4440 = vst.msk [vmem:[%s224] sm:$0xff] %vm1592, %v4408
      %4441 = vst.msk [vmem:[%s224 + $0x8] sm:$0xff] %vm1592, %v4409
      %4442 = vst.msk [vmem:[%s224 + $0x10] sm:$0xff] %vm1592, %v4410
      %4443 = vst.msk [vmem:[%s224 + $0x18] sm:$0xff] %vm1592, %v4411
      %4444 = vst.msk [vmem:[%s224 + $0x20] sm:$0xff] %vm1592, %v4412
      %4445 = vst.msk [vmem:[%s224 + $0x28] sm:$0xff] %vm1592, %v4413
      %4446 = vst.msk [vmem:[%s224 + $0x30] sm:$0xff] %vm1592, %v4414
      %4447 = vst.msk [vmem:[%s224 + $0x38] sm:$0xff] %vm1592, %v4415
      %4448 = vst.msk [vmem:[%s224 + $0x40] sm:$0xff] %vm1592, %v4416
      %4449 = vst.msk [vmem:[%s224 + $0x48] sm:$0xff] %vm1592, %v4417
      %4450 = vst.msk [vmem:[%s224 + $0x50] sm:$0xff] %vm1592, %v4418
      %4451 = vst.msk [vmem:[%s224 + $0x58] sm:$0xff] %vm1592, %v4419
      %4452 = vst.msk [vmem:[%s224 + $0x60] sm:$0xff] %vm1592, %v4420
      %4453 = vst.msk [vmem:[%s224 + $0x68] sm:$0xff] %vm1592, %v4421
      %4454 = vst.msk [vmem:[%s224 + $0x70] sm:$0xff] %vm1592, %v4422
      %4455 = vst.msk [vmem:[%s224 + $0x78] sm:$0xff] %vm1592, %v4423
      %4456 = vst.msk [vmem:[%s224 + $0x80] sm:$0xff] %vm1592, %v4424
      %4457 = vst.msk [vmem:[%s224 + $0x88] sm:$0xff] %vm1592, %v4425
      %4458 = vst.msk [vmem:[%s224 + $0x90] sm:$0xff] %vm1592, %v4426
      %4459 = vst.msk [vmem:[%s224 + $0x98] sm:$0xff] %vm1592, %v4427
      %4460 = vst.msk [vmem:[%s224 + $0xa0] sm:$0xff] %vm1592, %v4428
      %4461 = vst.msk [vmem:[%s224 + $0xa8] sm:$0xff] %vm1592, %v4429
      %4462 = vst.msk [vmem:[%s224 + $0xb0] sm:$0xff] %vm1592, %v4430
      %4463 = vst.msk [vmem:[%s224 + $0xb8] sm:$0xff] %vm1592, %v4431
      %4464 = vst.msk [vmem:[%s224 + $0xc0] sm:$0xff] %vm1592, %v4432
      %4465 = vst.msk [vmem:[%s224 + $0xc8] sm:$0xff] %vm1592, %v4433
      %4466 = vst.msk [vmem:[%s224 + $0xd0] sm:$0xff] %vm1592, %v4434
      %4467 = vst.msk [vmem:[%s224 + $0xd8] sm:$0xff] %vm1592, %v4435
      %4468 = vst.msk [vmem:[%s224 + $0xe0] sm:$0xff] %vm1592, %v4436
      %4469 = vst.msk [vmem:[%s224 + $0xe8] sm:$0xff] %vm1592, %v4437
      %4470 = vst.msk [vmem:[%s224 + $0xf0] sm:$0xff] %vm1592, %v4438
      %4471 = vst.msk [vmem:[%s224 + $0xf8] sm:$0xff] %vm1592, %v4439
      %p4472 = scmp.lt.s32.totalorder %s16, 1
      %s4473 = scalar_select %p4472, %s16, 1
      %s4474 = smul.addr %s4473, 32
      %s4475 = smul.addr %s4474, 8
      %s4476 = scalar_lea.vmem %s5, %s4475
      // Predicated region
      $region41: #{tpu_custom_call.1} parent=39 // pred_check
        %p4477 = pneg %p144
      $region42: #{tpu_custom_call.1} parent=39 // pred_check_branch
        %4479 = sbr.rel (%p4477) target = $region44
      $region43: #{tpu_custom_call.1} parent=39 // pred_region
        _
      $region44: #{tpu_custom_call.1} parent=39 // pred_fallthru
        _
    $region40: #{tpu_custom_call.1} parent=5 // pred_fallthru
      _
    %p4480 = scmp.le.s32.totalorder 2, %s11
    // Predicated region
    $region45: #{tpu_custom_call.1} parent=5 // pred_check
      %p4481 = pneg %p4480
    $region46: #{tpu_custom_call.1} parent=5 // pred_check_branch
      %4483 = sbr.rel (%p4481) target = $region48
    $region47: #{tpu_custom_call.1} parent=5 // pred_region
      %s4484 = ssub.s32 %s11, 2
      // Predicated region
      $region49: #{tpu_custom_call.1} parent=47 // pred_check
        %p4485 = pneg %p150
      $region50: #{tpu_custom_call.1} parent=47 // pred_check_branch
        %4487 = sbr.rel (%p4485) target = $region52
      $region51: #{tpu_custom_call.1} parent=47 // pred_region
        %p4488 = scmp.lt.s32.totalorder %s17, 1
        %s4489 = scalar_select %p4488, %s17, 1
        %s4490 = smul.addr %s4489, 32
        %s4491 = smul.addr %s4490, 8
        %s4492 = scalar_lea.vmem %s5, %s4491
      $region52: #{tpu_custom_call.1} parent=47 // pred_fallthru
        _
    $region48: #{tpu_custom_call.1} parent=5 // pred_fallthru
      _
  $region6: #{tpu_custom_call.1} parent=0 // loop_footer
    %s15 = sadd.s32 1, %s11
  $region7: #{tpu_custom_call.1} parent=0 // loop_footer_branch
    %10 = sbr.rel target = $region3
  $region8: #{tpu_custom_call.1} parent=0 // loop_exit
    _

</llo_original>
